<compile_context>
chip_gen: v6e
topology: v6e:2x2x1
jax: 0.10.0
libtpu: 0.0.40
codegen_flags: <defaults>
</compile_context>

<pallas_src>
import jax
import jax.numpy as jnp
from jax.experimental import pallas as pl
from jax.experimental.pallas import tpu as pltpu

EPS = 1e-5
F32 = jnp.float32
BF16 = jnp.bfloat16


def _dot(a, b):
    return jnp.dot(a, b, preferred_element_type=jnp.float32)


# -------------------------------- fused kernel --------------------------------

def _make_kernel(D, F, R, bb):
    """Kernel processing `bb` batch elements (bb*R lane-dense columns) per grid step."""

    def kernel(x_ref, w1t_ref, b1t_ref, lmat_ref, rmat_ref, gbias_ref,
               w2t_ref, b2t_ref, wot_ref, bot_ref, o_ref):
        # x_ref    : (D, L)      channels on sublanes, (batch, seq*node) flat on lanes
        # w1t_ref  : (6F+6, D)   [proj1_t|proj1_s|proj1_c|latent_t,s,c], LN gain folded, transposed
        # b1t_ref  : (6F+6, 1)   matching folded biases
        # lmat_ref : (5, F, F)   left gate mats (gv folded): conv shifts x3, wg_s^T, wg_c^T
        # rmat_ref : (R, 5R)     bf16 right gate mats: kron(wc_j^T,I_N) x3 | kron(I_S,A_A^T) | kron(I_S,A_C^T)
        # gbias_ref: (3, F, R)   per-block gate bias (bv fold + spatial_proj bias 1.0)
        # w2t_ref  : (3, D, F)   channel_proj2 weights (transposed)
        # b2t_ref  : (3, D, 1)
        # wot_ref  : (3, D, D)   channel_proj_out per source, norm1/2/3 gain folded, transposed
        # bot_ref  : (D, 1)      channel_proj_out bias with norm1/2/3 bias folds
        x = x_ref[...]                                      # (D, L) f32, lane-dense

        # Channel LayerNorm: tgu/sgu/cgu normalize the same columns over D; only their
        # affine differs and that is folded into w1t/b1t, so the statistics are shared.
        mu = jnp.mean(x, axis=0, keepdims=True)
        var = jnp.mean((x - mu) ** 2, axis=0, keepdims=True)
        xh = (x - mu) * jax.lax.rsqrt(var + EPS)            # (D, L)

        # Fused latent + channel_proj1 of all three blocks: ONE matmul.
        hp = _dot(w1t_ref[...], xh) + b1t_ref[...]          # (6F+6, L)

        def conv_gate(vb):                                  # tgu: Conv2d(S,S,(1,3),pad=(0,1))
            m = _dot(vb, rmat_ref[:, 0:3 * R])              # (F, 3R)  bf16 x bf16 -> f32
            g = _dot(lmat_ref[0], m[:, 0:R])                # f-1 tap (exact shift matrix)
            g = g + _dot(lmat_ref[1], m[:, R:2 * R])        # center tap
            g = g + _dot(lmat_ref[2], m[:, 2 * R:3 * R])    # f+1 tap
            return g

        def mpnn_gate(i):                                   # sgu / cgu: dense GCNConv
            def gate(vb):
                m = _dot(vb, rmat_ref[:, (3 + i) * R:(4 + i) * R])
                return _dot(lmat_ref[3 + i], m)
            return gate

        def block(k, gate_fn):
            h = jnp.maximum(hp[2 * F * k:2 * F * (k + 1), :], 0.0)     # (2F, L)
            scale = hp[6 * F + 2 * k:6 * F + 2 * k + 1, :]             # (1, L)
            shift = hp[6 * F + 2 * k + 1:6 * F + 2 * k + 2, :]         # (1, L)
            h = h * scale + shift                           # FCLayer_aff affine modulation
            u = h[:F, :]                                    # (F, L)
            v = h[F:, :]                                    # (F, L)
            mv = jnp.mean(v, axis=0, keepdims=True)
            vv = jnp.mean((v - mv) ** 2, axis=0, keepdims=True)
            vhat = (v - mv) * jax.lax.rsqrt(vv + EPS)       # v-LN; affine folded into gate
            vb = vhat.astype(BF16)
            gb = gbias_ref[k]                               # (F, R), includes +1.0 bias
            # Row mixing is block-diagonal over the batch: static unrolled per-batch loop
            # over 128-aligned lane slices; channel math stays batched over all L lanes.
            parts = [gate_fn(vb[:, b * R:(b + 1) * R]) + gb for b in range(bb)]
            g = parts[0] if bb == 1 else jnp.concatenate(parts, axis=1)   # (F, L)
            y = jnp.maximum(_dot(w2t_ref[k], u * g) + b2t_ref[k], 0.0)    # channel_proj2
            return y + x                                    # block residual

        x_t = block(0, conv_gate)
        x_s = block(1, mpnn_gate(0))
        x_c = block(2, mpnn_gate(1))

        # fuse: norm1/2/3 (affine folded into wot/bot) + 1x1 conv + residual, done as
        # three accumulating (D,D)@(D,L) matmuls (no concatenate).
        def norm_nog(z):
            m = jnp.mean(z, axis=0, keepdims=True)
            s = jnp.mean((z - m) ** 2, axis=0, keepdims=True)
            return (z - m) * jax.lax.rsqrt(s + EPS)

        o_ref[...] = (_dot(wot_ref[0], norm_nog(x_t))
                      + _dot(wot_ref[1], norm_nog(x_s))
                      + _dot(wot_ref[2], norm_nog(x_c))
                      + bot_ref[...] + x)

    return kernel


# ------------------------------ pallas wrapper --------------------------------

def _const_spec(arr):
    nd = arr.ndim
    return pl.BlockSpec(arr.shape, lambda g, _nd=nd: (0,) * _nd)


def _tensorcores_per_chip():
    # v7x packs 2 TensorCores per chip (map one batch element per core); earlier
    # generations expose 1 TC per JAX device, where a batch grid is just a serial loop
    # with ~0.35-0.6 us per-step overhead -> merge the batch into one step instead.
    try:
        kind = jax.devices()[0].device_kind.lower()
    except Exception:
        return 1
    return 2 if "7" in kind else 1


def cy2mixer_layer(x, anorm_A, anorm_C, tgu_p, sgu_p, cgu_p, lp):
    """Full Cy2Mixer_layer.forward (use_tinyatt=False, eval mode)."""
    B, S, N, D = x.shape
    F = sgu_p["w2"].shape[0]
    R = S * N
    blocks = (tgu_p, sgu_p, cgu_p)

    # ---- wrapper-side parameter folding / packing (tiny one-time XLA ops) ----
    # latent + channel_proj1 with the channel-LN affine folded in; transposed (R on lanes).
    w1_parts, wl_parts, b1_parts, bl_parts = [], [], [], []
    for p in blocks:
        g = jnp.reshape(p["gN"], (D, 1))
        w1_parts.append(g * p["w1"])
        wl_parts.append(g * p["wl"].T)
        b1_parts.append(p["bN"] @ p["w1"] + p["b1"])
        bl_parts.append(p["bN"] @ p["wl"].T + p["bl"])
    w1t = jnp.concatenate(w1_parts + wl_parts, axis=1).T        # (6F+6, D)
    b1t = jnp.concatenate(b1_parts + bl_parts, axis=1).T        # (6F+6, 1)

    # Gate path (transposed layout): gate = sum_j L_j @ (vhat @ R_j) + gbias, with the
    # v-LN affine (gv, bv) and the spatial_proj bias 1.0 folded in exactly.
    eye_n = jnp.eye(N, dtype=F32)
    eye_s = jnp.eye(S, dtype=F32)
    shifts = (jnp.eye(F, k=-1, dtype=F32),        # picks vhat[f-1] (zero row at f=0)
              jnp.eye(F, dtype=F32),
              jnp.eye(F, k=1, dtype=F32))         # picks vhat[f+1] (zero row at f=F-1)

    rt = [jnp.kron(tgu_p["wc"][j].T, eye_n) for j in range(3)]  # conv taps  (R, R)
    ra = jnp.kron(eye_s, anorm_A.T)                             # sgu GCN    (R, R)
    rc = jnp.kron(eye_s, anorm_C.T)                             # cgu GCN    (R, R)
    rmat = jnp.concatenate(rt + [ra, rc], axis=1).astype(BF16)  # (R, 5R) bf16

    lmat = jnp.stack([sh * tgu_p["gv"] for sh in shifts]
                     + [sgu_p["wg"].T * sgu_p["gv"],
                        cgu_p["wg"].T * cgu_p["gv"]])           # (5, F, F) f32

    csum = lambda m: jnp.sum(m, axis=0, keepdims=True)          # (1, R)
    gb_t = 1.0 + sum((sh @ tgu_p["bv"].T) @ csum(rt[j]) for j, sh in enumerate(shifts))
    gb_s = 1.0 + (sgu_p["wg"].T @ sgu_p["bv"].T) @ csum(ra)
    gb_c = 1.0 + (cgu_p["wg"].T @ cgu_p["bv"].T) @ csum(rc)
    gbias = jnp.stack([gb_t, gb_s, gb_c])                       # (3, F, R) f32

    w2t = jnp.stack([p["w2"].T for p in blocks])                # (3, D, F)
    b2t = jnp.stack([p["b2"].T for p in blocks])                # (3, D, 1)

    wot = jnp.stack([(jnp.reshape(lp["g1"], (D, 1)) * lp["wot"]).T,
                     (jnp.reshape(lp["g2"], (D, 1)) * lp["wos"]).T,
                     (jnp.reshape(lp["g3"], (D, 1)) * lp["woc"]).T])   # (3, D, D)
    bot = (lp["bo"] + lp["b1"] @ lp["wot"] + lp["b2"] @ lp["wos"]
           + lp["b3"] @ lp["woc"]).T                             # (D, 1)

    # ---- grid: parallel batch split only where a second TensorCore exists (v7x) ----
    n_tc = _tensorcores_per_chip()
    if n_tc >= 2 and B > 1 and B % n_tc == 0:
        grid_b, bb = B, 1          # v7x: one batch element per TensorCore
    else:
        grid_b, bb = 1, B          # v5e/v6e: single grid step, batch merged into lanes

    # Lane-dense input layout: channels on sublanes, (batch, seq*node) flat on lanes.
    x2 = jnp.transpose(x.reshape(B, R, D), (2, 0, 1)).reshape(D, B * R)

    weights = (w1t, b1t, lmat, rmat, gbias, w2t, b2t, wot, bot)
    out = pl.pallas_call(
        _make_kernel(D, F, R, bb),
        out_shape=jax.ShapeDtypeStruct((D, B * R), F32),
        grid=(grid_b,),
        in_specs=[pl.BlockSpec((D, bb * R), lambda g: (0, g))]
                 + [_const_spec(w) for w in weights],
        out_specs=pl.BlockSpec((D, bb * R), lambda g: (0, g)),
        compiler_params=pltpu.CompilerParams(
            dimension_semantics=("parallel",)),
    )(x2, *weights)

    return jnp.transpose(out.reshape(D, B, R), (1, 2, 0)).reshape(B, S, N, D)


# --------------------------- pure-JAX reference -------------------------------

_HI = jax.lax.Precision.HIGHEST


def _ln_ref(x, g, b):
    mu = jnp.mean(x, -1, keepdims=True)
    var = jnp.mean((x - mu) ** 2, -1, keepdims=True)
    return (x - mu) * jax.lax.rsqrt(var + EPS) * g + b


def _proj1_ref(xn, p):
    scale = jnp.sum(xn * p["wl"][0], -1, keepdims=True) + p["bl"][0, 0]
    shift = jnp.sum(xn * p["wl"][1], -1, keepdims=True) + p["bl"][0, 1]
    h = jax.nn.relu(jnp.einsum("...d,df->...f", xn, p["w1"], precision=_HI) + p["b1"][0])
    return h * scale + shift


def ref_block_mpnn(x, p, anorm):
    xn = _ln_ref(x, p["gN"], p["bN"])
    h = _proj1_ref(xn, p)
    F = p["w2"].shape[0]
    u, v = h[..., :F], h[..., F:]
    vn = _ln_ref(v, p["gv"], p["bv"])
    vw = jnp.einsum("bsmf,fe->bsme", vn, p["wg"], precision=_HI)
    g = jnp.einsum("nm,bsme->bsne", anorm, vw, precision=_HI) + 1.0
    y = jax.nn.relu(jnp.einsum("bsnf,fd->bsnd", u * g, p["w2"], precision=_HI) + p["b2"][0])
    return y + x


def ref_block_conv(x, p):
    xn = _ln_ref(x, p["gN"], p["bN"])
    h = _proj1_ref(xn, p)
    F = p["w2"].shape[0]
    u, v = h[..., :F], h[..., F:]
    vn = _ln_ref(v, p["gv"], p["bv"])
    vn_pad = jnp.pad(vn, ((0, 0), (0, 0), (0, 0), (1, 1)))
    g = 1.0
    for j in range(3):
        g = g + jnp.einsum("os,bnsf->bnof", p["wc"][j], vn_pad[..., j:j + F],
                           precision=_HI)
    y = jax.nn.relu(jnp.einsum("bnsf,fd->bnsd", u * g, p["w2"], precision=_HI) + p["b2"][0])
    return y + x


def ref_layer(x, anorm_A, anorm_C, tgu_p, sgu_p, cgu_p, lp):
    x_t = jnp.transpose(ref_block_conv(jnp.transpose(x, (0, 2, 1, 3)), tgu_p),
                        (0, 2, 1, 3))
    x_s = ref_block_mpnn(x, sgu_p, anorm_A)
    x_c = ref_block_mpnn(x, cgu_p, anorm_C)
    t = _ln_ref(x_t, lp["g1"], lp["b1"])
    s = _ln_ref(x_s, lp["g2"], lp["b2"])
    c = _ln_ref(x_c, lp["g3"], lp["b3"])
    out = (jnp.einsum("bsnd,de->bsne", t, lp["wot"], precision=_HI)
           + jnp.einsum("bsnd,de->bsne", s, lp["wos"], precision=_HI)
           + jnp.einsum("bsnd,de->bsne", c, lp["woc"], precision=_HI)
           + lp["bo"][0] + x)
    return out


# ------------------------------ param helpers ---------------------------------

def gcn_norm(adj):
    n = adj.shape[0]
    a_hat = adj + jnp.eye(n, dtype=F32)
    deg = jnp.sum(a_hat, axis=1)
    dinv = jnp.where(deg > 0, 1.0 / jnp.sqrt(deg), 0.0)
    return (a_hat * dinv[:, None] * dinv[None, :]).astype(F32)


def make_adj(key, n):
    m = jax.random.bernoulli(key, 0.3, (n, n)).astype(F32)
    m = jnp.maximum(m, m.T)
    return m * (1.0 - jnp.eye(n, dtype=F32))


def init_block_params(key, D, F, conv_S=None):
    ks = jax.random.split(key, 11)
    nrm = lambda k, s: jax.random.normal(k, s, F32)
    p = {
        "gN": 1.0 + 0.02 * nrm(ks[0], (1, D)),
        "bN": 0.02 * nrm(ks[1], (1, D)),
        "wl": nrm(ks[2], (2, D)) / jnp.sqrt(D),
        "bl": 0.1 * nrm(ks[3], (1, 2)),
        "w1": nrm(ks[4], (D, 2 * F)) / jnp.sqrt(D),
        "b1": 0.02 * nrm(ks[5], (1, 2 * F)),
        "gv": 1.0 + 0.02 * nrm(ks[6], (1, F)),
        "bv": 0.02 * nrm(ks[7], (1, F)),
        "w2": nrm(ks[8], (F, D)) / jnp.sqrt(F),
        "b2": 0.02 * nrm(ks[9], (1, D)),
    }
    if conv_S is not None:
        p["wc"] = nrm(ks[10], (3, conv_S, conv_S)) / jnp.sqrt(3.0 * conv_S)
    else:
        p["wg"] = nrm(ks[10], (F, F)) / jnp.sqrt(F)
    return p


def init_layer_params(key, D):
    ks = jax.random.split(key, 10)
    nrm = lambda k, s: jax.random.normal(k, s, F32)
    return {
        "g1": 1.0 + 0.02 * nrm(ks[0], (1, D)), "b1": 0.02 * nrm(ks[1], (1, D)),
        "g2": 1.0 + 0.02 * nrm(ks[2], (1, D)), "b2": 0.02 * nrm(ks[3], (1, D)),
        "g3": 1.0 + 0.02 * nrm(ks[4], (1, D)), "b3": 0.02 * nrm(ks[5], (1, D)),
        "wot": nrm(ks[6], (D, D)) / jnp.sqrt(3.0 * D),
        "wos": nrm(ks[7], (D, D)) / jnp.sqrt(3.0 * D),
        "woc": nrm(ks[8], (D, D)) / jnp.sqrt(3.0 * D),
        "bo": 0.02 * nrm(ks[9], (1, D)),
    }


# ----------------------------------- main --------------------------------------

if __name__ == "__main__":
    B, S, N, D, F = 2, 8, 16, 32, 32   # batch, seq_len, num_node, d_model, d_ffn

    key = jax.random.PRNGKey(0)
    k_x, k_a, k_c, k_t, k_s, k_g, k_l = jax.random.split(key, 7)

    x = jax.random.normal(k_x, (B, S, N, D), F32)
    cirmat_A = make_adj(k_a, N)
    cirmat_C = make_adj(k_c, N)
    anorm_A = gcn_norm(cirmat_A)
    anorm_C = gcn_norm(cirmat_C)

    tgu_p = init_block_params(k_t, D, F, conv_S=S)   # conv block (over seq axis)
    sgu_p = init_block_params(k_s, D, F)             # mpnn block, cirmat_A
    cgu_p = init_block_params(k_g, D, F)             # mpnn block, cirmat_C

    lp = init_layer_params(k_l, D)

    out = cy2mixer_layer(x, anorm_A, anorm_C, tgu_p, sgu_p, cgu_p, lp)
    out = jax.block_until_ready(out)

    ref = ref_layer(x, anorm_A, anorm_C, tgu_p, sgu_p, cgu_p, lp)
    assert out.shape == (B, S, N, D), out.shape
    assert bool(jnp.all(jnp.isfinite(out)))
    max_err = float(jnp.max(jnp.abs(out - ref)))
    assert max_err < 5e-2, f"mismatch vs reference: {max_err}"

    print("KERNEL_OK")
</pallas_src>

<mosaic_0001>
module attributes {stable_mosaic.version = 11 : i64} {
  func.func @kernel(%arg0: i32, %arg1: memref<32x256xf32, #tpu.memory_space<vmem>>, %arg2: memref<198x32xf32, #tpu.memory_space<vmem>>, %arg3: memref<198x1xf32, #tpu.memory_space<vmem>>, %arg4: memref<5x32x32xf32, #tpu.memory_space<vmem>>, %arg5: memref<128x640xbf16, #tpu.memory_space<vmem>>, %arg6: memref<3x32x128xf32, #tpu.memory_space<vmem>>, %arg7: memref<3x32x32xf32, #tpu.memory_space<vmem>>, %arg8: memref<3x32x1xf32, #tpu.memory_space<vmem>>, %arg9: memref<3x32x32xf32, #tpu.memory_space<vmem>>, %arg10: memref<32x1xf32, #tpu.memory_space<vmem>>, %arg11: memref<32x256xf32, #tpu.memory_space<vmem>>) attributes {dimension_semantics = [#tpu.dimension_semantics<parallel>], iteration_bounds = array<i64: 1>, scalar_prefetch = 0 : i64, scratch_operands = 0 : i64, tpu.core_type = #tpu.core_type<tc>, window_params = [{transform_indices = @transform_0, window_bounds = array<i64: 32, 256>}, {pipeline_mode = #tpu.pipeline_mode<synchronous>, transform_indices = @transform_1, window_bounds = array<i64: 198, 32>}, {pipeline_mode = #tpu.pipeline_mode<synchronous>, transform_indices = @transform_2, window_bounds = array<i64: 198, 1>}, {pipeline_mode = #tpu.pipeline_mode<synchronous>, transform_indices = @transform_3, window_bounds = array<i64: 5, 32, 32>}, {pipeline_mode = #tpu.pipeline_mode<synchronous>, transform_indices = @transform_4, window_bounds = array<i64: 128, 640>}, {pipeline_mode = #tpu.pipeline_mode<synchronous>, transform_indices = @transform_5, window_bounds = array<i64: 3, 32, 128>}, {pipeline_mode = #tpu.pipeline_mode<synchronous>, transform_indices = @transform_6, window_bounds = array<i64: 3, 32, 32>}, {pipeline_mode = #tpu.pipeline_mode<synchronous>, transform_indices = @transform_7, window_bounds = array<i64: 3, 32, 1>}, {pipeline_mode = #tpu.pipeline_mode<synchronous>, transform_indices = @transform_8, window_bounds = array<i64: 3, 32, 32>}, {pipeline_mode = #tpu.pipeline_mode<synchronous>, transform_indices = @transform_9, window_bounds = array<i64: 32, 1>}, {transform_indices = @transform_10, window_bounds = array<i64: 32, 256>}]} {
    %c0 = arith.constant 0 : index
    %c0_0 = arith.constant 0 : index
    %0 = vector.load %arg1[%c0, %c0_0] : memref<32x256xf32, #tpu.memory_space<vmem>>, vector<32x256xf32>
    %cst = arith.constant dense<0.000000e+00> : vector<256xf32>
    %1 = vector.multi_reduction <add>, %0, %cst [0] : vector<32x256xf32> to vector<256xf32>
    %2 = vector.shape_cast %1 : vector<256xf32> to vector<1x256xf32>
    %cst_1 = arith.constant 3.200000e+01 : f32
    %3 = vector.broadcast %cst_1 : f32 to vector<1x256xf32>
    %4 = arith.divf %2, %3 : vector<1x256xf32>
    %5 = vector.broadcast %4 : vector<1x256xf32> to vector<32x256xf32>
    %6 = arith.subf %0, %5 : vector<32x256xf32>
    %7 = arith.mulf %6, %6 : vector<32x256xf32>
    %cst_2 = arith.constant dense<0.000000e+00> : vector<256xf32>
    %8 = vector.multi_reduction <add>, %7, %cst_2 [0] : vector<32x256xf32> to vector<256xf32>
    %9 = vector.shape_cast %8 : vector<256xf32> to vector<1x256xf32>
    %cst_3 = arith.constant 3.200000e+01 : f32
    %10 = vector.broadcast %cst_3 : f32 to vector<1x256xf32>
    %11 = arith.divf %9, %10 : vector<1x256xf32>
    %12 = vector.broadcast %4 : vector<1x256xf32> to vector<32x256xf32>
    %13 = arith.subf %0, %12 : vector<32x256xf32>
    %cst_4 = arith.constant 9.99999974E-6 : f32
    %14 = vector.broadcast %cst_4 : f32 to vector<1x256xf32>
    %15 = arith.addf %11, %14 : vector<1x256xf32>
    %16 = math.rsqrt %15 : vector<1x256xf32>
    %17 = vector.broadcast %16 : vector<1x256xf32> to vector<32x256xf32>
    %18 = arith.mulf %13, %17 : vector<32x256xf32>
    %c0_5 = arith.constant 0 : index
    %c0_6 = arith.constant 0 : index
    %19 = vector.load %arg2[%c0_5, %c0_6] : memref<198x32xf32, #tpu.memory_space<vmem>>, vector<198x32xf32>
    %cst_7 = arith.constant dense<0.000000e+00> : vector<198x256xf32>
    %20 = tpu.matmul %19, %18, %cst_7 {dimension_numbers = #tpu.dot_dimension_numbers<[1], [0], [0], [1], [0, 0, 1, 1], [], []>} : vector<198x32xf32>, vector<32x256xf32>, vector<198x256xf32> -> vector<198x256xf32>
    %c0_8 = arith.constant 0 : index
    %c0_9 = arith.constant 0 : index
    %21 = vector.load %arg3[%c0_8, %c0_9] : memref<198x1xf32, #tpu.memory_space<vmem>>, vector<198x1xf32>
    %22 = vector.broadcast %21 : vector<198x1xf32> to vector<198x256xf32>
    %23 = arith.addf %20, %22 : vector<198x256xf32>
    %24 = vector.extract_strided_slice %23 {offsets = [0, 0], sizes = [64, 256], strides = [1, 1]} : vector<198x256xf32> to vector<64x256xf32>
    %cst_10 = arith.constant 0.000000e+00 : f32
    %25 = vector.broadcast %cst_10 : f32 to vector<64x256xf32>
    %26 = arith.maximumf %24, %25 : vector<64x256xf32>
    %27 = vector.extract_strided_slice %23 {offsets = [192, 0], sizes = [1, 256], strides = [1, 1]} : vector<198x256xf32> to vector<1x256xf32>
    %28 = vector.extract_strided_slice %23 {offsets = [193, 0], sizes = [1, 256], strides = [1, 1]} : vector<198x256xf32> to vector<1x256xf32>
    %29 = vector.broadcast %27 : vector<1x256xf32> to vector<64x256xf32>
    %30 = arith.mulf %26, %29 : vector<64x256xf32>
    %31 = vector.broadcast %28 : vector<1x256xf32> to vector<64x256xf32>
    %32 = arith.addf %30, %31 : vector<64x256xf32>
    %33 = vector.extract_strided_slice %32 {offsets = [0, 0], sizes = [32, 256], strides = [1, 1]} : vector<64x256xf32> to vector<32x256xf32>
    %34 = vector.extract_strided_slice %32 {offsets = [32, 0], sizes = [32, 256], strides = [1, 1]} : vector<64x256xf32> to vector<32x256xf32>
    %cst_11 = arith.constant dense<0.000000e+00> : vector<256xf32>
    %35 = vector.multi_reduction <add>, %34, %cst_11 [0] : vector<32x256xf32> to vector<256xf32>
    %36 = vector.shape_cast %35 : vector<256xf32> to vector<1x256xf32>
    %cst_12 = arith.constant 3.200000e+01 : f32
    %37 = vector.broadcast %cst_12 : f32 to vector<1x256xf32>
    %38 = arith.divf %36, %37 : vector<1x256xf32>
    %39 = vector.broadcast %38 : vector<1x256xf32> to vector<32x256xf32>
    %40 = arith.subf %34, %39 : vector<32x256xf32>
    %41 = arith.mulf %40, %40 : vector<32x256xf32>
    %cst_13 = arith.constant dense<0.000000e+00> : vector<256xf32>
    %42 = vector.multi_reduction <add>, %41, %cst_13 [0] : vector<32x256xf32> to vector<256xf32>
    %43 = vector.shape_cast %42 : vector<256xf32> to vector<1x256xf32>
    %cst_14 = arith.constant 3.200000e+01 : f32
    %44 = vector.broadcast %cst_14 : f32 to vector<1x256xf32>
    %45 = arith.divf %43, %44 : vector<1x256xf32>
    %46 = vector.broadcast %38 : vector<1x256xf32> to vector<32x256xf32>
    %47 = arith.subf %34, %46 : vector<32x256xf32>
    %cst_15 = arith.constant 9.99999974E-6 : f32
    %48 = vector.broadcast %cst_15 : f32 to vector<1x256xf32>
    %49 = arith.addf %45, %48 : vector<1x256xf32>
    %50 = math.rsqrt %49 : vector<1x256xf32>
    %51 = vector.broadcast %50 : vector<1x256xf32> to vector<32x256xf32>
    %52 = arith.mulf %47, %51 : vector<32x256xf32>
    %53 = arith.truncf %52 : vector<32x256xf32> to vector<32x256xbf16>
    %c0_16 = arith.constant 0 : index
    %c0_17 = arith.constant 0 : index
    %c0_18 = arith.constant 0 : index
    %54 = vector.load %arg6[%c0_16, %c0_17, %c0_18] : memref<3x32x128xf32, #tpu.memory_space<vmem>>, vector<1x32x128xf32>
    %55 = vector.shape_cast %54 : vector<1x32x128xf32> to vector<32x128xf32>
    %56 = vector.extract_strided_slice %53 {offsets = [0, 0], sizes = [32, 128], strides = [1, 1]} : vector<32x256xbf16> to vector<32x128xbf16>
    %c0_19 = arith.constant 0 : index
    %c0_20 = arith.constant 0 : index
    %57 = vector.load %arg5[%c0_19, %c0_20] : memref<128x640xbf16, #tpu.memory_space<vmem>>, vector<128x384xbf16>
    %cst_21 = arith.constant dense<0.000000e+00> : vector<32x384xf32>
    %58 = tpu.matmul %56, %57, %cst_21 {dimension_numbers = #tpu.dot_dimension_numbers<[1], [0], [0], [1], [0, 0, 1, 1], [], []>} : vector<32x128xbf16>, vector<128x384xbf16>, vector<32x384xf32> -> vector<32x384xf32>
    %c0_22 = arith.constant 0 : index
    %c0_23 = arith.constant 0 : index
    %c0_24 = arith.constant 0 : index
    %59 = vector.load %arg4[%c0_22, %c0_23, %c0_24] : memref<5x32x32xf32, #tpu.memory_space<vmem>>, vector<1x32x32xf32>
    %60 = vector.shape_cast %59 : vector<1x32x32xf32> to vector<32x32xf32>
    %61 = vector.extract_strided_slice %58 {offsets = [0, 0], sizes = [32, 128], strides = [1, 1]} : vector<32x384xf32> to vector<32x128xf32>
    %cst_25 = arith.constant dense<0.000000e+00> : vector<32x128xf32>
    %62 = tpu.matmul %60, %61, %cst_25 {dimension_numbers = #tpu.dot_dimension_numbers<[1], [0], [0], [1], [0, 0, 1, 1], [], []>} : vector<32x32xf32>, vector<32x128xf32>, vector<32x128xf32> -> vector<32x128xf32>
    %c1 = arith.constant 1 : index
    %c0_26 = arith.constant 0 : index
    %c0_27 = arith.constant 0 : index
    %63 = vector.load %arg4[%c1, %c0_26, %c0_27] : memref<5x32x32xf32, #tpu.memory_space<vmem>>, vector<1x32x32xf32>
    %64 = vector.shape_cast %63 : vector<1x32x32xf32> to vector<32x32xf32>
    %65 = vector.extract_strided_slice %58 {offsets = [0, 128], sizes = [32, 128], strides = [1, 1]} : vector<32x384xf32> to vector<32x128xf32>
    %cst_28 = arith.constant dense<0.000000e+00> : vector<32x128xf32>
    %66 = tpu.matmul %64, %65, %cst_28 {dimension_numbers = #tpu.dot_dimension_numbers<[1], [0], [0], [1], [0, 0, 1, 1], [], []>} : vector<32x32xf32>, vector<32x128xf32>, vector<32x128xf32> -> vector<32x128xf32>
    %67 = arith.addf %62, %66 : vector<32x128xf32>
    %c2 = arith.constant 2 : index
    %c0_29 = arith.constant 0 : index
    %c0_30 = arith.constant 0 : index
    %68 = vector.load %arg4[%c2, %c0_29, %c0_30] : memref<5x32x32xf32, #tpu.memory_space<vmem>>, vector<1x32x32xf32>
    %69 = vector.shape_cast %68 : vector<1x32x32xf32> to vector<32x32xf32>
    %70 = vector.extract_strided_slice %58 {offsets = [0, 256], sizes = [32, 128], strides = [1, 1]} : vector<32x384xf32> to vector<32x128xf32>
    %cst_31 = arith.constant dense<0.000000e+00> : vector<32x128xf32>
    %71 = tpu.matmul %69, %70, %cst_31 {dimension_numbers = #tpu.dot_dimension_numbers<[1], [0], [0], [1], [0, 0, 1, 1], [], []>} : vector<32x32xf32>, vector<32x128xf32>, vector<32x128xf32> -> vector<32x128xf32>
    %72 = arith.addf %67, %71 : vector<32x128xf32>
    %73 = arith.addf %72, %55 : vector<32x128xf32>
    %74 = vector.extract_strided_slice %53 {offsets = [0, 128], sizes = [32, 128], strides = [1, 1]} : vector<32x256xbf16> to vector<32x128xbf16>
    %c0_32 = arith.constant 0 : index
    %c0_33 = arith.constant 0 : index
    %75 = vector.load %arg5[%c0_32, %c0_33] : memref<128x640xbf16, #tpu.memory_space<vmem>>, vector<128x384xbf16>
    %cst_34 = arith.constant dense<0.000000e+00> : vector<32x384xf32>
    %76 = tpu.matmul %74, %75, %cst_34 {dimension_numbers = #tpu.dot_dimension_numbers<[1], [0], [0], [1], [0, 0, 1, 1], [], []>} : vector<32x128xbf16>, vector<128x384xbf16>, vector<32x384xf32> -> vector<32x384xf32>
    %c0_35 = arith.constant 0 : index
    %c0_36 = arith.constant 0 : index
    %c0_37 = arith.constant 0 : index
    %77 = vector.load %arg4[%c0_35, %c0_36, %c0_37] : memref<5x32x32xf32, #tpu.memory_space<vmem>>, vector<1x32x32xf32>
    %78 = vector.shape_cast %77 : vector<1x32x32xf32> to vector<32x32xf32>
    %79 = vector.extract_strided_slice %76 {offsets = [0, 0], sizes = [32, 128], strides = [1, 1]} : vector<32x384xf32> to vector<32x128xf32>
    %cst_38 = arith.constant dense<0.000000e+00> : vector<32x128xf32>
    %80 = tpu.matmul %78, %79, %cst_38 {dimension_numbers = #tpu.dot_dimension_numbers<[1], [0], [0], [1], [0, 0, 1, 1], [], []>} : vector<32x32xf32>, vector<32x128xf32>, vector<32x128xf32> -> vector<32x128xf32>
    %c1_39 = arith.constant 1 : index
    %c0_40 = arith.constant 0 : index
    %c0_41 = arith.constant 0 : index
    %81 = vector.load %arg4[%c1_39, %c0_40, %c0_41] : memref<5x32x32xf32, #tpu.memory_space<vmem>>, vector<1x32x32xf32>
    %82 = vector.shape_cast %81 : vector<1x32x32xf32> to vector<32x32xf32>
    %83 = vector.extract_strided_slice %76 {offsets = [0, 128], sizes = [32, 128], strides = [1, 1]} : vector<32x384xf32> to vector<32x128xf32>
    %cst_42 = arith.constant dense<0.000000e+00> : vector<32x128xf32>
    %84 = tpu.matmul %82, %83, %cst_42 {dimension_numbers = #tpu.dot_dimension_numbers<[1], [0], [0], [1], [0, 0, 1, 1], [], []>} : vector<32x32xf32>, vector<32x128xf32>, vector<32x128xf32> -> vector<32x128xf32>
    %85 = arith.addf %80, %84 : vector<32x128xf32>
    %c2_43 = arith.constant 2 : index
    %c0_44 = arith.constant 0 : index
    %c0_45 = arith.constant 0 : index
    %86 = vector.load %arg4[%c2_43, %c0_44, %c0_45] : memref<5x32x32xf32, #tpu.memory_space<vmem>>, vector<1x32x32xf32>
    %87 = vector.shape_cast %86 : vector<1x32x32xf32> to vector<32x32xf32>
    %88 = vector.extract_strided_slice %76 {offsets = [0, 256], sizes = [32, 128], strides = [1, 1]} : vector<32x384xf32> to vector<32x128xf32>
    %cst_46 = arith.constant dense<0.000000e+00> : vector<32x128xf32>
    %89 = tpu.matmul %87, %88, %cst_46 {dimension_numbers = #tpu.dot_dimension_numbers<[1], [0], [0], [1], [0, 0, 1, 1], [], []>} : vector<32x32xf32>, vector<32x128xf32>, vector<32x128xf32> -> vector<32x128xf32>
    %90 = arith.addf %85, %89 : vector<32x128xf32>
    %91 = arith.addf %90, %55 : vector<32x128xf32>
    %92 = tpu.concatenate %73, %91 in 1 : vector<32x128xf32>, vector<32x128xf32> -> vector<32x256xf32>
    %c0_47 = arith.constant 0 : index
    %c0_48 = arith.constant 0 : index
    %c0_49 = arith.constant 0 : index
    %93 = vector.load %arg7[%c0_47, %c0_48, %c0_49] : memref<3x32x32xf32, #tpu.memory_space<vmem>>, vector<1x32x32xf32>
    %94 = vector.shape_cast %93 : vector<1x32x32xf32> to vector<32x32xf32>
    %95 = arith.mulf %33, %92 : vector<32x256xf32>
    %cst_50 = arith.constant dense<0.000000e+00> : vector<32x256xf32>
    %96 = tpu.matmul %94, %95, %cst_50 {dimension_numbers = #tpu.dot_dimension_numbers<[1], [0], [0], [1], [0, 0, 1, 1], [], []>} : vector<32x32xf32>, vector<32x256xf32>, vector<32x256xf32> -> vector<32x256xf32>
    %c0_51 = arith.constant 0 : index
    %c0_52 = arith.constant 0 : index
    %c0_53 = arith.constant 0 : index
    %97 = vector.load %arg8[%c0_51, %c0_52, %c0_53] : memref<3x32x1xf32, #tpu.memory_space<vmem>>, vector<1x32x1xf32>
    %98 = vector.shape_cast %97 : vector<1x32x1xf32> to vector<32x1xf32>
    %99 = vector.broadcast %98 : vector<32x1xf32> to vector<32x256xf32>
    %100 = arith.addf %96, %99 : vector<32x256xf32>
    %cst_54 = arith.constant 0.000000e+00 : f32
    %101 = vector.broadcast %cst_54 : f32 to vector<32x256xf32>
    %102 = arith.maximumf %100, %101 : vector<32x256xf32>
    %103 = arith.addf %102, %0 : vector<32x256xf32>
    %104 = vector.extract_strided_slice %23 {offsets = [64, 0], sizes = [64, 256], strides = [1, 1]} : vector<198x256xf32> to vector<64x256xf32>
    %cst_55 = arith.constant 0.000000e+00 : f32
    %105 = vector.broadcast %cst_55 : f32 to vector<64x256xf32>
    %106 = arith.maximumf %104, %105 : vector<64x256xf32>
    %107 = vector.extract_strided_slice %23 {offsets = [194, 0], sizes = [1, 256], strides = [1, 1]} : vector<198x256xf32> to vector<1x256xf32>
    %108 = vector.extract_strided_slice %23 {offsets = [195, 0], sizes = [1, 256], strides = [1, 1]} : vector<198x256xf32> to vector<1x256xf32>
    %109 = vector.broadcast %107 : vector<1x256xf32> to vector<64x256xf32>
    %110 = arith.mulf %106, %109 : vector<64x256xf32>
    %111 = vector.broadcast %108 : vector<1x256xf32> to vector<64x256xf32>
    %112 = arith.addf %110, %111 : vector<64x256xf32>
    %113 = vector.extract_strided_slice %112 {offsets = [0, 0], sizes = [32, 256], strides = [1, 1]} : vector<64x256xf32> to vector<32x256xf32>
    %114 = vector.extract_strided_slice %112 {offsets = [32, 0], sizes = [32, 256], strides = [1, 1]} : vector<64x256xf32> to vector<32x256xf32>
    %cst_56 = arith.constant dense<0.000000e+00> : vector<256xf32>
    %115 = vector.multi_reduction <add>, %114, %cst_56 [0] : vector<32x256xf32> to vector<256xf32>
    %116 = vector.shape_cast %115 : vector<256xf32> to vector<1x256xf32>
    %cst_57 = arith.constant 3.200000e+01 : f32
    %117 = vector.broadcast %cst_57 : f32 to vector<1x256xf32>
    %118 = arith.divf %116, %117 : vector<1x256xf32>
    %119 = vector.broadcast %118 : vector<1x256xf32> to vector<32x256xf32>
    %120 = arith.subf %114, %119 : vector<32x256xf32>
    %121 = arith.mulf %120, %120 : vector<32x256xf32>
    %cst_58 = arith.constant dense<0.000000e+00> : vector<256xf32>
    %122 = vector.multi_reduction <add>, %121, %cst_58 [0] : vector<32x256xf32> to vector<256xf32>
    %123 = vector.shape_cast %122 : vector<256xf32> to vector<1x256xf32>
    %cst_59 = arith.constant 3.200000e+01 : f32
    %124 = vector.broadcast %cst_59 : f32 to vector<1x256xf32>
    %125 = arith.divf %123, %124 : vector<1x256xf32>
    %126 = vector.broadcast %118 : vector<1x256xf32> to vector<32x256xf32>
    %127 = arith.subf %114, %126 : vector<32x256xf32>
    %cst_60 = arith.constant 9.99999974E-6 : f32
    %128 = vector.broadcast %cst_60 : f32 to vector<1x256xf32>
    %129 = arith.addf %125, %128 : vector<1x256xf32>
    %130 = math.rsqrt %129 : vector<1x256xf32>
    %131 = vector.broadcast %130 : vector<1x256xf32> to vector<32x256xf32>
    %132 = arith.mulf %127, %131 : vector<32x256xf32>
    %133 = arith.truncf %132 : vector<32x256xf32> to vector<32x256xbf16>
    %c1_61 = arith.constant 1 : index
    %c0_62 = arith.constant 0 : index
    %c0_63 = arith.constant 0 : index
    %134 = vector.load %arg6[%c1_61, %c0_62, %c0_63] : memref<3x32x128xf32, #tpu.memory_space<vmem>>, vector<1x32x128xf32>
    %135 = vector.shape_cast %134 : vector<1x32x128xf32> to vector<32x128xf32>
    %136 = vector.extract_strided_slice %133 {offsets = [0, 0], sizes = [32, 128], strides = [1, 1]} : vector<32x256xbf16> to vector<32x128xbf16>
    %c0_64 = arith.constant 0 : index
    %c384 = arith.constant 384 : index
    %137 = vector.load %arg5[%c0_64, %c384] : memref<128x640xbf16, #tpu.memory_space<vmem>>, vector<128x128xbf16>
    %cst_65 = arith.constant dense<0.000000e+00> : vector<32x128xf32>
    %138 = tpu.matmul %136, %137, %cst_65 {dimension_numbers = #tpu.dot_dimension_numbers<[1], [0], [0], [1], [0, 0, 1, 1], [], []>} : vector<32x128xbf16>, vector<128x128xbf16>, vector<32x128xf32> -> vector<32x128xf32>
    %c3 = arith.constant 3 : index
    %c0_66 = arith.constant 0 : index
    %c0_67 = arith.constant 0 : index
    %139 = vector.load %arg4[%c3, %c0_66, %c0_67] : memref<5x32x32xf32, #tpu.memory_space<vmem>>, vector<1x32x32xf32>
    %140 = vector.shape_cast %139 : vector<1x32x32xf32> to vector<32x32xf32>
    %cst_68 = arith.constant dense<0.000000e+00> : vector<32x128xf32>
    %141 = tpu.matmul %140, %138, %cst_68 {dimension_numbers = #tpu.dot_dimension_numbers<[1], [0], [0], [1], [0, 0, 1, 1], [], []>} : vector<32x32xf32>, vector<32x128xf32>, vector<32x128xf32> -> vector<32x128xf32>
    %142 = arith.addf %141, %135 : vector<32x128xf32>
    %143 = vector.extract_strided_slice %133 {offsets = [0, 128], sizes = [32, 128], strides = [1, 1]} : vector<32x256xbf16> to vector<32x128xbf16>
    %c0_69 = arith.constant 0 : index
    %c384_70 = arith.constant 384 : index
    %144 = vector.load %arg5[%c0_69, %c384_70] : memref<128x640xbf16, #tpu.memory_space<vmem>>, vector<128x128xbf16>
    %cst_71 = arith.constant dense<0.000000e+00> : vector<32x128xf32>
    %145 = tpu.matmul %143, %144, %cst_71 {dimension_numbers = #tpu.dot_dimension_numbers<[1], [0], [0], [1], [0, 0, 1, 1], [], []>} : vector<32x128xbf16>, vector<128x128xbf16>, vector<32x128xf32> -> vector<32x128xf32>
    %c3_72 = arith.constant 3 : index
    %c0_73 = arith.constant 0 : index
    %c0_74 = arith.constant 0 : index
    %146 = vector.load %arg4[%c3_72, %c0_73, %c0_74] : memref<5x32x32xf32, #tpu.memory_space<vmem>>, vector<1x32x32xf32>
    %147 = vector.shape_cast %146 : vector<1x32x32xf32> to vector<32x32xf32>
    %cst_75 = arith.constant dense<0.000000e+00> : vector<32x128xf32>
    %148 = tpu.matmul %147, %145, %cst_75 {dimension_numbers = #tpu.dot_dimension_numbers<[1], [0], [0], [1], [0, 0, 1, 1], [], []>} : vector<32x32xf32>, vector<32x128xf32>, vector<32x128xf32> -> vector<32x128xf32>
    %149 = arith.addf %148, %135 : vector<32x128xf32>
    %150 = tpu.concatenate %142, %149 in 1 : vector<32x128xf32>, vector<32x128xf32> -> vector<32x256xf32>
    %c1_76 = arith.constant 1 : index
    %c0_77 = arith.constant 0 : index
    %c0_78 = arith.constant 0 : index
    %151 = vector.load %arg7[%c1_76, %c0_77, %c0_78] : memref<3x32x32xf32, #tpu.memory_space<vmem>>, vector<1x32x32xf32>
    %152 = vector.shape_cast %151 : vector<1x32x32xf32> to vector<32x32xf32>
    %153 = arith.mulf %113, %150 : vector<32x256xf32>
    %cst_79 = arith.constant dense<0.000000e+00> : vector<32x256xf32>
    %154 = tpu.matmul %152, %153, %cst_79 {dimension_numbers = #tpu.dot_dimension_numbers<[1], [0], [0], [1], [0, 0, 1, 1], [], []>} : vector<32x32xf32>, vector<32x256xf32>, vector<32x256xf32> -> vector<32x256xf32>
    %c1_80 = arith.constant 1 : index
    %c0_81 = arith.constant 0 : index
    %c0_82 = arith.constant 0 : index
    %155 = vector.load %arg8[%c1_80, %c0_81, %c0_82] : memref<3x32x1xf32, #tpu.memory_space<vmem>>, vector<1x32x1xf32>
    %156 = vector.shape_cast %155 : vector<1x32x1xf32> to vector<32x1xf32>
    %157 = vector.broadcast %156 : vector<32x1xf32> to vector<32x256xf32>
    %158 = arith.addf %154, %157 : vector<32x256xf32>
    %cst_83 = arith.constant 0.000000e+00 : f32
    %159 = vector.broadcast %cst_83 : f32 to vector<32x256xf32>
    %160 = arith.maximumf %158, %159 : vector<32x256xf32>
    %161 = arith.addf %160, %0 : vector<32x256xf32>
    %162 = vector.extract_strided_slice %23 {offsets = [128, 0], sizes = [64, 256], strides = [1, 1]} : vector<198x256xf32> to vector<64x256xf32>
    %cst_84 = arith.constant 0.000000e+00 : f32
    %163 = vector.broadcast %cst_84 : f32 to vector<64x256xf32>
    %164 = arith.maximumf %162, %163 : vector<64x256xf32>
    %165 = vector.extract_strided_slice %23 {offsets = [196, 0], sizes = [1, 256], strides = [1, 1]} : vector<198x256xf32> to vector<1x256xf32>
    %166 = vector.extract_strided_slice %23 {offsets = [197, 0], sizes = [1, 256], strides = [1, 1]} : vector<198x256xf32> to vector<1x256xf32>
    %167 = vector.broadcast %165 : vector<1x256xf32> to vector<64x256xf32>
    %168 = arith.mulf %164, %167 : vector<64x256xf32>
    %169 = vector.broadcast %166 : vector<1x256xf32> to vector<64x256xf32>
    %170 = arith.addf %168, %169 : vector<64x256xf32>
    %171 = vector.extract_strided_slice %170 {offsets = [0, 0], sizes = [32, 256], strides = [1, 1]} : vector<64x256xf32> to vector<32x256xf32>
    %172 = vector.extract_strided_slice %170 {offsets = [32, 0], sizes = [32, 256], strides = [1, 1]} : vector<64x256xf32> to vector<32x256xf32>
    %cst_85 = arith.constant dense<0.000000e+00> : vector<256xf32>
    %173 = vector.multi_reduction <add>, %172, %cst_85 [0] : vector<32x256xf32> to vector<256xf32>
    %174 = vector.shape_cast %173 : vector<256xf32> to vector<1x256xf32>
    %cst_86 = arith.constant 3.200000e+01 : f32
    %175 = vector.broadcast %cst_86 : f32 to vector<1x256xf32>
    %176 = arith.divf %174, %175 : vector<1x256xf32>
    %177 = vector.broadcast %176 : vector<1x256xf32> to vector<32x256xf32>
    %178 = arith.subf %172, %177 : vector<32x256xf32>
    %179 = arith.mulf %178, %178 : vector<32x256xf32>
    %cst_87 = arith.constant dense<0.000000e+00> : vector<256xf32>
    %180 = vector.multi_reduction <add>, %179, %cst_87 [0] : vector<32x256xf32> to vector<256xf32>
    %181 = vector.shape_cast %180 : vector<256xf32> to vector<1x256xf32>
    %cst_88 = arith.constant 3.200000e+01 : f32
    %182 = vector.broadcast %cst_88 : f32 to vector<1x256xf32>
    %183 = arith.divf %181, %182 : vector<1x256xf32>
    %184 = vector.broadcast %176 : vector<1x256xf32> to vector<32x256xf32>
    %185 = arith.subf %172, %184 : vector<32x256xf32>
    %cst_89 = arith.constant 9.99999974E-6 : f32
    %186 = vector.broadcast %cst_89 : f32 to vector<1x256xf32>
    %187 = arith.addf %183, %186 : vector<1x256xf32>
    %188 = math.rsqrt %187 : vector<1x256xf32>
    %189 = vector.broadcast %188 : vector<1x256xf32> to vector<32x256xf32>
    %190 = arith.mulf %185, %189 : vector<32x256xf32>
    %191 = arith.truncf %190 : vector<32x256xf32> to vector<32x256xbf16>
    %c2_90 = arith.constant 2 : index
    %c0_91 = arith.constant 0 : index
    %c0_92 = arith.constant 0 : index
    %192 = vector.load %arg6[%c2_90, %c0_91, %c0_92] : memref<3x32x128xf32, #tpu.memory_space<vmem>>, vector<1x32x128xf32>
    %193 = vector.shape_cast %192 : vector<1x32x128xf32> to vector<32x128xf32>
    %194 = vector.extract_strided_slice %191 {offsets = [0, 0], sizes = [32, 128], strides = [1, 1]} : vector<32x256xbf16> to vector<32x128xbf16>
    %c0_93 = arith.constant 0 : index
    %c512 = arith.constant 512 : index
    %195 = vector.load %arg5[%c0_93, %c512] : memref<128x640xbf16, #tpu.memory_space<vmem>>, vector<128x128xbf16>
    %cst_94 = arith.constant dense<0.000000e+00> : vector<32x128xf32>
    %196 = tpu.matmul %194, %195, %cst_94 {dimension_numbers = #tpu.dot_dimension_numbers<[1], [0], [0], [1], [0, 0, 1, 1], [], []>} : vector<32x128xbf16>, vector<128x128xbf16>, vector<32x128xf32> -> vector<32x128xf32>
    %c4 = arith.constant 4 : index
    %c0_95 = arith.constant 0 : index
    %c0_96 = arith.constant 0 : index
    %197 = vector.load %arg4[%c4, %c0_95, %c0_96] : memref<5x32x32xf32, #tpu.memory_space<vmem>>, vector<1x32x32xf32>
    %198 = vector.shape_cast %197 : vector<1x32x32xf32> to vector<32x32xf32>
    %cst_97 = arith.constant dense<0.000000e+00> : vector<32x128xf32>
    %199 = tpu.matmul %198, %196, %cst_97 {dimension_numbers = #tpu.dot_dimension_numbers<[1], [0], [0], [1], [0, 0, 1, 1], [], []>} : vector<32x32xf32>, vector<32x128xf32>, vector<32x128xf32> -> vector<32x128xf32>
    %200 = arith.addf %199, %193 : vector<32x128xf32>
    %201 = vector.extract_strided_slice %191 {offsets = [0, 128], sizes = [32, 128], strides = [1, 1]} : vector<32x256xbf16> to vector<32x128xbf16>
    %c0_98 = arith.constant 0 : index
    %c512_99 = arith.constant 512 : index
    %202 = vector.load %arg5[%c0_98, %c512_99] : memref<128x640xbf16, #tpu.memory_space<vmem>>, vector<128x128xbf16>
    %cst_100 = arith.constant dense<0.000000e+00> : vector<32x128xf32>
    %203 = tpu.matmul %201, %202, %cst_100 {dimension_numbers = #tpu.dot_dimension_numbers<[1], [0], [0], [1], [0, 0, 1, 1], [], []>} : vector<32x128xbf16>, vector<128x128xbf16>, vector<32x128xf32> -> vector<32x128xf32>
    %c4_101 = arith.constant 4 : index
    %c0_102 = arith.constant 0 : index
    %c0_103 = arith.constant 0 : index
    %204 = vector.load %arg4[%c4_101, %c0_102, %c0_103] : memref<5x32x32xf32, #tpu.memory_space<vmem>>, vector<1x32x32xf32>
    %205 = vector.shape_cast %204 : vector<1x32x32xf32> to vector<32x32xf32>
    %cst_104 = arith.constant dense<0.000000e+00> : vector<32x128xf32>
    %206 = tpu.matmul %205, %203, %cst_104 {dimension_numbers = #tpu.dot_dimension_numbers<[1], [0], [0], [1], [0, 0, 1, 1], [], []>} : vector<32x32xf32>, vector<32x128xf32>, vector<32x128xf32> -> vector<32x128xf32>
    %207 = arith.addf %206, %193 : vector<32x128xf32>
    %208 = tpu.concatenate %200, %207 in 1 : vector<32x128xf32>, vector<32x128xf32> -> vector<32x256xf32>
    %c2_105 = arith.constant 2 : index
    %c0_106 = arith.constant 0 : index
    %c0_107 = arith.constant 0 : index
    %209 = vector.load %arg7[%c2_105, %c0_106, %c0_107] : memref<3x32x32xf32, #tpu.memory_space<vmem>>, vector<1x32x32xf32>
    %210 = vector.shape_cast %209 : vector<1x32x32xf32> to vector<32x32xf32>
    %211 = arith.mulf %171, %208 : vector<32x256xf32>
    %cst_108 = arith.constant dense<0.000000e+00> : vector<32x256xf32>
    %212 = tpu.matmul %210, %211, %cst_108 {dimension_numbers = #tpu.dot_dimension_numbers<[1], [0], [0], [1], [0, 0, 1, 1], [], []>} : vector<32x32xf32>, vector<32x256xf32>, vector<32x256xf32> -> vector<32x256xf32>
    %c2_109 = arith.constant 2 : index
    %c0_110 = arith.constant 0 : index
    %c0_111 = arith.constant 0 : index
    %213 = vector.load %arg8[%c2_109, %c0_110, %c0_111] : memref<3x32x1xf32, #tpu.memory_space<vmem>>, vector<1x32x1xf32>
    %214 = vector.shape_cast %213 : vector<1x32x1xf32> to vector<32x1xf32>
    %215 = vector.broadcast %214 : vector<32x1xf32> to vector<32x256xf32>
    %216 = arith.addf %212, %215 : vector<32x256xf32>
    %cst_112 = arith.constant 0.000000e+00 : f32
    %217 = vector.broadcast %cst_112 : f32 to vector<32x256xf32>
    %218 = arith.maximumf %216, %217 : vector<32x256xf32>
    %219 = arith.addf %218, %0 : vector<32x256xf32>
    %c0_113 = arith.constant 0 : index
    %c0_114 = arith.constant 0 : index
    %c0_115 = arith.constant 0 : index
    %220 = vector.load %arg9[%c0_113, %c0_114, %c0_115] : memref<3x32x32xf32, #tpu.memory_space<vmem>>, vector<1x32x32xf32>
    %221 = vector.shape_cast %220 : vector<1x32x32xf32> to vector<32x32xf32>
    %cst_116 = arith.constant dense<0.000000e+00> : vector<256xf32>
    %222 = vector.multi_reduction <add>, %103, %cst_116 [0] : vector<32x256xf32> to vector<256xf32>
    %223 = vector.shape_cast %222 : vector<256xf32> to vector<1x256xf32>
    %cst_117 = arith.constant 3.200000e+01 : f32
    %224 = vector.broadcast %cst_117 : f32 to vector<1x256xf32>
    %225 = arith.divf %223, %224 : vector<1x256xf32>
    %226 = vector.broadcast %225 : vector<1x256xf32> to vector<32x256xf32>
    %227 = arith.subf %103, %226 : vector<32x256xf32>
    %228 = arith.mulf %227, %227 : vector<32x256xf32>
    %cst_118 = arith.constant dense<0.000000e+00> : vector<256xf32>
    %229 = vector.multi_reduction <add>, %228, %cst_118 [0] : vector<32x256xf32> to vector<256xf32>
    %230 = vector.shape_cast %229 : vector<256xf32> to vector<1x256xf32>
    %cst_119 = arith.constant 3.200000e+01 : f32
    %231 = vector.broadcast %cst_119 : f32 to vector<1x256xf32>
    %232 = arith.divf %230, %231 : vector<1x256xf32>
    %233 = vector.broadcast %225 : vector<1x256xf32> to vector<32x256xf32>
    %234 = arith.subf %103, %233 : vector<32x256xf32>
    %cst_120 = arith.constant 9.99999974E-6 : f32
    %235 = vector.broadcast %cst_120 : f32 to vector<1x256xf32>
    %236 = arith.addf %232, %235 : vector<1x256xf32>
    %237 = math.rsqrt %236 : vector<1x256xf32>
    %238 = vector.broadcast %237 : vector<1x256xf32> to vector<32x256xf32>
    %239 = arith.mulf %234, %238 : vector<32x256xf32>
    %cst_121 = arith.constant dense<0.000000e+00> : vector<32x256xf32>
    %240 = tpu.matmul %221, %239, %cst_121 {dimension_numbers = #tpu.dot_dimension_numbers<[1], [0], [0], [1], [0, 0, 1, 1], [], []>} : vector<32x32xf32>, vector<32x256xf32>, vector<32x256xf32> -> vector<32x256xf32>
    %c1_122 = arith.constant 1 : index
    %c0_123 = arith.constant 0 : index
    %c0_124 = arith.constant 0 : index
    %241 = vector.load %arg9[%c1_122, %c0_123, %c0_124] : memref<3x32x32xf32, #tpu.memory_space<vmem>>, vector<1x32x32xf32>
    %242 = vector.shape_cast %241 : vector<1x32x32xf32> to vector<32x32xf32>
    %cst_125 = arith.constant dense<0.000000e+00> : vector<256xf32>
    %243 = vector.multi_reduction <add>, %161, %cst_125 [0] : vector<32x256xf32> to vector<256xf32>
    %244 = vector.shape_cast %243 : vector<256xf32> to vector<1x256xf32>
    %cst_126 = arith.constant 3.200000e+01 : f32
    %245 = vector.broadcast %cst_126 : f32 to vector<1x256xf32>
    %246 = arith.divf %244, %245 : vector<1x256xf32>
    %247 = vector.broadcast %246 : vector<1x256xf32> to vector<32x256xf32>
    %248 = arith.subf %161, %247 : vector<32x256xf32>
    %249 = arith.mulf %248, %248 : vector<32x256xf32>
    %cst_127 = arith.constant dense<0.000000e+00> : vector<256xf32>
    %250 = vector.multi_reduction <add>, %249, %cst_127 [0] : vector<32x256xf32> to vector<256xf32>
    %251 = vector.shape_cast %250 : vector<256xf32> to vector<1x256xf32>
    %cst_128 = arith.constant 3.200000e+01 : f32
    %252 = vector.broadcast %cst_128 : f32 to vector<1x256xf32>
    %253 = arith.divf %251, %252 : vector<1x256xf32>
    %254 = vector.broadcast %246 : vector<1x256xf32> to vector<32x256xf32>
    %255 = arith.subf %161, %254 : vector<32x256xf32>
    %cst_129 = arith.constant 9.99999974E-6 : f32
    %256 = vector.broadcast %cst_129 : f32 to vector<1x256xf32>
    %257 = arith.addf %253, %256 : vector<1x256xf32>
    %258 = math.rsqrt %257 : vector<1x256xf32>
    %259 = vector.broadcast %258 : vector<1x256xf32> to vector<32x256xf32>
    %260 = arith.mulf %255, %259 : vector<32x256xf32>
    %cst_130 = arith.constant dense<0.000000e+00> : vector<32x256xf32>
    %261 = tpu.matmul %242, %260, %cst_130 {dimension_numbers = #tpu.dot_dimension_numbers<[1], [0], [0], [1], [0, 0, 1, 1], [], []>} : vector<32x32xf32>, vector<32x256xf32>, vector<32x256xf32> -> vector<32x256xf32>
    %262 = arith.addf %240, %261 : vector<32x256xf32>
    %c2_131 = arith.constant 2 : index
    %c0_132 = arith.constant 0 : index
    %c0_133 = arith.constant 0 : index
    %263 = vector.load %arg9[%c2_131, %c0_132, %c0_133] : memref<3x32x32xf32, #tpu.memory_space<vmem>>, vector<1x32x32xf32>
    %264 = vector.shape_cast %263 : vector<1x32x32xf32> to vector<32x32xf32>
    %cst_134 = arith.constant dense<0.000000e+00> : vector<256xf32>
    %265 = vector.multi_reduction <add>, %219, %cst_134 [0] : vector<32x256xf32> to vector<256xf32>
    %266 = vector.shape_cast %265 : vector<256xf32> to vector<1x256xf32>
    %cst_135 = arith.constant 3.200000e+01 : f32
    %267 = vector.broadcast %cst_135 : f32 to vector<1x256xf32>
    %268 = arith.divf %266, %267 : vector<1x256xf32>
    %269 = vector.broadcast %268 : vector<1x256xf32> to vector<32x256xf32>
    %270 = arith.subf %219, %269 : vector<32x256xf32>
    %271 = arith.mulf %270, %270 : vector<32x256xf32>
    %cst_136 = arith.constant dense<0.000000e+00> : vector<256xf32>
    %272 = vector.multi_reduction <add>, %271, %cst_136 [0] : vector<32x256xf32> to vector<256xf32>
    %273 = vector.shape_cast %272 : vector<256xf32> to vector<1x256xf32>
    %cst_137 = arith.constant 3.200000e+01 : f32
    %274 = vector.broadcast %cst_137 : f32 to vector<1x256xf32>
    %275 = arith.divf %273, %274 : vector<1x256xf32>
    %276 = vector.broadcast %268 : vector<1x256xf32> to vector<32x256xf32>
    %277 = arith.subf %219, %276 : vector<32x256xf32>
    %cst_138 = arith.constant 9.99999974E-6 : f32
    %278 = vector.broadcast %cst_138 : f32 to vector<1x256xf32>
    %279 = arith.addf %275, %278 : vector<1x256xf32>
    %280 = math.rsqrt %279 : vector<1x256xf32>
    %281 = vector.broadcast %280 : vector<1x256xf32> to vector<32x256xf32>
    %282 = arith.mulf %277, %281 : vector<32x256xf32>
    %cst_139 = arith.constant dense<0.000000e+00> : vector<32x256xf32>
    %283 = tpu.matmul %264, %282, %cst_139 {dimension_numbers = #tpu.dot_dimension_numbers<[1], [0], [0], [1], [0, 0, 1, 1], [], []>} : vector<32x32xf32>, vector<32x256xf32>, vector<32x256xf32> -> vector<32x256xf32>
    %284 = arith.addf %262, %283 : vector<32x256xf32>
    %c0_140 = arith.constant 0 : index
    %c0_141 = arith.constant 0 : index
    %285 = vector.load %arg10[%c0_140, %c0_141] : memref<32x1xf32, #tpu.memory_space<vmem>>, vector<32x1xf32>
    %286 = vector.broadcast %285 : vector<32x1xf32> to vector<32x256xf32>
    %287 = arith.addf %284, %286 : vector<32x256xf32>
    %288 = arith.addf %287, %0 : vector<32x256xf32>
    %c0_142 = arith.constant 0 : index
    %c0_143 = arith.constant 0 : index
    %289 = vector.load %arg11[%c0_142, %c0_143] : memref<32x256xf32, #tpu.memory_space<vmem>>, vector<32x256xf32>
    tpu.vector_store %arg11[%c0_142, %c0_143], %288 {strides = array<i32>} : memref<32x256xf32, #tpu.memory_space<vmem>>, vector<32x256xf32>,
    return
  }
  func.func @transform_0(%arg0: i32) -> (i32, i32) {
    %c0_i32 = arith.constant 0 : i32
    %c0_i32_0 = arith.constant 0 : i32
    return %c0_i32, %arg0 : i32, i32
  }
  func.func @transform_1(%arg0: i32) -> (i32, i32) {
    %c0_i32 = arith.constant 0 : i32
    %c0_i32_0 = arith.constant 0 : i32
    %c0_i32_1 = arith.constant 0 : i32
    return %c0_i32, %c0_i32_0 : i32, i32
  }
  func.func @transform_2(%arg0: i32) -> (i32, i32) {
    %c0_i32 = arith.constant 0 : i32
    %c0_i32_0 = arith.constant 0 : i32
    %c0_i32_1 = arith.constant 0 : i32
    return %c0_i32, %c0_i32_0 : i32, i32
  }
  func.func @transform_3(%arg0: i32) -> (i32, i32, i32) {
    %c0_i32 = arith.constant 0 : i32
    %c0_i32_0 = arith.constant 0 : i32
    %c0_i32_1 = arith.constant 0 : i32
    %c0_i32_2 = arith.constant 0 : i32
    return %c0_i32, %c0_i32_0, %c0_i32_1 : i32, i32, i32
  }
  func.func @transform_4(%arg0: i32) -> (i32, i32) {
    %c0_i32 = arith.constant 0 : i32
    %c0_i32_0 = arith.constant 0 : i32
    %c0_i32_1 = arith.constant 0 : i32
    return %c0_i32, %c0_i32_0 : i32, i32
  }
  func.func @transform_5(%arg0: i32) -> (i32, i32, i32) {
    %c0_i32 = arith.constant 0 : i32
    %c0_i32_0 = arith.constant 0 : i32
    %c0_i32_1 = arith.constant 0 : i32
    %c0_i32_2 = arith.constant 0 : i32
    return %c0_i32, %c0_i32_0, %c0_i32_1 : i32, i32, i32
  }
  func.func @transform_6(%arg0: i32) -> (i32, i32, i32) {
    %c0_i32 = arith.constant 0 : i32
    %c0_i32_0 = arith.constant 0 : i32
    %c0_i32_1 = arith.constant 0 : i32
    %c0_i32_2 = arith.constant 0 : i32
    return %c0_i32, %c0_i32_0, %c0_i32_1 : i32, i32, i32
  }
  func.func @transform_7(%arg0: i32) -> (i32, i32, i32) {
    %c0_i32 = arith.constant 0 : i32
    %c0_i32_0 = arith.constant 0 : i32
    %c0_i32_1 = arith.constant 0 : i32
    %c0_i32_2 = arith.constant 0 : i32
    return %c0_i32, %c0_i32_0, %c0_i32_1 : i32, i32, i32
  }
  func.func @transform_8(%arg0: i32) -> (i32, i32, i32) {
    %c0_i32 = arith.constant 0 : i32
    %c0_i32_0 = arith.constant 0 : i32
    %c0_i32_1 = arith.constant 0 : i32
    %c0_i32_2 = arith.constant 0 : i32
    return %c0_i32, %c0_i32_0, %c0_i32_1 : i32, i32, i32
  }
  func.func @transform_9(%arg0: i32) -> (i32, i32) {
    %c0_i32 = arith.constant 0 : i32
    %c0_i32_0 = arith.constant 0 : i32
    %c0_i32_1 = arith.constant 0 : i32
    return %c0_i32, %c0_i32_0 : i32, i32
  }
  func.func @transform_10(%arg0: i32) -> (i32, i32) {
    %c0_i32 = arith.constant 0 : i32
    %c0_i32_0 = arith.constant 0 : i32
    return %c0_i32, %arg0 : i32, i32
  }
}

</mosaic_0001>

<llo_original>
// kernel: tpu_custom_call.1
$region0: #{tpu_custom_call.1}
  #allocation0 [shape = 'u32[]', space=smem, size = 0x4, offset = 0x4, fixed_abs, tag = 'smem constant byte address 0x4 - core index']
  #allocation1 [shape = 'u32[144,128]{1,0:T(1,128)}', space=vmem, size = 0x12000, scoped, tag = 'internal scratch']
  %s0 = inlined_call_operand.hbm [shape: f32[32,256], index: 0, kind: input, shape index: {}]
  %s1 = inlined_call_operand.vmem [shape: f32[198,32], index: 1, kind: input, shape index: {}]
  %s2 = inlined_call_operand.vmem [shape: f32[198,1], index: 2, kind: input, shape index: {}]
  %s3 = inlined_call_operand.vmem [shape: f32[5,32,32], index: 3, kind: input, shape index: {}]
  %s4 = inlined_call_operand.vmem [shape: bf16[128,640], index: 4, kind: input, shape index: {}]
  %s5 = inlined_call_operand.vmem [shape: f32[3,32,128], index: 5, kind: input, shape index: {}]
  %s6 = inlined_call_operand.hbm [shape: f32[3,32,32], index: 6, kind: input, shape index: {}]
  %s7 = inlined_call_operand.vmem [shape: f32[3,32,1], index: 7, kind: input, shape index: {}]
  %s8 = inlined_call_operand.hbm [shape: f32[3,32,32], index: 8, kind: input, shape index: {}]
  %s9 = inlined_call_operand.vmem [shape: f32[32,1], index: 9, kind: input, shape index: {}]
  %s10 = inlined_call_operand.hbm [shape: f32[32,256], index: 10, kind: output, shape index: {}]
  %s11 = sld [smem:[#allocation0]]
  $region62: #{tpu_custom_call.1} parent=0
    _
  %s13 = ssub.s32 1, %s11
  %s14 = scalar_select 0, %s13, %s11
  $region1: #{tpu_custom_call.1} parent=0
    #allocation2 [shape = 'u8[32768]{0}', space=vmem, size = 0x8000, scoped, tag = 'input window, operand 0, single buffered']
    #allocation3 [shape = 's32[1]{0}', space=sflag, size = 0x4, scoped, tag = 'scoped memory for tpu_custom_call.1']
    #allocation4 [shape = 's32[1]{0}', space=sflag, size = 0x4, scoped, tag = 'scoped memory for tpu_custom_call.1']
    #allocation5 [shape = 'u8[49152]{0}', space=vmem, size = 0xc000, scoped, tag = 'input window, operand 6, single buffered']
    #allocation6 [shape = 's32[1]{0}', space=sflag, size = 0x4, scoped, tag = 'scoped memory for tpu_custom_call.1']
    #allocation7 [shape = 'u8[49152]{0}', space=vmem, size = 0xc000, scoped, tag = 'input window, operand 8, single buffered']
    #allocation8 [shape = 'u8[32768]{0}', space=vmem, size = 0x8000, scoped, tag = 'output window, operand 0, single buffered']
    %15 = vsyncpa [#allocation3], 0
    %16 = vsyncpa [#allocation6], 0
    %17 = vsyncpa [#allocation4], 0
    // Predicated region
    $region2: #{tpu_custom_call.1} parent=1 // pred_check
      _
    $region3: #{tpu_custom_call.1} parent=1 // pred_check_branch
      %19 = sbr.rel (0) target = $region5
    $region4: #{tpu_custom_call.1} parent=1 // pred_region
      %s21 = ssub.s32 1024, 1024
      %22 = vsyncadd [#allocation3], %s21
      %s23 = sshll.u32 [#allocation2], 4
      %s24 = int_to_ptr.vmem [resolvable:$true] %s23
      %29 = dma.hbm_to_vmem [thread:$0]  %s0, 1024, %s24, [#allocation3], 256, 256, 16
    $region5: #{tpu_custom_call.1} parent=1 // pred_fallthru
      _
    // Predicated region
    $region6: #{tpu_custom_call.1} parent=1 // pred_check
      _
    $region7: #{tpu_custom_call.1} parent=1 // pred_check_branch
      %31 = sbr.rel (0) target = $region9
    $region8: #{tpu_custom_call.1} parent=1 // pred_region
      _
    $region9: #{tpu_custom_call.1} parent=1 // pred_fallthru
      _
    // Predicated region
    $region10: #{tpu_custom_call.1} parent=1 // pred_check
      _
    $region11: #{tpu_custom_call.1} parent=1 // pred_check_branch
      %33 = sbr.rel (0) target = $region13
    $region12: #{tpu_custom_call.1} parent=1 // pred_region
      _
    $region13: #{tpu_custom_call.1} parent=1 // pred_fallthru
      _
    // Predicated region
    $region14: #{tpu_custom_call.1} parent=1 // pred_check
      _
    $region15: #{tpu_custom_call.1} parent=1 // pred_check_branch
      %35 = sbr.rel (0) target = $region17
    $region16: #{tpu_custom_call.1} parent=1 // pred_region
      _
    $region17: #{tpu_custom_call.1} parent=1 // pred_fallthru
      _
    // Predicated region
    $region18: #{tpu_custom_call.1} parent=1 // pred_check
      _
    $region19: #{tpu_custom_call.1} parent=1 // pred_check_branch
      %37 = sbr.rel (0) target = $region21
    $region20: #{tpu_custom_call.1} parent=1 // pred_region
      _
    $region21: #{tpu_custom_call.1} parent=1 // pred_fallthru
      _
    // Predicated region
    $region22: #{tpu_custom_call.1} parent=1 // pred_check
      _
    $region23: #{tpu_custom_call.1} parent=1 // pred_check_branch
      %39 = sbr.rel (0) target = $region25
    $region24: #{tpu_custom_call.1} parent=1 // pred_region
      _
    $region25: #{tpu_custom_call.1} parent=1 // pred_fallthru
      _
    // Predicated region
    $region26: #{tpu_custom_call.1} parent=1 // pred_check
      _
    $region27: #{tpu_custom_call.1} parent=1 // pred_check_branch
      %41 = sbr.rel (0) target = $region29
    $region28: #{tpu_custom_call.1} parent=1 // pred_region
      %s43 = ssub.s32 1536, 1536
      %44 = vsyncadd [#allocation6], %s43
      %s45 = sshll.u32 [#allocation5], 4
      %s46 = int_to_ptr.vmem [resolvable:$true] %s45
      %51 = dma.hbm_to_vmem [thread:$0]  %s6, 1536, %s46, [#allocation6], 128, 128, 8
    $region29: #{tpu_custom_call.1} parent=1 // pred_fallthru
      _
    // Predicated region
    $region30: #{tpu_custom_call.1} parent=1 // pred_check
      _
    $region31: #{tpu_custom_call.1} parent=1 // pred_check_branch
      %53 = sbr.rel (0) target = $region33
    $region32: #{tpu_custom_call.1} parent=1 // pred_region
      _
    $region33: #{tpu_custom_call.1} parent=1 // pred_fallthru
      _
    // Predicated region
    $region34: #{tpu_custom_call.1} parent=1 // pred_check
      _
    $region35: #{tpu_custom_call.1} parent=1 // pred_check_branch
      %55 = sbr.rel (0) target = $region37
    $region36: #{tpu_custom_call.1} parent=1 // pred_region
      %s57 = ssub.s32 1536, 1536
      %58 = vsyncadd [#allocation6], %s57
      %s59 = sshll.u32 [#allocation7], 4
      %s60 = int_to_ptr.vmem [resolvable:$true] %s59
      %65 = dma.hbm_to_vmem [thread:$0]  %s8, 1536, %s60, [#allocation6], 128, 128, 8
    $region37: #{tpu_custom_call.1} parent=1 // pred_fallthru
      _
    // Predicated region
    $region38: #{tpu_custom_call.1} parent=1 // pred_check
      _
    $region39: #{tpu_custom_call.1} parent=1 // pred_check_branch
      %67 = sbr.rel (0) target = $region41
    $region40: #{tpu_custom_call.1} parent=1 // pred_region
      _
    $region41: #{tpu_custom_call.1} parent=1 // pred_fallthru
      _
    // Predicated region
    $region42: #{tpu_custom_call.1} parent=1 // pred_check
      _
    $region43: #{tpu_custom_call.1} parent=1 // pred_check_branch
      %69 = sbr.rel (0) target = $region45
    $region44: #{tpu_custom_call.1} parent=1 // pred_region
      %70 = dma.done [#allocation3], 1024
    $region45: #{tpu_custom_call.1} parent=1 // pred_fallthru
      _
    // Predicated region
    $region46: #{tpu_custom_call.1} parent=1 // pred_check
      _
    $region47: #{tpu_custom_call.1} parent=1 // pred_check_branch
      %72 = sbr.rel (0) target = $region49
    $region48: #{tpu_custom_call.1} parent=1 // pred_region
      %73 = dma.done [#allocation6], 1536
    $region49: #{tpu_custom_call.1} parent=1 // pred_fallthru
      _
    // Predicated region
    $region50: #{tpu_custom_call.1} parent=1 // pred_check
      _
    $region51: #{tpu_custom_call.1} parent=1 // pred_check_branch
      %75 = sbr.rel (0) target = $region53
    $region52: #{tpu_custom_call.1} parent=1 // pred_region
      %76 = dma.done [#allocation6], 1536
    $region53: #{tpu_custom_call.1} parent=1 // pred_fallthru
      _
    %v78 = vld [vmem:[#allocation2] sm:$0xff]
    %v79 = vld [vmem:[#allocation2 + $0x8] sm:$0xff]
    %v80 = vld [vmem:[#allocation2 + $0x10] sm:$0xff]
    %v81 = vld [vmem:[#allocation2 + $0x18] sm:$0xff]
    %v82 = vld [vmem:[#allocation2 + $0x20] sm:$0xff]
    %v83 = vld [vmem:[#allocation2 + $0x28] sm:$0xff]
    %v84 = vld [vmem:[#allocation2 + $0x30] sm:$0xff]
    %v85 = vld [vmem:[#allocation2 + $0x38] sm:$0xff]
    %v86 = vadd.f32 %v78, %v80
    %v87 = vadd.f32 %v86, %v82
    %v88 = vadd.f32 %v87, %v84
    %v89 = vrot.slane %v88, 4
    %v90 = vadd.f32 %v88, %v89
    %v91 = vrot.slane %v90, 2
    %v92 = vadd.f32 %v90, %v91
    %v93 = vrot.slane %v92, 1
    %v94 = vadd.f32 %v92, %v93
    %v95 = vadd.f32 %v79, %v81
    %v96 = vadd.f32 %v95, %v83
    %v97 = vadd.f32 %v96, %v85
    %v98 = vrot.slane %v97, 4
    %v99 = vadd.f32 %v97, %v98
    %v100 = vrot.slane %v99, 2
    %v101 = vadd.f32 %v99, %v100
    %v102 = vrot.slane %v101, 1
    %v103 = vadd.f32 %v101, %v102
    %v104 = vrcp.pop 32.0
    %v105 = vmul.f32 %v94, %v104
    %v106 = vmul.f32 %v103, %v104
    %v107 = vsub.f32 %v78, %v105
    %v108 = vsub.f32 %v79, %v106
    %v109 = vsub.f32 %v80, %v105
    %v110 = vsub.f32 %v81, %v106
    %v111 = vsub.f32 %v82, %v105
    %v112 = vsub.f32 %v83, %v106
    %v113 = vsub.f32 %v84, %v105
    %v114 = vsub.f32 %v85, %v106
    %v115 = vmul.f32 %v107, %v107
    %v116 = vmul.f32 %v108, %v108
    %v117 = vmul.f32 %v109, %v109
    %v118 = vmul.f32 %v110, %v110
    %v119 = vmul.f32 %v111, %v111
    %v120 = vmul.f32 %v112, %v112
    %v121 = vmul.f32 %v113, %v113
    %v122 = vmul.f32 %v114, %v114
    %v123 = vadd.f32 %v115, %v117
    %v124 = vadd.f32 %v123, %v119
    %v125 = vadd.f32 %v124, %v121
    %v126 = vrot.slane %v125, 4
    %v127 = vadd.f32 %v125, %v126
    %v128 = vrot.slane %v127, 2
    %v129 = vadd.f32 %v127, %v128
    %v130 = vrot.slane %v129, 1
    %v131 = vadd.f32 %v129, %v130
    %v132 = vadd.f32 %v116, %v118
    %v133 = vadd.f32 %v132, %v120
    %v134 = vadd.f32 %v133, %v122
    %v135 = vrot.slane %v134, 4
    %v136 = vadd.f32 %v134, %v135
    %v137 = vrot.slane %v136, 2
    %v138 = vadd.f32 %v136, %v137
    %v139 = vrot.slane %v138, 1
    %v140 = vadd.f32 %v138, %v139
    %v141 = vmul.f32 %v131, %v104
    %v142 = vmul.f32 %v140, %v104
    %v143 = vadd.f32 %v141, 1e-05
    %v144 = vadd.f32 %v142, 1e-05
    %v145 = vrsqrt.pop %v143
    %v146 = vrsqrt.pop %v144
    %v147 = vmul.f32 %v107, %v145
    %v148 = vmul.f32 %v108, %v146
    %v149 = vmul.f32 %v109, %v145
    %v150 = vmul.f32 %v110, %v146
    %v151 = vmul.f32 %v111, %v145
    %v152 = vmul.f32 %v112, %v146
    %v153 = vmul.f32 %v113, %v145
    %v154 = vmul.f32 %v114, %v146
    %v155 = vld [vmem:[%s1] sm:$0xff]
    %v156 = vld [vmem:[%s1 + $0x8] sm:$0xff]
    %v157 = vld [vmem:[%s1 + $0x10] sm:$0xff]
    %v158 = vld [vmem:[%s1 + $0x18] sm:$0xff]
    %v159 = vld [vmem:[%s1 + $0x20] sm:$0xff]
    %v160 = vld [vmem:[%s1 + $0x28] sm:$0xff]
    %v161 = vld [vmem:[%s1 + $0x30] sm:$0xff]
    %v162 = vld [vmem:[%s1 + $0x38] sm:$0xff]
    %v163 = vld [vmem:[%s1 + $0x40] sm:$0xff]
    %v164 = vld [vmem:[%s1 + $0x48] sm:$0xff]
    %v165 = vld [vmem:[%s1 + $0x50] sm:$0xff]
    %v166 = vld [vmem:[%s1 + $0x58] sm:$0xff]
    %v167 = vld [vmem:[%s1 + $0x60] sm:$0xff]
    %v168 = vld [vmem:[%s1 + $0x68] sm:$0xff]
    %v169 = vld [vmem:[%s1 + $0x70] sm:$0xff]
    %v170 = vld [vmem:[%s1 + $0x78] sm:$0xff]
    %v171 = vld [vmem:[%s1 + $0x80] sm:$0xff]
    %v172 = vld [vmem:[%s1 + $0x88] sm:$0xff]
    %v173 = vld [vmem:[%s1 + $0x90] sm:$0xff]
    %v174 = vld [vmem:[%s1 + $0x98] sm:$0xff]
    %v175 = vld [vmem:[%s1 + $0xa0] sm:$0xff]
    %v176 = vld [vmem:[%s1 + $0xa8] sm:$0xff]
    %v177 = vld [vmem:[%s1 + $0xb0] sm:$0xff]
    %v178 = vld [vmem:[%s1 + $0xb8] sm:$0xff]
    %v179 = vld [vmem:[%s1 + $0xc0] sm:$0x3f]
    %v180 = vld [vmem:[%s2] sm:$0xff]
    %v181 = vld [vmem:[%s2 + $0x8] sm:$0xff]
    %v182 = vld [vmem:[%s2 + $0x10] sm:$0xff]
    %v183 = vld [vmem:[%s2 + $0x18] sm:$0xff]
    %v184 = vld [vmem:[%s2 + $0x20] sm:$0xff]
    %v185 = vld [vmem:[%s2 + $0x28] sm:$0xff]
    %v186 = vld [vmem:[%s2 + $0x30] sm:$0xff]
    %v187 = vld [vmem:[%s2 + $0x38] sm:$0xff]
    %v188 = vld [vmem:[%s2 + $0x40] sm:$0xff]
    %v189 = vld [vmem:[%s2 + $0x48] sm:$0xff]
    %v190 = vld [vmem:[%s2 + $0x50] sm:$0xff]
    %v191 = vld [vmem:[%s2 + $0x58] sm:$0xff]
    %v192 = vld [vmem:[%s2 + $0x60] sm:$0xff]
    %v193 = vld [vmem:[%s2 + $0x68] sm:$0xff]
    %v194 = vld [vmem:[%s2 + $0x70] sm:$0xff]
    %v195 = vld [vmem:[%s2 + $0x78] sm:$0xff]
    %v196 = vld [vmem:[%s2 + $0x80] sm:$0xff]
    %v197 = vld [vmem:[%s2 + $0x88] sm:$0xff]
    %v198 = vld [vmem:[%s2 + $0x90] sm:$0xff]
    %v199 = vld [vmem:[%s2 + $0x98] sm:$0xff]
    %v200 = vld [vmem:[%s2 + $0xa0] sm:$0xff]
    %v201 = vld [vmem:[%s2 + $0xa8] sm:$0xff]
    %v202 = vld [vmem:[%s2 + $0xb0] sm:$0xff]
    %v203 = vld [vmem:[%s2 + $0xb8] sm:$0xff]
    %v204 = vld [vmem:[%s2 + $0xc0] sm:$0x3f]
    %206 = vset.pattern.permute.xlu0 0
    %207 = vperm.xlu0 %206, %v180
    %v208 = vpop.permute.xlu0 %207
    %211 = vset.pattern.permute.xlu0 0
    %212 = vperm.xlu0 %211, %v181
    %v213 = vpop.permute.xlu0 %212
    %216 = vset.pattern.permute.xlu0 0
    %217 = vperm.xlu0 %216, %v182
    %v218 = vpop.permute.xlu0 %217
    %221 = vset.pattern.permute.xlu0 0
    %222 = vperm.xlu0 %221, %v183
    %v223 = vpop.permute.xlu0 %222
    %226 = vset.pattern.permute.xlu0 0
    %227 = vperm.xlu0 %226, %v184
    %v228 = vpop.permute.xlu0 %227
    %231 = vset.pattern.permute.xlu0 0
    %232 = vperm.xlu0 %231, %v185
    %v233 = vpop.permute.xlu0 %232
    %236 = vset.pattern.permute.xlu0 0
    %237 = vperm.xlu0 %236, %v186
    %v238 = vpop.permute.xlu0 %237
    %241 = vset.pattern.permute.xlu0 0
    %242 = vperm.xlu0 %241, %v187
    %v243 = vpop.permute.xlu0 %242
    %246 = vset.pattern.permute.xlu0 0
    %247 = vperm.xlu0 %246, %v188
    %v248 = vpop.permute.xlu0 %247
    %251 = vset.pattern.permute.xlu0 0
    %252 = vperm.xlu0 %251, %v189
    %v253 = vpop.permute.xlu0 %252
    %256 = vset.pattern.permute.xlu0 0
    %257 = vperm.xlu0 %256, %v190
    %v258 = vpop.permute.xlu0 %257
    %261 = vset.pattern.permute.xlu0 0
    %262 = vperm.xlu0 %261, %v191
    %v263 = vpop.permute.xlu0 %262
    %266 = vset.pattern.permute.xlu0 0
    %267 = vperm.xlu0 %266, %v192
    %v268 = vpop.permute.xlu0 %267
    %271 = vset.pattern.permute.xlu0 0
    %272 = vperm.xlu0 %271, %v193
    %v273 = vpop.permute.xlu0 %272
    %276 = vset.pattern.permute.xlu0 0
    %277 = vperm.xlu0 %276, %v194
    %v278 = vpop.permute.xlu0 %277
    %281 = vset.pattern.permute.xlu0 0
    %282 = vperm.xlu0 %281, %v195
    %v283 = vpop.permute.xlu0 %282
    %286 = vset.pattern.permute.xlu0 0
    %287 = vperm.xlu0 %286, %v196
    %v288 = vpop.permute.xlu0 %287
    %291 = vset.pattern.permute.xlu0 0
    %292 = vperm.xlu0 %291, %v197
    %v293 = vpop.permute.xlu0 %292
    %296 = vset.pattern.permute.xlu0 0
    %297 = vperm.xlu0 %296, %v198
    %v298 = vpop.permute.xlu0 %297
    %301 = vset.pattern.permute.xlu0 0
    %302 = vperm.xlu0 %301, %v199
    %v303 = vpop.permute.xlu0 %302
    %306 = vset.pattern.permute.xlu0 0
    %307 = vperm.xlu0 %306, %v200
    %v308 = vpop.permute.xlu0 %307
    %311 = vset.pattern.permute.xlu0 0
    %312 = vperm.xlu0 %311, %v201
    %v313 = vpop.permute.xlu0 %312
    %316 = vset.pattern.permute.xlu0 0
    %317 = vperm.xlu0 %316, %v202
    %v318 = vpop.permute.xlu0 %317
    %321 = vset.pattern.permute.xlu0 0
    %322 = vperm.xlu0 %321, %v203
    %v323 = vpop.permute.xlu0 %322
    %326 = vset.pattern.permute.xlu0 0
    %327 = vperm.xlu0 %326, %v204
    %v328 = vpop.permute.xlu0 %327
    %vm330 = vcmask 261120
    %v332 = vsel %vm330, %v155, 0
    %v335 = vsel %vm330, %v156, 0
    %v338 = vsel %vm330, %v157, 0
    %v341 = vsel %vm330, %v158, 0
    %v344 = vsel %vm330, %v159, 0
    %v347 = vsel %vm330, %v160, 0
    %v350 = vsel %vm330, %v161, 0
    %v353 = vsel %vm330, %v162, 0
    %v356 = vsel %vm330, %v163, 0
    %v359 = vsel %vm330, %v164, 0
    %v362 = vsel %vm330, %v165, 0
    %v365 = vsel %vm330, %v166, 0
    %v368 = vsel %vm330, %v167, 0
    %v371 = vsel %vm330, %v168, 0
    %v374 = vsel %vm330, %v169, 0
    %v377 = vsel %vm330, %v170, 0
    %v380 = vsel %vm330, %v171, 0
    %v383 = vsel %vm330, %v172, 0
    %v386 = vsel %vm330, %v173, 0
    %v389 = vsel %vm330, %v174, 0
    %v392 = vsel %vm330, %v175, 0
    %v395 = vsel %vm330, %v176, 0
    %v398 = vsel %vm330, %v177, 0
    %v401 = vsel %vm330, %v178, 0
    %v404 = vsel %vm330, %v179, 0
    %406 = vmatprep.subr.mxu0 0.0
    %407 = vmatpush1.msra.mxu0 0.0
    %408 = vmatprep.subr.mxu0 0.0
    %409 = vmatpush1.msra.mxu0 0.0
    %410 = vmatprep.subr.mxu0 0.0
    %411 = vmatpush1.msra.mxu0 0.0
    %412 = vmatprep.subr.mxu0 0.0
    %413 = vmatpush1.msra.mxu0 0.0
    %414 = vmatprep.subr.mxu0 0.0
    %415 = vmatpush1.msra.mxu0 0.0
    %416 = vmatprep.subr.mxu0 0.0
    %417 = vmatpush1.msra.mxu0 0.0
    %418 = vmatprep.subr.mxu0 0.0
    %419 = vmatpush1.msra.mxu0 0.0
    %420 = vmatprep.subr.mxu0 0.0
    %421 = vmatpush1.msra.mxu0 0.0
    %422 = vmatprep.subr.mxu0 0.0
    %423 = vmatpush1.msra.mxu0 0.0
    %424 = vmatprep.subr.mxu0 0.0
    %425 = vmatpush1.msra.mxu0 0.0
    %426 = vmatprep.subr.mxu0 0.0
    %427 = vmatpush1.msra.mxu0 0.0
    %428 = vmatprep.subr.mxu0 0.0
    %429 = vmatpush1.msra.mxu0 0.0
    %430 = vmatprep.subr.mxu0 %v154
    %431 = vmatpush1.msra.mxu0 %v153
    %432 = vmatprep.subr.mxu0 %v152
    %433 = vmatpush1.msra.mxu0 %v151
    %434 = vmatprep.subr.mxu0 %v150
    %435 = vmatpush1.msra.mxu0 %v149
    %436 = vmatprep.subr.mxu0 %v148
    %437 = vmatpush1.msra.mxu0 %v147
    %438 = vmatprep.subr.mxu0 0.0
    %439 = vmatpush2.msra.mxu0 0.0
    %440 = vmatprep.subr.mxu0 0.0
    %441 = vmatpush2.msra.mxu0 0.0
    %442 = vmatprep.subr.mxu0 0.0
    %443 = vmatpush2.msra.mxu0 0.0
    %444 = vmatprep.subr.mxu0 0.0
    %445 = vmatpush2.msra.mxu0 0.0
    %446 = vmatprep.subr.mxu0 0.0
    %447 = vmatpush2.msra.mxu0 0.0
    %448 = vmatprep.subr.mxu0 0.0
    %449 = vmatpush2.msra.mxu0 0.0
    %450 = vmatprep.subr.mxu0 0.0
    %451 = vmatpush2.msra.mxu0 0.0
    %452 = vmatprep.subr.mxu0 0.0
    %453 = vmatpush2.msra.mxu0 0.0
    %454 = vmatprep.subr.mxu0 0.0
    %455 = vmatpush2.msra.mxu0 0.0
    %456 = vmatprep.subr.mxu0 0.0
    %457 = vmatpush2.msra.mxu0 0.0
    %458 = vmatprep.subr.mxu0 0.0
    %459 = vmatpush2.msra.mxu0 0.0
    %460 = vmatprep.subr.mxu0 0.0
    %461 = vmatpush2.msra.mxu0 0.0
    %462 = vmatprep.subr.mxu0 0.0
    %463 = vmatpush2.msra.mxu0 0.0
    %464 = vmatprep.subr.mxu0 0.0
    %465 = vmatpush2.msra.mxu0 0.0
    %466 = vmatprep.subr.mxu0 0.0
    %467 = vmatpush2.msra.mxu0 0.0
    %468 = vmatprep.subr.mxu0 0.0
    %469 = vmatpush2.msra.mxu0 0.0
    %470 = vmatprep.mubr.f32.mxu0 0.0
    %471 = vmatmul.mubr.f32.gmra.mxu0 %v332
    %v472 = vpop.f32.mrf.mxu0
    %v473 = vadd.f32 %v208, %v472
    %v474 = vpop.f32.mrf.mxu0
    %v475 = vadd.f32 %v208, %v474
    %476 = vmatprep.mubr.f32.mxu0 0.0
    %477 = vmatmul.mubr.f32.gmra.mxu0 %v335
    %v478 = vpop.f32.mrf.mxu0
    %v479 = vadd.f32 %v213, %v478
    %v480 = vpop.f32.mrf.mxu0
    %v481 = vadd.f32 %v213, %v480
    %482 = vmatprep.mubr.f32.mxu0 0.0
    %483 = vmatmul.mubr.f32.gmra.mxu0 %v338
    %v484 = vpop.f32.mrf.mxu0
    %v485 = vadd.f32 %v218, %v484
    %v486 = vpop.f32.mrf.mxu0
    %v487 = vadd.f32 %v218, %v486
    %488 = vmatprep.mubr.f32.mxu0 0.0
    %489 = vmatmul.mubr.f32.gmra.mxu0 %v341
    %v490 = vpop.f32.mrf.mxu0
    %v491 = vadd.f32 %v223, %v490
    %v492 = vpop.f32.mrf.mxu0
    %v493 = vadd.f32 %v223, %v492
    %494 = vmatprep.mubr.f32.mxu0 0.0
    %495 = vmatmul.mubr.f32.gmra.mxu0 %v344
    %v496 = vpop.f32.mrf.mxu0
    %v497 = vadd.f32 %v228, %v496
    %v498 = vpop.f32.mrf.mxu0
    %v499 = vadd.f32 %v228, %v498
    %500 = vmatprep.mubr.f32.mxu0 0.0
    %501 = vmatmul.mubr.f32.gmra.mxu0 %v347
    %v502 = vpop.f32.mrf.mxu0
    %v503 = vadd.f32 %v233, %v502
    %v504 = vpop.f32.mrf.mxu0
    %v505 = vadd.f32 %v233, %v504
    %506 = vmatprep.mubr.f32.mxu0 0.0
    %507 = vmatmul.mubr.f32.gmra.mxu0 %v350
    %v508 = vpop.f32.mrf.mxu0
    %v509 = vadd.f32 %v238, %v508
    %v510 = vpop.f32.mrf.mxu0
    %v511 = vadd.f32 %v238, %v510
    %512 = vmatprep.mubr.f32.mxu0 0.0
    %513 = vmatmul.mubr.f32.gmra.mxu0 %v353
    %v514 = vpop.f32.mrf.mxu0
    %v515 = vadd.f32 %v243, %v514
    %v516 = vpop.f32.mrf.mxu0
    %v517 = vadd.f32 %v243, %v516
    %518 = vmatprep.mubr.f32.mxu0 0.0
    %519 = vmatmul.mubr.f32.gmra.mxu0 %v356
    %v520 = vpop.f32.mrf.mxu0
    %v521 = vadd.f32 %v248, %v520
    %v522 = vpop.f32.mrf.mxu0
    %v523 = vadd.f32 %v248, %v522
    %524 = vmatprep.mubr.f32.mxu0 0.0
    %525 = vmatmul.mubr.f32.gmra.mxu0 %v359
    %v526 = vpop.f32.mrf.mxu0
    %v527 = vadd.f32 %v253, %v526
    %v528 = vpop.f32.mrf.mxu0
    %v529 = vadd.f32 %v253, %v528
    %530 = vmatprep.mubr.f32.mxu0 0.0
    %531 = vmatmul.mubr.f32.gmra.mxu0 %v362
    %v532 = vpop.f32.mrf.mxu0
    %v533 = vadd.f32 %v258, %v532
    %v534 = vpop.f32.mrf.mxu0
    %v535 = vadd.f32 %v258, %v534
    %536 = vmatprep.mubr.f32.mxu0 0.0
    %537 = vmatmul.mubr.f32.gmra.mxu0 %v365
    %v538 = vpop.f32.mrf.mxu0
    %v539 = vadd.f32 %v263, %v538
    %v540 = vpop.f32.mrf.mxu0
    %v541 = vadd.f32 %v263, %v540
    %542 = vmatprep.mubr.f32.mxu0 0.0
    %543 = vmatmul.mubr.f32.gmra.mxu0 %v368
    %v544 = vpop.f32.mrf.mxu0
    %v545 = vadd.f32 %v268, %v544
    %v546 = vpop.f32.mrf.mxu0
    %v547 = vadd.f32 %v268, %v546
    %548 = vmatprep.mubr.f32.mxu0 0.0
    %549 = vmatmul.mubr.f32.gmra.mxu0 %v371
    %v550 = vpop.f32.mrf.mxu0
    %v551 = vadd.f32 %v273, %v550
    %v552 = vpop.f32.mrf.mxu0
    %v553 = vadd.f32 %v273, %v552
    %554 = vmatprep.mubr.f32.mxu0 0.0
    %555 = vmatmul.mubr.f32.gmra.mxu0 %v374
    %v556 = vpop.f32.mrf.mxu0
    %v557 = vadd.f32 %v278, %v556
    %v558 = vpop.f32.mrf.mxu0
    %v559 = vadd.f32 %v278, %v558
    %560 = vmatprep.mubr.f32.mxu0 0.0
    %561 = vmatmul.mubr.f32.gmra.mxu0 %v377
    %v562 = vpop.f32.mrf.mxu0
    %v563 = vadd.f32 %v283, %v562
    %v564 = vpop.f32.mrf.mxu0
    %v565 = vadd.f32 %v283, %v564
    %566 = vmatprep.mubr.f32.mxu0 0.0
    %567 = vmatmul.mubr.f32.gmra.mxu0 %v380
    %v568 = vpop.f32.mrf.mxu0
    %v569 = vadd.f32 %v288, %v568
    %v570 = vpop.f32.mrf.mxu0
    %v571 = vadd.f32 %v288, %v570
    %572 = vmatprep.mubr.f32.mxu0 0.0
    %573 = vmatmul.mubr.f32.gmra.mxu0 %v383
    %v574 = vpop.f32.mrf.mxu0
    %v575 = vadd.f32 %v293, %v574
    %v576 = vpop.f32.mrf.mxu0
    %v577 = vadd.f32 %v293, %v576
    %578 = vmatprep.mubr.f32.mxu0 0.0
    %579 = vmatmul.mubr.f32.gmra.mxu0 %v386
    %v580 = vpop.f32.mrf.mxu0
    %v581 = vadd.f32 %v298, %v580
    %v582 = vpop.f32.mrf.mxu0
    %v583 = vadd.f32 %v298, %v582
    %584 = vmatprep.mubr.f32.mxu0 0.0
    %585 = vmatmul.mubr.f32.gmra.mxu0 %v389
    %v586 = vpop.f32.mrf.mxu0
    %v587 = vadd.f32 %v303, %v586
    %v588 = vpop.f32.mrf.mxu0
    %v589 = vadd.f32 %v303, %v588
    %590 = vmatprep.mubr.f32.mxu0 0.0
    %591 = vmatmul.mubr.f32.gmra.mxu0 %v392
    %v592 = vpop.f32.mrf.mxu0
    %v593 = vadd.f32 %v308, %v592
    %v594 = vpop.f32.mrf.mxu0
    %v595 = vadd.f32 %v308, %v594
    %596 = vmatprep.mubr.f32.mxu0 0.0
    %597 = vmatmul.mubr.f32.gmra.mxu0 %v395
    %v598 = vpop.f32.mrf.mxu0
    %v599 = vadd.f32 %v313, %v598
    %v600 = vpop.f32.mrf.mxu0
    %v601 = vadd.f32 %v313, %v600
    %602 = vmatprep.mubr.f32.mxu0 0.0
    %603 = vmatmul.mubr.f32.gmra.mxu0 %v398
    %v604 = vpop.f32.mrf.mxu0
    %v605 = vadd.f32 %v318, %v604
    %v606 = vpop.f32.mrf.mxu0
    %v607 = vadd.f32 %v318, %v606
    %608 = vmatprep.mubr.f32.mxu0 0.0
    %609 = vmatmul.mubr.f32.gmra.mxu0 %v401
    %v610 = vpop.f32.mrf.mxu0
    %v611 = vadd.f32 %v323, %v610
    %v612 = vpop.f32.mrf.mxu0
    %v613 = vadd.f32 %v323, %v612
    %614 = vmatprep.mubr.f32.mxu0 0.0
    %615 = vmatmul.mubr.f32.gmra.mxu0 %v404
    %v616 = vpop.f32.mrf.mxu0
    %v617 = vadd.f32 %v328, %v616
    %v618 = vpop.f32.mrf.mxu0
    %v619 = vadd.f32 %v328, %v618
    %620 = vdwg.mxu0
    %v621 = vmax.f32 %v473, 0.0
    %v622 = vmax.f32 %v475, 0.0
    %v623 = vmax.f32 %v479, 0.0
    %v624 = vmax.f32 %v481, 0.0
    %v625 = vmax.f32 %v485, 0.0
    %v626 = vmax.f32 %v487, 0.0
    %v627 = vmax.f32 %v491, 0.0
    %v628 = vmax.f32 %v493, 0.0
    %v629 = vmax.f32 %v497, 0.0
    %v630 = vmax.f32 %v499, 0.0
    %v631 = vmax.f32 %v503, 0.0
    %v632 = vmax.f32 %v505, 0.0
    %v633 = vmax.f32 %v509, 0.0
    %v634 = vmax.f32 %v511, 0.0
    %v635 = vmax.f32 %v515, 0.0
    %v636 = vmax.f32 %v517, 0.0
    %v637 = vlaneseq
    %v638 = vshrl.u32 %v637, 7
    %v639 = vsub.s32 0, %v638
    %v640 = vrot.slane %v617, %v639
    %v641 = vlaneseq
    %v642 = vshrl.u32 %v641, 7
    %v643 = vsub.s32 0, %v642
    %v644 = vrot.slane %v619, %v643
    %v645 = vmul.f32 %v621, %v640
    %v646 = vmul.f32 %v622, %v644
    %v647 = vmul.f32 %v623, %v640
    %v648 = vmul.f32 %v624, %v644
    %v649 = vmul.f32 %v625, %v640
    %v650 = vmul.f32 %v626, %v644
    %v651 = vmul.f32 %v627, %v640
    %v652 = vmul.f32 %v628, %v644
    %v653 = vmul.f32 %v629, %v640
    %v654 = vmul.f32 %v630, %v644
    %v655 = vmul.f32 %v631, %v640
    %v656 = vmul.f32 %v632, %v644
    %v657 = vmul.f32 %v633, %v640
    %v658 = vmul.f32 %v634, %v644
    %v659 = vmul.f32 %v635, %v640
    %v660 = vmul.f32 %v636, %v644
    %v661 = vlaneseq
    %v662 = vshrl.u32 %v661, 7
    %v663 = vsub.s32 1, %v662
    %v664 = vrot.slane %v617, %v663
    %v665 = vlaneseq
    %v666 = vshrl.u32 %v665, 7
    %v667 = vsub.s32 1, %v666
    %v668 = vrot.slane %v619, %v667
    %v669 = vadd.f32 %v645, %v664
    %v670 = vadd.f32 %v646, %v668
    %v671 = vadd.f32 %v647, %v664
    %v672 = vadd.f32 %v648, %v668
    %v673 = vadd.f32 %v649, %v664
    %v674 = vadd.f32 %v650, %v668
    %v675 = vadd.f32 %v651, %v664
    %v676 = vadd.f32 %v652, %v668
    %v677 = vadd.f32 %v653, %v664
    %v678 = vadd.f32 %v654, %v668
    %v679 = vadd.f32 %v655, %v664
    %v680 = vadd.f32 %v656, %v668
    %v681 = vadd.f32 %v657, %v664
    %v682 = vadd.f32 %v658, %v668
    %v683 = vadd.f32 %v659, %v664
    %v684 = vadd.f32 %v660, %v668
    %v685 = vadd.f32 %v677, %v679
    %v686 = vadd.f32 %v685, %v681
    %v687 = vadd.f32 %v686, %v683
    %v688 = vrot.slane %v687, 4
    %v689 = vadd.f32 %v687, %v688
    %v690 = vrot.slane %v689, 2
    %v691 = vadd.f32 %v689, %v690
    %v692 = vrot.slane %v691, 1
    %v693 = vadd.f32 %v691, %v692
    %v694 = vadd.f32 %v678, %v680
    %v695 = vadd.f32 %v694, %v682
    %v696 = vadd.f32 %v695, %v684
    %v697 = vrot.slane %v696, 4
    %v698 = vadd.f32 %v696, %v697
    %v699 = vrot.slane %v698, 2
    %v700 = vadd.f32 %v698, %v699
    %v701 = vrot.slane %v700, 1
    %v702 = vadd.f32 %v700, %v701
    %v703 = vmul.f32 %v693, %v104
    %v704 = vmul.f32 %v702, %v104
    %v705 = vsub.f32 %v677, %v703
    %v706 = vsub.f32 %v678, %v704
    %v707 = vsub.f32 %v679, %v703
    %v708 = vsub.f32 %v680, %v704
    %v709 = vsub.f32 %v681, %v703
    %v710 = vsub.f32 %v682, %v704
    %v711 = vsub.f32 %v683, %v703
    %v712 = vsub.f32 %v684, %v704
    %v713 = vmul.f32 %v705, %v705
    %v714 = vmul.f32 %v706, %v706
    %v715 = vmul.f32 %v707, %v707
    %v716 = vmul.f32 %v708, %v708
    %v717 = vmul.f32 %v709, %v709
    %v718 = vmul.f32 %v710, %v710
    %v719 = vmul.f32 %v711, %v711
    %v720 = vmul.f32 %v712, %v712
    %v721 = vadd.f32 %v713, %v715
    %v722 = vadd.f32 %v721, %v717
    %v723 = vadd.f32 %v722, %v719
    %v724 = vrot.slane %v723, 4
    %v725 = vadd.f32 %v723, %v724
    %v726 = vrot.slane %v725, 2
    %v727 = vadd.f32 %v725, %v726
    %v728 = vrot.slane %v727, 1
    %v729 = vadd.f32 %v727, %v728
    %v730 = vadd.f32 %v714, %v716
    %v731 = vadd.f32 %v730, %v718
    %v732 = vadd.f32 %v731, %v720
    %v733 = vrot.slane %v732, 4
    %v734 = vadd.f32 %v732, %v733
    %v735 = vrot.slane %v734, 2
    %v736 = vadd.f32 %v734, %v735
    %v737 = vrot.slane %v736, 1
    %v738 = vadd.f32 %v736, %v737
    %v739 = vmul.f32 %v729, %v104
    %v740 = vmul.f32 %v738, %v104
    %v741 = vadd.f32 %v739, 1e-05
    %v742 = vadd.f32 %v740, 1e-05
    %v743 = vrsqrt.pop %v741
    %v744 = vrsqrt.pop %v742
    %v745 = vmul.f32 %v705, %v743
    %v746 = vmul.f32 %v706, %v744
    %v747 = vmul.f32 %v707, %v743
    %v748 = vmul.f32 %v708, %v744
    %v749 = vmul.f32 %v709, %v743
    %v750 = vmul.f32 %v710, %v744
    %v751 = vmul.f32 %v711, %v743
    %v752 = vmul.f32 %v712, %v744
    %v753 = vpack.c.bf16 %v747, %v745
    %v754 = vpack.c.bf16 %v748, %v746
    %v755 = vpack.c.bf16 %v751, %v749
    %v756 = vpack.c.bf16 %v752, %v750
    %v757 = vld [vmem:[%s5] sm:$0xff]
    %v758 = vld [vmem:[%s5 + $0x8] sm:$0xff]
    %v759 = vld [vmem:[%s5 + $0x10] sm:$0xff]
    %v760 = vld [vmem:[%s5 + $0x18] sm:$0xff]
    %v761 = vld [vmem:[%s4] sm:$0xff]
    %v762 = vld [vmem:[%s4 + $0x8] sm:$0xf]
    %v763 = vld [vmem:[%s4 + $0x14] sm:$0xff]
    %v764 = vld [vmem:[%s4 + $0x1c] sm:$0xf]
    %v765 = vld [vmem:[%s4 + $0x28] sm:$0xff]
    %v766 = vld [vmem:[%s4 + $0x30] sm:$0xf]
    %v767 = vld [vmem:[%s4 + $0x3c] sm:$0xff]
    %v768 = vld [vmem:[%s4 + $0x44] sm:$0xf]
    %v769 = vld [vmem:[%s4 + $0x50] sm:$0xff]
    %v770 = vld [vmem:[%s4 + $0x58] sm:$0xf]
    %v771 = vld [vmem:[%s4 + $0x64] sm:$0xff]
    %v772 = vld [vmem:[%s4 + $0x6c] sm:$0xf]
    %v773 = vld [vmem:[%s4 + $0x78] sm:$0xff]
    %v774 = vld [vmem:[%s4 + $0x80] sm:$0xf]
    %v775 = vld [vmem:[%s4 + $0x8c] sm:$0xff]
    %v776 = vld [vmem:[%s4 + $0x94] sm:$0xf]
    %v777 = vld [vmem:[%s4 + $0xa0] sm:$0xff]
    %v778 = vld [vmem:[%s4 + $0xa8] sm:$0xf]
    %v779 = vld [vmem:[%s4 + $0xb4] sm:$0xff]
    %v780 = vld [vmem:[%s4 + $0xbc] sm:$0xf]
    %v781 = vld [vmem:[%s4 + $0xc8] sm:$0xff]
    %v782 = vld [vmem:[%s4 + $0xd0] sm:$0xf]
    %v783 = vld [vmem:[%s4 + $0xdc] sm:$0xff]
    %v784 = vld [vmem:[%s4 + $0xe4] sm:$0xf]
    %v785 = vld [vmem:[%s4 + $0xf0] sm:$0xff]
    %v786 = vld [vmem:[%s4 + $0xf8] sm:$0xf]
    %v787 = vld [vmem:[%s4 + $0x104] sm:$0xff]
    %v788 = vld [vmem:[%s4 + $0x10c] sm:$0xf]
    %v789 = vld [vmem:[%s4 + $0x118] sm:$0xff]
    %v790 = vld [vmem:[%s4 + $0x120] sm:$0xf]
    %v791 = vld [vmem:[%s4 + $0x12c] sm:$0xff]
    %v792 = vld [vmem:[%s4 + $0x134] sm:$0xf]
    %v825 = vunpack.c.l.b16 %v761
    %v826 = vunpack.c.h.b16 %v761
    %v827 = vunpack.c.l.b16 %v762
    %v828 = vunpack.c.l.b16 %v763
    %v829 = vunpack.c.h.b16 %v763
    %v830 = vunpack.c.l.b16 %v764
    %v831 = vunpack.c.l.b16 %v765
    %v832 = vunpack.c.h.b16 %v765
    %v833 = vunpack.c.l.b16 %v766
    %v834 = vunpack.c.l.b16 %v767
    %v835 = vunpack.c.h.b16 %v767
    %v836 = vunpack.c.l.b16 %v768
    %v837 = vunpack.c.l.b16 %v769
    %v838 = vunpack.c.h.b16 %v769
    %v839 = vunpack.c.l.b16 %v770
    %v840 = vunpack.c.l.b16 %v771
    %v841 = vunpack.c.h.b16 %v771
    %v842 = vunpack.c.l.b16 %v772
    %v843 = vunpack.c.l.b16 %v773
    %v844 = vunpack.c.h.b16 %v773
    %v845 = vunpack.c.l.b16 %v774
    %v846 = vunpack.c.l.b16 %v775
    %v847 = vunpack.c.h.b16 %v775
    %v848 = vunpack.c.l.b16 %v776
    %v849 = vunpack.c.l.b16 %v777
    %v850 = vunpack.c.h.b16 %v777
    %v851 = vunpack.c.l.b16 %v778
    %v852 = vunpack.c.l.b16 %v779
    %v853 = vunpack.c.h.b16 %v779
    %v854 = vunpack.c.l.b16 %v780
    %v855 = vunpack.c.l.b16 %v781
    %v856 = vunpack.c.h.b16 %v781
    %v857 = vunpack.c.l.b16 %v782
    %v858 = vunpack.c.l.b16 %v783
    %v859 = vunpack.c.h.b16 %v783
    %v860 = vunpack.c.l.b16 %v784
    %v861 = vunpack.c.l.b16 %v785
    %v862 = vunpack.c.h.b16 %v785
    %v863 = vunpack.c.l.b16 %v786
    %v864 = vunpack.c.l.b16 %v787
    %v865 = vunpack.c.h.b16 %v787
    %v866 = vunpack.c.l.b16 %v788
    %v867 = vunpack.c.l.b16 %v789
    %v868 = vunpack.c.h.b16 %v789
    %v869 = vunpack.c.l.b16 %v790
    %v870 = vunpack.c.l.b16 %v791
    %v871 = vunpack.c.h.b16 %v791
    %v872 = vunpack.c.l.b16 %v792
    %v873 = vpack.c.b16 %v828, %v825
    %v874 = vpack.c.b16 %v829, %v826
    %v875 = vpack.c.b16 %v830, %v827
    %v876 = vpack.c.b16 %v834, %v831
    %v877 = vpack.c.b16 %v835, %v832
    %v878 = vpack.c.b16 %v836, %v833
    %v879 = vpack.c.b16 %v840, %v837
    %v880 = vpack.c.b16 %v841, %v838
    %v881 = vpack.c.b16 %v842, %v839
    %v882 = vpack.c.b16 %v846, %v843
    %v883 = vpack.c.b16 %v847, %v844
    %v884 = vpack.c.b16 %v848, %v845
    %v885 = vpack.c.b16 %v852, %v849
    %v886 = vpack.c.b16 %v853, %v850
    %v887 = vpack.c.b16 %v854, %v851
    %v888 = vpack.c.b16 %v858, %v855
    %v889 = vpack.c.b16 %v859, %v856
    %v890 = vpack.c.b16 %v860, %v857
    %v891 = vpack.c.b16 %v864, %v861
    %v892 = vpack.c.b16 %v865, %v862
    %v893 = vpack.c.b16 %v866, %v863
    %v894 = vpack.c.b16 %v870, %v867
    %v895 = vpack.c.b16 %v871, %v868
    %v896 = vpack.c.b16 %v872, %v869
    %921 = vmatprep.subr.bf16.mxu0 %v895
    %922 = vmatpush1.bf16.msra.mxu0 %v894
    %923 = vmatprep.subr.bf16.mxu0 %v892
    %924 = vmatpush1.bf16.msra.mxu0 %v891
    %925 = vmatprep.subr.bf16.mxu0 %v889
    %926 = vmatpush1.bf16.msra.mxu0 %v888
    %927 = vmatprep.subr.bf16.mxu0 %v886
    %928 = vmatpush1.bf16.msra.mxu0 %v885
    %929 = vmatprep.subr.bf16.mxu0 %v883
    %930 = vmatpush1.bf16.msra.mxu0 %v882
    %931 = vmatprep.subr.bf16.mxu0 %v880
    %932 = vmatpush1.bf16.msra.mxu0 %v879
    %933 = vmatprep.subr.bf16.mxu0 %v877
    %934 = vmatpush1.bf16.msra.mxu0 %v876
    %935 = vmatprep.subr.bf16.mxu0 %v874
    %936 = vmatpush1.bf16.msra.mxu0 %v873
    %937 = vmatprep.subr.bf16.mxu0 0
    %938 = vmatpush2.bf16.msra.mxu0 0
    %939 = vmatprep.subr.bf16.mxu0 0
    %940 = vmatpush2.bf16.msra.mxu0 0
    %941 = vmatprep.subr.bf16.mxu0 0
    %942 = vmatpush2.bf16.msra.mxu0 0
    %943 = vmatprep.subr.bf16.mxu0 0
    %944 = vmatpush2.bf16.msra.mxu0 0
    %945 = vmatprep.subr.bf16.mxu0 0
    %946 = vmatpush2.bf16.msra.mxu0 0
    %947 = vmatprep.subr.bf16.mxu0 0
    %948 = vmatpush2.bf16.msra.mxu0 0
    %949 = vmatprep.subr.bf16.mxu0 0
    %950 = vmatpush2.bf16.msra.mxu0 0
    %951 = vmatprep.subr.bf16.mxu0 0
    %952 = vmatpush2.bf16.msra.mxu0 0
    %953 = vmatprep.mubr.bf16.mxu0 0
    %954 = vmatmul.mubr.bf16.gmra.mxu0 %v753
    %v955 = vpop.f32.mrf.mxu0
    %v956 = vadd.f32 0.0, %v955
    %v957 = vpop.f32.mrf.mxu0
    %v958 = vadd.f32 0.0, %v957
    %v959 = vpop.f32.mrf.mxu0
    %v960 = vadd.f32 0.0, %v959
    %v961 = vpop.f32.mrf.mxu0
    %v962 = vadd.f32 0.0, %v961
    %963 = vmatprep.mubr.bf16.mxu0 0
    %964 = vmatmul.mubr.bf16.gmra.mxu0 %v755
    %v965 = vpop.f32.mrf.mxu0
    %v966 = vadd.f32 0.0, %v965
    %v967 = vpop.f32.mrf.mxu0
    %v968 = vadd.f32 0.0, %v967
    %v969 = vpop.f32.mrf.mxu0
    %v970 = vadd.f32 0.0, %v969
    %v971 = vpop.f32.mrf.mxu0
    %v972 = vadd.f32 0.0, %v971
    %973 = vdwg.mxu0
    %974 = vmatprep.subr.bf16.mxu0 0
    %975 = vmatpush1.bf16.msra.mxu0 %v896
    %976 = vmatprep.subr.bf16.mxu0 0
    %977 = vmatpush1.bf16.msra.mxu0 %v893
    %978 = vmatprep.subr.bf16.mxu0 0
    %979 = vmatpush1.bf16.msra.mxu0 %v890
    %980 = vmatprep.subr.bf16.mxu0 0
    %981 = vmatpush1.bf16.msra.mxu0 %v887
    %982 = vmatprep.subr.bf16.mxu0 0
    %983 = vmatpush1.bf16.msra.mxu0 %v884
    %984 = vmatprep.subr.bf16.mxu0 0
    %985 = vmatpush1.bf16.msra.mxu0 %v881
    %986 = vmatprep.subr.bf16.mxu0 0
    %987 = vmatpush1.bf16.msra.mxu0 %v878
    %988 = vmatprep.subr.bf16.mxu0 0
    %989 = vmatpush1.bf16.msra.mxu0 %v875
    %990 = vmatprep.subr.bf16.mxu0 0
    %991 = vmatpush2.bf16.msra.mxu0 0
    %992 = vmatprep.subr.bf16.mxu0 0
    %993 = vmatpush2.bf16.msra.mxu0 0
    %994 = vmatprep.subr.bf16.mxu0 0
    %995 = vmatpush2.bf16.msra.mxu0 0
    %996 = vmatprep.subr.bf16.mxu0 0
    %997 = vmatpush2.bf16.msra.mxu0 0
    %998 = vmatprep.subr.bf16.mxu0 0
    %999 = vmatpush2.bf16.msra.mxu0 0
    %1000 = vmatprep.subr.bf16.mxu0 0
    %1001 = vmatpush2.bf16.msra.mxu0 0
    %1002 = vmatprep.subr.bf16.mxu0 0
    %1003 = vmatpush2.bf16.msra.mxu0 0
    %1004 = vmatprep.subr.bf16.mxu0 0
    %1005 = vmatpush2.bf16.msra.mxu0 0
    %1006 = vmatprep.mubr.bf16.mxu0 0
    %1007 = vmatmul.mubr.bf16.gmra.mxu0 %v753
    %v1008 = vpop.f32.mrf.mxu0
    %v1009 = vadd.f32 0.0, %v1008
    %v1010 = vpop.f32.mrf.mxu0
    %v1011 = vpop.f32.mrf.mxu0
    %v1012 = vadd.f32 0.0, %v1011
    %v1013 = vpop.f32.mrf.mxu0
    %1014 = vmatprep.mubr.bf16.mxu0 0
    %1015 = vmatmul.mubr.bf16.gmra.mxu0 %v755
    %v1016 = vpop.f32.mrf.mxu0
    %v1017 = vadd.f32 0.0, %v1016
    %v1018 = vpop.f32.mrf.mxu0
    %v1019 = vpop.f32.mrf.mxu0
    %v1020 = vadd.f32 0.0, %v1019
    %v1021 = vpop.f32.mrf.mxu0
    %1022 = vdwg.mxu0
    %v1023 = vld [vmem:[%s3] sm:$0xff]
    %v1024 = vld [vmem:[%s3 + $0x8] sm:$0xff]
    %v1025 = vld [vmem:[%s3 + $0x10] sm:$0xff]
    %v1026 = vld [vmem:[%s3 + $0x18] sm:$0xff]
    %s1027 = scalar_lea.vmem %s3, 32
    %v1028 = vld [vmem:[%s1027] sm:$0xff]
    %v1029 = vld [vmem:[%s1027 + $0x8] sm:$0xff]
    %v1030 = vld [vmem:[%s1027 + $0x10] sm:$0xff]
    %v1031 = vld [vmem:[%s1027 + $0x18] sm:$0xff]
    %v1033 = vsel %vm330, %v1028, 0
    %v1036 = vsel %vm330, %v1029, 0
    %v1039 = vsel %vm330, %v1030, 0
    %v1042 = vsel %vm330, %v1031, 0
    %1044 = vmatprep.subr.mxu0 0.0
    %1045 = vmatpush1.msra.mxu0 0.0
    %1046 = vmatprep.subr.mxu0 0.0
    %1047 = vmatpush1.msra.mxu0 0.0
    %1048 = vmatprep.subr.mxu0 0.0
    %1049 = vmatpush1.msra.mxu0 0.0
    %1050 = vmatprep.subr.mxu0 0.0
    %1051 = vmatpush1.msra.mxu0 0.0
    %1052 = vmatprep.subr.mxu0 0.0
    %1053 = vmatpush1.msra.mxu0 0.0
    %1054 = vmatprep.subr.mxu0 0.0
    %1055 = vmatpush1.msra.mxu0 0.0
    %1056 = vmatprep.subr.mxu0 0.0
    %1057 = vmatpush1.msra.mxu0 0.0
    %1058 = vmatprep.subr.mxu0 0.0
    %1059 = vmatpush1.msra.mxu0 0.0
    %1060 = vmatprep.subr.mxu0 0.0
    %1061 = vmatpush1.msra.mxu0 0.0
    %1062 = vmatprep.subr.mxu0 0.0
    %1063 = vmatpush1.msra.mxu0 0.0
    %1064 = vmatprep.subr.mxu0 0.0
    %1065 = vmatpush1.msra.mxu0 0.0
    %1066 = vmatprep.subr.mxu0 0.0
    %1067 = vmatpush1.msra.mxu0 0.0
    %1068 = vmatprep.subr.mxu0 0.0
    %1069 = vmatpush1.msra.mxu0 %v972
    %1070 = vmatprep.subr.mxu0 0.0
    %1071 = vmatpush1.msra.mxu0 %v968
    %1072 = vmatprep.subr.mxu0 0.0
    %1073 = vmatpush1.msra.mxu0 %v962
    %1074 = vmatprep.subr.mxu0 0.0
    %1075 = vmatpush1.msra.mxu0 %v958
    %1076 = vmatprep.subr.mxu0 0.0
    %1077 = vmatpush2.msra.mxu0 0.0
    %1078 = vmatprep.subr.mxu0 0.0
    %1079 = vmatpush2.msra.mxu0 0.0
    %1080 = vmatprep.subr.mxu0 0.0
    %1081 = vmatpush2.msra.mxu0 0.0
    %1082 = vmatprep.subr.mxu0 0.0
    %1083 = vmatpush2.msra.mxu0 0.0
    %1084 = vmatprep.subr.mxu0 0.0
    %1085 = vmatpush2.msra.mxu0 0.0
    %1086 = vmatprep.subr.mxu0 0.0
    %1087 = vmatpush2.msra.mxu0 0.0
    %1088 = vmatprep.subr.mxu0 0.0
    %1089 = vmatpush2.msra.mxu0 0.0
    %1090 = vmatprep.subr.mxu0 0.0
    %1091 = vmatpush2.msra.mxu0 0.0
    %1092 = vmatprep.subr.mxu0 0.0
    %1093 = vmatpush2.msra.mxu0 0.0
    %1094 = vmatprep.subr.mxu0 0.0
    %1095 = vmatpush2.msra.mxu0 0.0
    %1096 = vmatprep.subr.mxu0 0.0
    %1097 = vmatpush2.msra.mxu0 0.0
    %1098 = vmatprep.subr.mxu0 0.0
    %1099 = vmatpush2.msra.mxu0 0.0
    %1100 = vmatprep.subr.mxu0 0.0
    %1101 = vmatpush2.msra.mxu0 0.0
    %1102 = vmatprep.subr.mxu0 0.0
    %1103 = vmatpush2.msra.mxu0 0.0
    %1104 = vmatprep.subr.mxu0 0.0
    %1105 = vmatpush2.msra.mxu0 0.0
    %1106 = vmatprep.subr.mxu0 0.0
    %1107 = vmatpush2.msra.mxu0 0.0
    %1108 = vmatprep.mubr.f32.mxu0 0.0
    %1109 = vmatmul.mubr.f32.gmra.mxu0 %v1033
    %v1110 = vpop.f32.mrf.mxu0
    %v1111 = vadd.f32 0.0, %v1110
    %v1112 = vpop.f32.mrf.mxu0
    %1113 = vmatprep.mubr.f32.mxu0 0.0
    %1114 = vmatmul.mubr.f32.gmra.mxu0 %v1036
    %v1115 = vpop.f32.mrf.mxu0
    %v1116 = vadd.f32 0.0, %v1115
    %v1117 = vpop.f32.mrf.mxu0
    %1118 = vmatprep.mubr.f32.mxu0 0.0
    %1119 = vmatmul.mubr.f32.gmra.mxu0 %v1039
    %v1120 = vpop.f32.mrf.mxu0
    %v1121 = vadd.f32 0.0, %v1120
    %v1122 = vpop.f32.mrf.mxu0
    %1123 = vmatprep.mubr.f32.mxu0 0.0
    %1124 = vmatmul.mubr.f32.gmra.mxu0 %v1042
    %v1125 = vpop.f32.mrf.mxu0
    %v1126 = vadd.f32 0.0, %v1125
    %v1127 = vpop.f32.mrf.mxu0
    %1128 = vdwg.mxu0
    %v1130 = vsel %vm330, %v1023, 0
    %v1133 = vsel %vm330, %v1024, 0
    %v1136 = vsel %vm330, %v1025, 0
    %v1139 = vsel %vm330, %v1026, 0
    %1141 = vmatprep.subr.mxu0 0.0
    %1142 = vmatpush1.msra.mxu0 0.0
    %1143 = vmatprep.subr.mxu0 0.0
    %1144 = vmatpush1.msra.mxu0 0.0
    %1145 = vmatprep.subr.mxu0 0.0
    %1146 = vmatpush1.msra.mxu0 0.0
    %1147 = vmatprep.subr.mxu0 0.0
    %1148 = vmatpush1.msra.mxu0 0.0
    %1149 = vmatprep.subr.mxu0 0.0
    %1150 = vmatpush1.msra.mxu0 0.0
    %1151 = vmatprep.subr.mxu0 0.0
    %1152 = vmatpush1.msra.mxu0 0.0
    %1153 = vmatprep.subr.mxu0 0.0
    %1154 = vmatpush1.msra.mxu0 0.0
    %1155 = vmatprep.subr.mxu0 0.0
    %1156 = vmatpush1.msra.mxu0 0.0
    %1157 = vmatprep.subr.mxu0 0.0
    %1158 = vmatpush1.msra.mxu0 0.0
    %1159 = vmatprep.subr.mxu0 0.0
    %1160 = vmatpush1.msra.mxu0 0.0
    %1161 = vmatprep.subr.mxu0 0.0
    %1162 = vmatpush1.msra.mxu0 0.0
    %1163 = vmatprep.subr.mxu0 0.0
    %1164 = vmatpush1.msra.mxu0 0.0
    %1165 = vmatprep.subr.mxu0 0.0
    %1166 = vmatpush1.msra.mxu0 %v970
    %1167 = vmatprep.subr.mxu0 0.0
    %1168 = vmatpush1.msra.mxu0 %v966
    %1169 = vmatprep.subr.mxu0 0.0
    %1170 = vmatpush1.msra.mxu0 %v960
    %1171 = vmatprep.subr.mxu0 0.0
    %1172 = vmatpush1.msra.mxu0 %v956
    %1173 = vmatprep.subr.mxu0 0.0
    %1174 = vmatpush2.msra.mxu0 0.0
    %1175 = vmatprep.subr.mxu0 0.0
    %1176 = vmatpush2.msra.mxu0 0.0
    %1177 = vmatprep.subr.mxu0 0.0
    %1178 = vmatpush2.msra.mxu0 0.0
    %1179 = vmatprep.subr.mxu0 0.0
    %1180 = vmatpush2.msra.mxu0 0.0
    %1181 = vmatprep.subr.mxu0 0.0
    %1182 = vmatpush2.msra.mxu0 0.0
    %1183 = vmatprep.subr.mxu0 0.0
    %1184 = vmatpush2.msra.mxu0 0.0
    %1185 = vmatprep.subr.mxu0 0.0
    %1186 = vmatpush2.msra.mxu0 0.0
    %1187 = vmatprep.subr.mxu0 0.0
    %1188 = vmatpush2.msra.mxu0 0.0
    %1189 = vmatprep.subr.mxu0 0.0
    %1190 = vmatpush2.msra.mxu0 0.0
    %1191 = vmatprep.subr.mxu0 0.0
    %1192 = vmatpush2.msra.mxu0 0.0
    %1193 = vmatprep.subr.mxu0 0.0
    %1194 = vmatpush2.msra.mxu0 0.0
    %1195 = vmatprep.subr.mxu0 0.0
    %1196 = vmatpush2.msra.mxu0 0.0
    %1197 = vmatprep.subr.mxu0 0.0
    %1198 = vmatpush2.msra.mxu0 0.0
    %1199 = vmatprep.subr.mxu0 0.0
    %1200 = vmatpush2.msra.mxu0 0.0
    %1201 = vmatprep.subr.mxu0 0.0
    %1202 = vmatpush2.msra.mxu0 0.0
    %1203 = vmatprep.subr.mxu0 0.0
    %1204 = vmatpush2.msra.mxu0 0.0
    %1205 = vmatprep.mubr.f32.mxu0 0.0
    %1206 = vmatmul.mubr.f32.gmra.mxu0 %v1130
    %v1207 = vpop.f32.mrf.mxu0
    %v1208 = vadd.f32 %v1111, %v1207
    %v1209 = vpop.f32.mrf.mxu0
    %1210 = vmatprep.mubr.f32.mxu0 0.0
    %1211 = vmatmul.mubr.f32.gmra.mxu0 %v1133
    %v1212 = vpop.f32.mrf.mxu0
    %v1213 = vadd.f32 %v1116, %v1212
    %v1214 = vpop.f32.mrf.mxu0
    %1215 = vmatprep.mubr.f32.mxu0 0.0
    %1216 = vmatmul.mubr.f32.gmra.mxu0 %v1136
    %v1217 = vpop.f32.mrf.mxu0
    %v1218 = vadd.f32 %v1121, %v1217
    %v1219 = vpop.f32.mrf.mxu0
    %1220 = vmatprep.mubr.f32.mxu0 0.0
    %1221 = vmatmul.mubr.f32.gmra.mxu0 %v1139
    %v1222 = vpop.f32.mrf.mxu0
    %v1223 = vadd.f32 %v1126, %v1222
    %v1224 = vpop.f32.mrf.mxu0
    %1225 = vdwg.mxu0
    %s1226 = scalar_lea.vmem %s3, 64
    %v1227 = vld [vmem:[%s1226] sm:$0xff]
    %v1228 = vld [vmem:[%s1226 + $0x8] sm:$0xff]
    %v1229 = vld [vmem:[%s1226 + $0x10] sm:$0xff]
    %v1230 = vld [vmem:[%s1226 + $0x18] sm:$0xff]
    %v1232 = vsel %vm330, %v1227, 0
    %v1235 = vsel %vm330, %v1228, 0
    %v1238 = vsel %vm330, %v1229, 0
    %v1241 = vsel %vm330, %v1230, 0
    %1243 = vmatprep.subr.mxu0 0.0
    %1244 = vmatpush1.msra.mxu0 0.0
    %1245 = vmatprep.subr.mxu0 0.0
    %1246 = vmatpush1.msra.mxu0 0.0
    %1247 = vmatprep.subr.mxu0 0.0
    %1248 = vmatpush1.msra.mxu0 0.0
    %1249 = vmatprep.subr.mxu0 0.0
    %1250 = vmatpush1.msra.mxu0 0.0
    %1251 = vmatprep.subr.mxu0 0.0
    %1252 = vmatpush1.msra.mxu0 0.0
    %1253 = vmatprep.subr.mxu0 0.0
    %1254 = vmatpush1.msra.mxu0 0.0
    %1255 = vmatprep.subr.mxu0 0.0
    %1256 = vmatpush1.msra.mxu0 0.0
    %1257 = vmatprep.subr.mxu0 0.0
    %1258 = vmatpush1.msra.mxu0 0.0
    %1259 = vmatprep.subr.mxu0 0.0
    %1260 = vmatpush1.msra.mxu0 0.0
    %1261 = vmatprep.subr.mxu0 0.0
    %1262 = vmatpush1.msra.mxu0 0.0
    %1263 = vmatprep.subr.mxu0 0.0
    %1264 = vmatpush1.msra.mxu0 0.0
    %1265 = vmatprep.subr.mxu0 0.0
    %1266 = vmatpush1.msra.mxu0 0.0
    %1267 = vmatprep.subr.mxu0 0.0
    %1268 = vmatpush1.msra.mxu0 %v1020
    %1269 = vmatprep.subr.mxu0 0.0
    %1270 = vmatpush1.msra.mxu0 %v1017
    %1271 = vmatprep.subr.mxu0 0.0
    %1272 = vmatpush1.msra.mxu0 %v1012
    %1273 = vmatprep.subr.mxu0 0.0
    %1274 = vmatpush1.msra.mxu0 %v1009
    %1275 = vmatprep.subr.mxu0 0.0
    %1276 = vmatpush2.msra.mxu0 0.0
    %1277 = vmatprep.subr.mxu0 0.0
    %1278 = vmatpush2.msra.mxu0 0.0
    %1279 = vmatprep.subr.mxu0 0.0
    %1280 = vmatpush2.msra.mxu0 0.0
    %1281 = vmatprep.subr.mxu0 0.0
    %1282 = vmatpush2.msra.mxu0 0.0
    %1283 = vmatprep.subr.mxu0 0.0
    %1284 = vmatpush2.msra.mxu0 0.0
    %1285 = vmatprep.subr.mxu0 0.0
    %1286 = vmatpush2.msra.mxu0 0.0
    %1287 = vmatprep.subr.mxu0 0.0
    %1288 = vmatpush2.msra.mxu0 0.0
    %1289 = vmatprep.subr.mxu0 0.0
    %1290 = vmatpush2.msra.mxu0 0.0
    %1291 = vmatprep.subr.mxu0 0.0
    %1292 = vmatpush2.msra.mxu0 0.0
    %1293 = vmatprep.subr.mxu0 0.0
    %1294 = vmatpush2.msra.mxu0 0.0
    %1295 = vmatprep.subr.mxu0 0.0
    %1296 = vmatpush2.msra.mxu0 0.0
    %1297 = vmatprep.subr.mxu0 0.0
    %1298 = vmatpush2.msra.mxu0 0.0
    %1299 = vmatprep.subr.mxu0 0.0
    %1300 = vmatpush2.msra.mxu0 0.0
    %1301 = vmatprep.subr.mxu0 0.0
    %1302 = vmatpush2.msra.mxu0 0.0
    %1303 = vmatprep.subr.mxu0 0.0
    %1304 = vmatpush2.msra.mxu0 0.0
    %1305 = vmatprep.subr.mxu0 0.0
    %1306 = vmatpush2.msra.mxu0 0.0
    %1307 = vmatprep.mubr.f32.mxu0 0.0
    %1308 = vmatmul.mubr.f32.gmra.mxu0 %v1232
    %v1309 = vpop.f32.mrf.mxu0
    %v1310 = vadd.f32 0.0, %v1309
    %v1311 = vpop.f32.mrf.mxu0
    %1312 = vmatprep.mubr.f32.mxu0 0.0
    %1313 = vmatmul.mubr.f32.gmra.mxu0 %v1235
    %v1314 = vpop.f32.mrf.mxu0
    %v1315 = vadd.f32 0.0, %v1314
    %v1316 = vpop.f32.mrf.mxu0
    %1317 = vmatprep.mubr.f32.mxu0 0.0
    %1318 = vmatmul.mubr.f32.gmra.mxu0 %v1238
    %v1319 = vpop.f32.mrf.mxu0
    %v1320 = vadd.f32 0.0, %v1319
    %v1321 = vpop.f32.mrf.mxu0
    %1322 = vmatprep.mubr.f32.mxu0 0.0
    %1323 = vmatmul.mubr.f32.gmra.mxu0 %v1241
    %v1324 = vpop.f32.mrf.mxu0
    %v1325 = vadd.f32 0.0, %v1324
    %v1326 = vpop.f32.mrf.mxu0
    %1327 = vdwg.mxu0
    %v1328 = vadd.f32 %v1208, %v1310
    %v1329 = vadd.f32 %v1213, %v1315
    %v1330 = vadd.f32 %v1218, %v1320
    %v1331 = vadd.f32 %v1223, %v1325
    %v1332 = vadd.f32 %v1328, %v757
    %v1333 = vadd.f32 %v1329, %v758
    %v1334 = vadd.f32 %v1330, %v759
    %v1335 = vadd.f32 %v1331, %v760
    %1336 = vmatprep.subr.bf16.mxu0 %v895
    %1337 = vmatpush1.bf16.msra.mxu0 %v894
    %1338 = vmatprep.subr.bf16.mxu0 %v892
    %1339 = vmatpush1.bf16.msra.mxu0 %v891
    %1340 = vmatprep.subr.bf16.mxu0 %v889
    %1341 = vmatpush1.bf16.msra.mxu0 %v888
    %1342 = vmatprep.subr.bf16.mxu0 %v886
    %1343 = vmatpush1.bf16.msra.mxu0 %v885
    %1344 = vmatprep.subr.bf16.mxu0 %v883
    %1345 = vmatpush1.bf16.msra.mxu0 %v882
    %1346 = vmatprep.subr.bf16.mxu0 %v880
    %1347 = vmatpush1.bf16.msra.mxu0 %v879
    %1348 = vmatprep.subr.bf16.mxu0 %v877
    %1349 = vmatpush1.bf16.msra.mxu0 %v876
    %1350 = vmatprep.subr.bf16.mxu0 %v874
    %1351 = vmatpush1.bf16.msra.mxu0 %v873
    %1352 = vmatprep.subr.bf16.mxu0 0
    %1353 = vmatpush2.bf16.msra.mxu0 0
    %1354 = vmatprep.subr.bf16.mxu0 0
    %1355 = vmatpush2.bf16.msra.mxu0 0
    %1356 = vmatprep.subr.bf16.mxu0 0
    %1357 = vmatpush2.bf16.msra.mxu0 0
    %1358 = vmatprep.subr.bf16.mxu0 0
    %1359 = vmatpush2.bf16.msra.mxu0 0
    %1360 = vmatprep.subr.bf16.mxu0 0
    %1361 = vmatpush2.bf16.msra.mxu0 0
    %1362 = vmatprep.subr.bf16.mxu0 0
    %1363 = vmatpush2.bf16.msra.mxu0 0
    %1364 = vmatprep.subr.bf16.mxu0 0
    %1365 = vmatpush2.bf16.msra.mxu0 0
    %1366 = vmatprep.subr.bf16.mxu0 0
    %1367 = vmatpush2.bf16.msra.mxu0 0
    %1368 = vmatprep.mubr.bf16.mxu0 0
    %1369 = vmatmul.mubr.bf16.gmra.mxu0 %v754
    %v1370 = vpop.f32.mrf.mxu0
    %v1371 = vadd.f32 0.0, %v1370
    %v1372 = vpop.f32.mrf.mxu0
    %v1373 = vadd.f32 0.0, %v1372
    %v1374 = vpop.f32.mrf.mxu0
    %v1375 = vadd.f32 0.0, %v1374
    %v1376 = vpop.f32.mrf.mxu0
    %v1377 = vadd.f32 0.0, %v1376
    %1378 = vmatprep.mubr.bf16.mxu0 0
    %1379 = vmatmul.mubr.bf16.gmra.mxu0 %v756
    %v1380 = vpop.f32.mrf.mxu0
    %v1381 = vadd.f32 0.0, %v1380
    %v1382 = vpop.f32.mrf.mxu0
    %v1383 = vadd.f32 0.0, %v1382
    %v1384 = vpop.f32.mrf.mxu0
    %v1385 = vadd.f32 0.0, %v1384
    %v1386 = vpop.f32.mrf.mxu0
    %v1387 = vadd.f32 0.0, %v1386
    %1388 = vdwg.mxu0
    %1389 = vmatprep.subr.bf16.mxu0 0
    %1390 = vmatpush1.bf16.msra.mxu0 %v896
    %1391 = vmatprep.subr.bf16.mxu0 0
    %1392 = vmatpush1.bf16.msra.mxu0 %v893
    %1393 = vmatprep.subr.bf16.mxu0 0
    %1394 = vmatpush1.bf16.msra.mxu0 %v890
    %1395 = vmatprep.subr.bf16.mxu0 0
    %1396 = vmatpush1.bf16.msra.mxu0 %v887
    %1397 = vmatprep.subr.bf16.mxu0 0
    %1398 = vmatpush1.bf16.msra.mxu0 %v884
    %1399 = vmatprep.subr.bf16.mxu0 0
    %1400 = vmatpush1.bf16.msra.mxu0 %v881
    %1401 = vmatprep.subr.bf16.mxu0 0
    %1402 = vmatpush1.bf16.msra.mxu0 %v878
    %1403 = vmatprep.subr.bf16.mxu0 0
    %1404 = vmatpush1.bf16.msra.mxu0 %v875
    %1405 = vmatprep.subr.bf16.mxu0 0
    %1406 = vmatpush2.bf16.msra.mxu0 0
    %1407 = vmatprep.subr.bf16.mxu0 0
    %1408 = vmatpush2.bf16.msra.mxu0 0
    %1409 = vmatprep.subr.bf16.mxu0 0
    %1410 = vmatpush2.bf16.msra.mxu0 0
    %1411 = vmatprep.subr.bf16.mxu0 0
    %1412 = vmatpush2.bf16.msra.mxu0 0
    %1413 = vmatprep.subr.bf16.mxu0 0
    %1414 = vmatpush2.bf16.msra.mxu0 0
    %1415 = vmatprep.subr.bf16.mxu0 0
    %1416 = vmatpush2.bf16.msra.mxu0 0
    %1417 = vmatprep.subr.bf16.mxu0 0
    %1418 = vmatpush2.bf16.msra.mxu0 0
    %1419 = vmatprep.subr.bf16.mxu0 0
    %1420 = vmatpush2.bf16.msra.mxu0 0
    %1421 = vmatprep.mubr.bf16.mxu0 0
    %1422 = vmatmul.mubr.bf16.gmra.mxu0 %v754
    %v1423 = vpop.f32.mrf.mxu0
    %v1424 = vadd.f32 0.0, %v1423
    %v1425 = vpop.f32.mrf.mxu0
    %v1426 = vpop.f32.mrf.mxu0
    %v1427 = vadd.f32 0.0, %v1426
    %v1428 = vpop.f32.mrf.mxu0
    %1429 = vmatprep.mubr.bf16.mxu0 0
    %1430 = vmatmul.mubr.bf16.gmra.mxu0 %v756
    %v1431 = vpop.f32.mrf.mxu0
    %v1432 = vadd.f32 0.0, %v1431
    %v1433 = vpop.f32.mrf.mxu0
    %v1434 = vpop.f32.mrf.mxu0
    %v1435 = vadd.f32 0.0, %v1434
    %v1436 = vpop.f32.mrf.mxu0
    %1437 = vdwg.mxu0
    %1438 = vmatprep.subr.mxu0 0.0
    %1439 = vmatpush1.msra.mxu0 0.0
    %1440 = vmatprep.subr.mxu0 0.0
    %1441 = vmatpush1.msra.mxu0 0.0
    %1442 = vmatprep.subr.mxu0 0.0
    %1443 = vmatpush1.msra.mxu0 0.0
    %1444 = vmatprep.subr.mxu0 0.0
    %1445 = vmatpush1.msra.mxu0 0.0
    %1446 = vmatprep.subr.mxu0 0.0
    %1447 = vmatpush1.msra.mxu0 0.0
    %1448 = vmatprep.subr.mxu0 0.0
    %1449 = vmatpush1.msra.mxu0 0.0
    %1450 = vmatprep.subr.mxu0 0.0
    %1451 = vmatpush1.msra.mxu0 0.0
    %1452 = vmatprep.subr.mxu0 0.0
    %1453 = vmatpush1.msra.mxu0 0.0
    %1454 = vmatprep.subr.mxu0 0.0
    %1455 = vmatpush1.msra.mxu0 0.0
    %1456 = vmatprep.subr.mxu0 0.0
    %1457 = vmatpush1.msra.mxu0 0.0
    %1458 = vmatprep.subr.mxu0 0.0
    %1459 = vmatpush1.msra.mxu0 0.0
    %1460 = vmatprep.subr.mxu0 0.0
    %1461 = vmatpush1.msra.mxu0 0.0
    %1462 = vmatprep.subr.mxu0 0.0
    %1463 = vmatpush1.msra.mxu0 %v1387
    %1464 = vmatprep.subr.mxu0 0.0
    %1465 = vmatpush1.msra.mxu0 %v1383
    %1466 = vmatprep.subr.mxu0 0.0
    %1467 = vmatpush1.msra.mxu0 %v1377
    %1468 = vmatprep.subr.mxu0 0.0
    %1469 = vmatpush1.msra.mxu0 %v1373
    %1470 = vmatprep.subr.mxu0 0.0
    %1471 = vmatpush2.msra.mxu0 0.0
    %1472 = vmatprep.subr.mxu0 0.0
    %1473 = vmatpush2.msra.mxu0 0.0
    %1474 = vmatprep.subr.mxu0 0.0
    %1475 = vmatpush2.msra.mxu0 0.0
    %1476 = vmatprep.subr.mxu0 0.0
    %1477 = vmatpush2.msra.mxu0 0.0
    %1478 = vmatprep.subr.mxu0 0.0
    %1479 = vmatpush2.msra.mxu0 0.0
    %1480 = vmatprep.subr.mxu0 0.0
    %1481 = vmatpush2.msra.mxu0 0.0
    %1482 = vmatprep.subr.mxu0 0.0
    %1483 = vmatpush2.msra.mxu0 0.0
    %1484 = vmatprep.subr.mxu0 0.0
    %1485 = vmatpush2.msra.mxu0 0.0
    %1486 = vmatprep.subr.mxu0 0.0
    %1487 = vmatpush2.msra.mxu0 0.0
    %1488 = vmatprep.subr.mxu0 0.0
    %1489 = vmatpush2.msra.mxu0 0.0
    %1490 = vmatprep.subr.mxu0 0.0
    %1491 = vmatpush2.msra.mxu0 0.0
    %1492 = vmatprep.subr.mxu0 0.0
    %1493 = vmatpush2.msra.mxu0 0.0
    %1494 = vmatprep.subr.mxu0 0.0
    %1495 = vmatpush2.msra.mxu0 0.0
    %1496 = vmatprep.subr.mxu0 0.0
    %1497 = vmatpush2.msra.mxu0 0.0
    %1498 = vmatprep.subr.mxu0 0.0
    %1499 = vmatpush2.msra.mxu0 0.0
    %1500 = vmatprep.subr.mxu0 0.0
    %1501 = vmatpush2.msra.mxu0 0.0
    %1502 = vmatprep.mubr.f32.mxu0 0.0
    %1503 = vmatmul.mubr.f32.gmra.mxu0 %v1033
    %v1504 = vpop.f32.mrf.mxu0
    %v1505 = vadd.f32 0.0, %v1504
    %v1506 = vpop.f32.mrf.mxu0
    %1507 = vmatprep.mubr.f32.mxu0 0.0
    %1508 = vmatmul.mubr.f32.gmra.mxu0 %v1036
    %v1509 = vpop.f32.mrf.mxu0
    %v1510 = vadd.f32 0.0, %v1509
    %v1511 = vpop.f32.mrf.mxu0
    %1512 = vmatprep.mubr.f32.mxu0 0.0
    %1513 = vmatmul.mubr.f32.gmra.mxu0 %v1039
    %v1514 = vpop.f32.mrf.mxu0
    %v1515 = vadd.f32 0.0, %v1514
    %v1516 = vpop.f32.mrf.mxu0
    %1517 = vmatprep.mubr.f32.mxu0 0.0
    %1518 = vmatmul.mubr.f32.gmra.mxu0 %v1042
    %v1519 = vpop.f32.mrf.mxu0
    %v1520 = vadd.f32 0.0, %v1519
    %v1521 = vpop.f32.mrf.mxu0
    %1522 = vdwg.mxu0
    %1523 = vmatprep.subr.mxu0 0.0
    %1524 = vmatpush1.msra.mxu0 0.0
    %1525 = vmatprep.subr.mxu0 0.0
    %1526 = vmatpush1.msra.mxu0 0.0
    %1527 = vmatprep.subr.mxu0 0.0
    %1528 = vmatpush1.msra.mxu0 0.0
    %1529 = vmatprep.subr.mxu0 0.0
    %1530 = vmatpush1.msra.mxu0 0.0
    %1531 = vmatprep.subr.mxu0 0.0
    %1532 = vmatpush1.msra.mxu0 0.0
    %1533 = vmatprep.subr.mxu0 0.0
    %1534 = vmatpush1.msra.mxu0 0.0
    %1535 = vmatprep.subr.mxu0 0.0
    %1536 = vmatpush1.msra.mxu0 0.0
    %1537 = vmatprep.subr.mxu0 0.0
    %1538 = vmatpush1.msra.mxu0 0.0
    %1539 = vmatprep.subr.mxu0 0.0
    %1540 = vmatpush1.msra.mxu0 0.0
    %1541 = vmatprep.subr.mxu0 0.0
    %1542 = vmatpush1.msra.mxu0 0.0
    %1543 = vmatprep.subr.mxu0 0.0
    %1544 = vmatpush1.msra.mxu0 0.0
    %1545 = vmatprep.subr.mxu0 0.0
    %1546 = vmatpush1.msra.mxu0 0.0
    %1547 = vmatprep.subr.mxu0 0.0
    %1548 = vmatpush1.msra.mxu0 %v1385
    %1549 = vmatprep.subr.mxu0 0.0
    %1550 = vmatpush1.msra.mxu0 %v1381
    %1551 = vmatprep.subr.mxu0 0.0
    %1552 = vmatpush1.msra.mxu0 %v1375
    %1553 = vmatprep.subr.mxu0 0.0
    %1554 = vmatpush1.msra.mxu0 %v1371
    %1555 = vmatprep.subr.mxu0 0.0
    %1556 = vmatpush2.msra.mxu0 0.0
    %1557 = vmatprep.subr.mxu0 0.0
    %1558 = vmatpush2.msra.mxu0 0.0
    %1559 = vmatprep.subr.mxu0 0.0
    %1560 = vmatpush2.msra.mxu0 0.0
    %1561 = vmatprep.subr.mxu0 0.0
    %1562 = vmatpush2.msra.mxu0 0.0
    %1563 = vmatprep.subr.mxu0 0.0
    %1564 = vmatpush2.msra.mxu0 0.0
    %1565 = vmatprep.subr.mxu0 0.0
    %1566 = vmatpush2.msra.mxu0 0.0
    %1567 = vmatprep.subr.mxu0 0.0
    %1568 = vmatpush2.msra.mxu0 0.0
    %1569 = vmatprep.subr.mxu0 0.0
    %1570 = vmatpush2.msra.mxu0 0.0
    %1571 = vmatprep.subr.mxu0 0.0
    %1572 = vmatpush2.msra.mxu0 0.0
    %1573 = vmatprep.subr.mxu0 0.0
    %1574 = vmatpush2.msra.mxu0 0.0
    %1575 = vmatprep.subr.mxu0 0.0
    %1576 = vmatpush2.msra.mxu0 0.0
    %1577 = vmatprep.subr.mxu0 0.0
    %1578 = vmatpush2.msra.mxu0 0.0
    %1579 = vmatprep.subr.mxu0 0.0
    %1580 = vmatpush2.msra.mxu0 0.0
    %1581 = vmatprep.subr.mxu0 0.0
    %1582 = vmatpush2.msra.mxu0 0.0
    %1583 = vmatprep.subr.mxu0 0.0
    %1584 = vmatpush2.msra.mxu0 0.0
    %1585 = vmatprep.subr.mxu0 0.0
    %1586 = vmatpush2.msra.mxu0 0.0
    %1587 = vmatprep.mubr.f32.mxu0 0.0
    %1588 = vmatmul.mubr.f32.gmra.mxu0 %v1130
    %v1589 = vpop.f32.mrf.mxu0
    %v1590 = vadd.f32 %v1505, %v1589
    %v1591 = vpop.f32.mrf.mxu0
    %1592 = vmatprep.mubr.f32.mxu0 0.0
    %1593 = vmatmul.mubr.f32.gmra.mxu0 %v1133
    %v1594 = vpop.f32.mrf.mxu0
    %v1595 = vadd.f32 %v1510, %v1594
    %v1596 = vpop.f32.mrf.mxu0
    %1597 = vmatprep.mubr.f32.mxu0 0.0
    %1598 = vmatmul.mubr.f32.gmra.mxu0 %v1136
    %v1599 = vpop.f32.mrf.mxu0
    %v1600 = vadd.f32 %v1515, %v1599
    %v1601 = vpop.f32.mrf.mxu0
    %1602 = vmatprep.mubr.f32.mxu0 0.0
    %1603 = vmatmul.mubr.f32.gmra.mxu0 %v1139
    %v1604 = vpop.f32.mrf.mxu0
    %v1605 = vadd.f32 %v1520, %v1604
    %v1606 = vpop.f32.mrf.mxu0
    %1607 = vdwg.mxu0
    %1608 = vmatprep.subr.mxu0 0.0
    %1609 = vmatpush1.msra.mxu0 0.0
    %1610 = vmatprep.subr.mxu0 0.0
    %1611 = vmatpush1.msra.mxu0 0.0
    %1612 = vmatprep.subr.mxu0 0.0
    %1613 = vmatpush1.msra.mxu0 0.0
    %1614 = vmatprep.subr.mxu0 0.0
    %1615 = vmatpush1.msra.mxu0 0.0
    %1616 = vmatprep.subr.mxu0 0.0
    %1617 = vmatpush1.msra.mxu0 0.0
    %1618 = vmatprep.subr.mxu0 0.0
    %1619 = vmatpush1.msra.mxu0 0.0
    %1620 = vmatprep.subr.mxu0 0.0
    %1621 = vmatpush1.msra.mxu0 0.0
    %1622 = vmatprep.subr.mxu0 0.0
    %1623 = vmatpush1.msra.mxu0 0.0
    %1624 = vmatprep.subr.mxu0 0.0
    %1625 = vmatpush1.msra.mxu0 0.0
    %1626 = vmatprep.subr.mxu0 0.0
    %1627 = vmatpush1.msra.mxu0 0.0
    %1628 = vmatprep.subr.mxu0 0.0
    %1629 = vmatpush1.msra.mxu0 0.0
    %1630 = vmatprep.subr.mxu0 0.0
    %1631 = vmatpush1.msra.mxu0 0.0
    %1632 = vmatprep.subr.mxu0 0.0
    %1633 = vmatpush1.msra.mxu0 %v1435
    %1634 = vmatprep.subr.mxu0 0.0
    %1635 = vmatpush1.msra.mxu0 %v1432
    %1636 = vmatprep.subr.mxu0 0.0
    %1637 = vmatpush1.msra.mxu0 %v1427
    %1638 = vmatprep.subr.mxu0 0.0
    %1639 = vmatpush1.msra.mxu0 %v1424
    %1640 = vmatprep.subr.mxu0 0.0
    %1641 = vmatpush2.msra.mxu0 0.0
    %1642 = vmatprep.subr.mxu0 0.0
    %1643 = vmatpush2.msra.mxu0 0.0
    %1644 = vmatprep.subr.mxu0 0.0
    %1645 = vmatpush2.msra.mxu0 0.0
    %1646 = vmatprep.subr.mxu0 0.0
    %1647 = vmatpush2.msra.mxu0 0.0
    %1648 = vmatprep.subr.mxu0 0.0
    %1649 = vmatpush2.msra.mxu0 0.0
    %1650 = vmatprep.subr.mxu0 0.0
    %1651 = vmatpush2.msra.mxu0 0.0
    %1652 = vmatprep.subr.mxu0 0.0
    %1653 = vmatpush2.msra.mxu0 0.0
    %1654 = vmatprep.subr.mxu0 0.0
    %1655 = vmatpush2.msra.mxu0 0.0
    %1656 = vmatprep.subr.mxu0 0.0
    %1657 = vmatpush2.msra.mxu0 0.0
    %1658 = vmatprep.subr.mxu0 0.0
    %1659 = vmatpush2.msra.mxu0 0.0
    %1660 = vmatprep.subr.mxu0 0.0
    %1661 = vmatpush2.msra.mxu0 0.0
    %1662 = vmatprep.subr.mxu0 0.0
    %1663 = vmatpush2.msra.mxu0 0.0
    %1664 = vmatprep.subr.mxu0 0.0
    %1665 = vmatpush2.msra.mxu0 0.0
    %1666 = vmatprep.subr.mxu0 0.0
    %1667 = vmatpush2.msra.mxu0 0.0
    %1668 = vmatprep.subr.mxu0 0.0
    %1669 = vmatpush2.msra.mxu0 0.0
    %1670 = vmatprep.subr.mxu0 0.0
    %1671 = vmatpush2.msra.mxu0 0.0
    %1672 = vmatprep.mubr.f32.mxu0 0.0
    %1673 = vmatmul.mubr.f32.gmra.mxu0 %v1232
    %v1674 = vpop.f32.mrf.mxu0
    %v1675 = vadd.f32 0.0, %v1674
    %v1676 = vpop.f32.mrf.mxu0
    %1677 = vmatprep.mubr.f32.mxu0 0.0
    %1678 = vmatmul.mubr.f32.gmra.mxu0 %v1235
    %v1679 = vpop.f32.mrf.mxu0
    %v1680 = vadd.f32 0.0, %v1679
    %v1681 = vpop.f32.mrf.mxu0
    %1682 = vmatprep.mubr.f32.mxu0 0.0
    %1683 = vmatmul.mubr.f32.gmra.mxu0 %v1238
    %v1684 = vpop.f32.mrf.mxu0
    %v1685 = vadd.f32 0.0, %v1684
    %v1686 = vpop.f32.mrf.mxu0
    %1687 = vmatprep.mubr.f32.mxu0 0.0
    %1688 = vmatmul.mubr.f32.gmra.mxu0 %v1241
    %v1689 = vpop.f32.mrf.mxu0
    %v1690 = vadd.f32 0.0, %v1689
    %v1691 = vpop.f32.mrf.mxu0
    %1692 = vdwg.mxu0
    %v1693 = vadd.f32 %v1590, %v1675
    %v1694 = vadd.f32 %v1595, %v1680
    %v1695 = vadd.f32 %v1600, %v1685
    %v1696 = vadd.f32 %v1605, %v1690
    %v1697 = vadd.f32 %v1693, %v757
    %v1698 = vadd.f32 %v1694, %v758
    %v1699 = vadd.f32 %v1695, %v759
    %v1700 = vadd.f32 %v1696, %v760
    %v1701 = vld [vmem:[#allocation5] sm:$0xff]
    %v1702 = vld [vmem:[#allocation5 + $0x8] sm:$0xff]
    %v1703 = vld [vmem:[#allocation5 + $0x10] sm:$0xff]
    %v1704 = vld [vmem:[#allocation5 + $0x18] sm:$0xff]
    %v1705 = vmul.f32 %v669, %v1332
    %v1706 = vmul.f32 %v670, %v1697
    %v1707 = vmul.f32 %v671, %v1333
    %v1708 = vmul.f32 %v672, %v1698
    %v1709 = vmul.f32 %v673, %v1334
    %v1710 = vmul.f32 %v674, %v1699
    %v1711 = vmul.f32 %v675, %v1335
    %v1712 = vmul.f32 %v676, %v1700
    %v1713 = vld [vmem:[%s7] sm:$0xff]
    %v1714 = vld [vmem:[%s7 + $0x8] sm:$0xff]
    %v1715 = vld [vmem:[%s7 + $0x10] sm:$0xff]
    %v1716 = vld [vmem:[%s7 + $0x18] sm:$0xff]
    %1718 = vset.pattern.permute.xlu0 0
    %1719 = vperm.xlu0 %1718, %v1713
    %v1720 = vpop.permute.xlu0 %1719
    %1723 = vset.pattern.permute.xlu0 0
    %1724 = vperm.xlu0 %1723, %v1714
    %v1725 = vpop.permute.xlu0 %1724
    %1728 = vset.pattern.permute.xlu0 0
    %1729 = vperm.xlu0 %1728, %v1715
    %v1730 = vpop.permute.xlu0 %1729
    %1733 = vset.pattern.permute.xlu0 0
    %1734 = vperm.xlu0 %1733, %v1716
    %v1735 = vpop.permute.xlu0 %1734
    %v1738 = vsel %vm330, %v1701, 0
    %v1741 = vsel %vm330, %v1702, 0
    %v1744 = vsel %vm330, %v1703, 0
    %v1747 = vsel %vm330, %v1704, 0
    %1749 = vmatprep.subr.mxu0 0.0
    %1750 = vmatpush1.msra.mxu0 0.0
    %1751 = vmatprep.subr.mxu0 0.0
    %1752 = vmatpush1.msra.mxu0 0.0
    %1753 = vmatprep.subr.mxu0 0.0
    %1754 = vmatpush1.msra.mxu0 0.0
    %1755 = vmatprep.subr.mxu0 0.0
    %1756 = vmatpush1.msra.mxu0 0.0
    %1757 = vmatprep.subr.mxu0 0.0
    %1758 = vmatpush1.msra.mxu0 0.0
    %1759 = vmatprep.subr.mxu0 0.0
    %1760 = vmatpush1.msra.mxu0 0.0
    %1761 = vmatprep.subr.mxu0 0.0
    %1762 = vmatpush1.msra.mxu0 0.0
    %1763 = vmatprep.subr.mxu0 0.0
    %1764 = vmatpush1.msra.mxu0 0.0
    %1765 = vmatprep.subr.mxu0 0.0
    %1766 = vmatpush1.msra.mxu0 0.0
    %1767 = vmatprep.subr.mxu0 0.0
    %1768 = vmatpush1.msra.mxu0 0.0
    %1769 = vmatprep.subr.mxu0 0.0
    %1770 = vmatpush1.msra.mxu0 0.0
    %1771 = vmatprep.subr.mxu0 0.0
    %1772 = vmatpush1.msra.mxu0 0.0
    %1773 = vmatprep.subr.mxu0 %v1712
    %1774 = vmatpush1.msra.mxu0 %v1711
    %1775 = vmatprep.subr.mxu0 %v1710
    %1776 = vmatpush1.msra.mxu0 %v1709
    %1777 = vmatprep.subr.mxu0 %v1708
    %1778 = vmatpush1.msra.mxu0 %v1707
    %1779 = vmatprep.subr.mxu0 %v1706
    %1780 = vmatpush1.msra.mxu0 %v1705
    %1781 = vmatprep.subr.mxu0 0.0
    %1782 = vmatpush2.msra.mxu0 0.0
    %1783 = vmatprep.subr.mxu0 0.0
    %1784 = vmatpush2.msra.mxu0 0.0
    %1785 = vmatprep.subr.mxu0 0.0
    %1786 = vmatpush2.msra.mxu0 0.0
    %1787 = vmatprep.subr.mxu0 0.0
    %1788 = vmatpush2.msra.mxu0 0.0
    %1789 = vmatprep.subr.mxu0 0.0
    %1790 = vmatpush2.msra.mxu0 0.0
    %1791 = vmatprep.subr.mxu0 0.0
    %1792 = vmatpush2.msra.mxu0 0.0
    %1793 = vmatprep.subr.mxu0 0.0
    %1794 = vmatpush2.msra.mxu0 0.0
    %1795 = vmatprep.subr.mxu0 0.0
    %1796 = vmatpush2.msra.mxu0 0.0
    %1797 = vmatprep.subr.mxu0 0.0
    %1798 = vmatpush2.msra.mxu0 0.0
    %1799 = vmatprep.subr.mxu0 0.0
    %1800 = vmatpush2.msra.mxu0 0.0
    %1801 = vmatprep.subr.mxu0 0.0
    %1802 = vmatpush2.msra.mxu0 0.0
    %1803 = vmatprep.subr.mxu0 0.0
    %1804 = vmatpush2.msra.mxu0 0.0
    %1805 = vmatprep.subr.mxu0 0.0
    %1806 = vmatpush2.msra.mxu0 0.0
    %1807 = vmatprep.subr.mxu0 0.0
    %1808 = vmatpush2.msra.mxu0 0.0
    %1809 = vmatprep.subr.mxu0 0.0
    %1810 = vmatpush2.msra.mxu0 0.0
    %1811 = vmatprep.subr.mxu0 0.0
    %1812 = vmatpush2.msra.mxu0 0.0
    %1813 = vmatprep.mubr.f32.mxu0 0.0
    %1814 = vmatmul.mubr.f32.gmra.mxu0 %v1738
    %v1815 = vpop.f32.mrf.mxu0
    %v1816 = vadd.f32 %v1720, %v1815
    %v1817 = vpop.f32.mrf.mxu0
    %v1818 = vadd.f32 %v1720, %v1817
    %1819 = vmatprep.mubr.f32.mxu0 0.0
    %1820 = vmatmul.mubr.f32.gmra.mxu0 %v1741
    %v1821 = vpop.f32.mrf.mxu0
    %v1822 = vadd.f32 %v1725, %v1821
    %v1823 = vpop.f32.mrf.mxu0
    %v1824 = vadd.f32 %v1725, %v1823
    %1825 = vmatprep.mubr.f32.mxu0 0.0
    %1826 = vmatmul.mubr.f32.gmra.mxu0 %v1744
    %v1827 = vpop.f32.mrf.mxu0
    %v1828 = vadd.f32 %v1730, %v1827
    %v1829 = vpop.f32.mrf.mxu0
    %v1830 = vadd.f32 %v1730, %v1829
    %1831 = vmatprep.mubr.f32.mxu0 0.0
    %1832 = vmatmul.mubr.f32.gmra.mxu0 %v1747
    %v1833 = vpop.f32.mrf.mxu0
    %v1834 = vadd.f32 %v1735, %v1833
    %v1835 = vpop.f32.mrf.mxu0
    %v1836 = vadd.f32 %v1735, %v1835
    %1837 = vdwg.mxu0
    %v1838 = vmax.f32 %v1816, 0.0
    %v1839 = vmax.f32 %v1818, 0.0
    %v1840 = vmax.f32 %v1822, 0.0
    %v1841 = vmax.f32 %v1824, 0.0
    %v1842 = vmax.f32 %v1828, 0.0
    %v1843 = vmax.f32 %v1830, 0.0
    %v1844 = vmax.f32 %v1834, 0.0
    %v1845 = vmax.f32 %v1836, 0.0
    %v1846 = vadd.f32 %v1838, %v78
    %v1847 = vadd.f32 %v1839, %v79
    %v1848 = vadd.f32 %v1840, %v80
    %v1849 = vadd.f32 %v1841, %v81
    %v1850 = vadd.f32 %v1842, %v82
    %v1851 = vadd.f32 %v1843, %v83
    %v1852 = vadd.f32 %v1844, %v84
    %v1853 = vadd.f32 %v1845, %v85
    %v1854 = vmax.f32 %v521, 0.0
    %v1855 = vmax.f32 %v523, 0.0
    %v1856 = vmax.f32 %v527, 0.0
    %v1857 = vmax.f32 %v529, 0.0
    %v1858 = vmax.f32 %v533, 0.0
    %v1859 = vmax.f32 %v535, 0.0
    %v1860 = vmax.f32 %v539, 0.0
    %v1861 = vmax.f32 %v541, 0.0
    %v1862 = vmax.f32 %v545, 0.0
    %v1863 = vmax.f32 %v547, 0.0
    %v1864 = vmax.f32 %v551, 0.0
    %v1865 = vmax.f32 %v553, 0.0
    %v1866 = vmax.f32 %v557, 0.0
    %v1867 = vmax.f32 %v559, 0.0
    %v1868 = vmax.f32 %v563, 0.0
    %v1869 = vmax.f32 %v565, 0.0
    %v1870 = vlaneseq
    %v1871 = vshrl.u32 %v1870, 7
    %v1872 = vsub.s32 2, %v1871
    %v1873 = vrot.slane %v617, %v1872
    %v1874 = vlaneseq
    %v1875 = vshrl.u32 %v1874, 7
    %v1876 = vsub.s32 2, %v1875
    %v1877 = vrot.slane %v619, %v1876
    %v1878 = vmul.f32 %v1854, %v1873
    %v1879 = vmul.f32 %v1855, %v1877
    %v1880 = vmul.f32 %v1856, %v1873
    %v1881 = vmul.f32 %v1857, %v1877
    %v1882 = vmul.f32 %v1858, %v1873
    %v1883 = vmul.f32 %v1859, %v1877
    %v1884 = vmul.f32 %v1860, %v1873
    %v1885 = vmul.f32 %v1861, %v1877
    %v1886 = vmul.f32 %v1862, %v1873
    %v1887 = vmul.f32 %v1863, %v1877
    %v1888 = vmul.f32 %v1864, %v1873
    %v1889 = vmul.f32 %v1865, %v1877
    %v1890 = vmul.f32 %v1866, %v1873
    %v1891 = vmul.f32 %v1867, %v1877
    %v1892 = vmul.f32 %v1868, %v1873
    %v1893 = vmul.f32 %v1869, %v1877
    %v1894 = vlaneseq
    %v1895 = vshrl.u32 %v1894, 7
    %v1896 = vsub.s32 3, %v1895
    %v1897 = vrot.slane %v617, %v1896
    %v1898 = vlaneseq
    %v1899 = vshrl.u32 %v1898, 7
    %v1900 = vsub.s32 3, %v1899
    %v1901 = vrot.slane %v619, %v1900
    %v1902 = vadd.f32 %v1878, %v1897
    %v1903 = vadd.f32 %v1879, %v1901
    %v1904 = vadd.f32 %v1880, %v1897
    %v1905 = vadd.f32 %v1881, %v1901
    %v1906 = vadd.f32 %v1882, %v1897
    %v1907 = vadd.f32 %v1883, %v1901
    %v1908 = vadd.f32 %v1884, %v1897
    %v1909 = vadd.f32 %v1885, %v1901
    %v1910 = vadd.f32 %v1886, %v1897
    %v1911 = vadd.f32 %v1887, %v1901
    %v1912 = vadd.f32 %v1888, %v1897
    %v1913 = vadd.f32 %v1889, %v1901
    %v1914 = vadd.f32 %v1890, %v1897
    %v1915 = vadd.f32 %v1891, %v1901
    %v1916 = vadd.f32 %v1892, %v1897
    %v1917 = vadd.f32 %v1893, %v1901
    %v1918 = vadd.f32 %v1910, %v1912
    %v1919 = vadd.f32 %v1918, %v1914
    %v1920 = vadd.f32 %v1919, %v1916
    %v1921 = vrot.slane %v1920, 4
    %v1922 = vadd.f32 %v1920, %v1921
    %v1923 = vrot.slane %v1922, 2
    %v1924 = vadd.f32 %v1922, %v1923
    %v1925 = vrot.slane %v1924, 1
    %v1926 = vadd.f32 %v1924, %v1925
    %v1927 = vadd.f32 %v1911, %v1913
    %v1928 = vadd.f32 %v1927, %v1915
    %v1929 = vadd.f32 %v1928, %v1917
    %v1930 = vrot.slane %v1929, 4
    %v1931 = vadd.f32 %v1929, %v1930
    %v1932 = vrot.slane %v1931, 2
    %v1933 = vadd.f32 %v1931, %v1932
    %v1934 = vrot.slane %v1933, 1
    %v1935 = vadd.f32 %v1933, %v1934
    %v1936 = vmul.f32 %v1926, %v104
    %v1937 = vmul.f32 %v1935, %v104
    %v1938 = vsub.f32 %v1910, %v1936
    %v1939 = vsub.f32 %v1911, %v1937
    %v1940 = vsub.f32 %v1912, %v1936
    %v1941 = vsub.f32 %v1913, %v1937
    %v1942 = vsub.f32 %v1914, %v1936
    %v1943 = vsub.f32 %v1915, %v1937
    %v1944 = vsub.f32 %v1916, %v1936
    %v1945 = vsub.f32 %v1917, %v1937
    %v1946 = vmul.f32 %v1938, %v1938
    %v1947 = vmul.f32 %v1939, %v1939
    %v1948 = vmul.f32 %v1940, %v1940
    %v1949 = vmul.f32 %v1941, %v1941
    %v1950 = vmul.f32 %v1942, %v1942
    %v1951 = vmul.f32 %v1943, %v1943
    %v1952 = vmul.f32 %v1944, %v1944
    %v1953 = vmul.f32 %v1945, %v1945
    %v1954 = vadd.f32 %v1946, %v1948
    %v1955 = vadd.f32 %v1954, %v1950
    %v1956 = vadd.f32 %v1955, %v1952
    %v1957 = vrot.slane %v1956, 4
    %v1958 = vadd.f32 %v1956, %v1957
    %v1959 = vrot.slane %v1958, 2
    %v1960 = vadd.f32 %v1958, %v1959
    %v1961 = vrot.slane %v1960, 1
    %v1962 = vadd.f32 %v1960, %v1961
    %v1963 = vadd.f32 %v1947, %v1949
    %v1964 = vadd.f32 %v1963, %v1951
    %v1965 = vadd.f32 %v1964, %v1953
    %v1966 = vrot.slane %v1965, 4
    %v1967 = vadd.f32 %v1965, %v1966
    %v1968 = vrot.slane %v1967, 2
    %v1969 = vadd.f32 %v1967, %v1968
    %v1970 = vrot.slane %v1969, 1
    %v1971 = vadd.f32 %v1969, %v1970
    %v1972 = vmul.f32 %v1962, %v104
    %v1973 = vmul.f32 %v1971, %v104
    %v1974 = vadd.f32 %v1972, 1e-05
    %v1975 = vadd.f32 %v1973, 1e-05
    %v1976 = vrsqrt.pop %v1974
    %v1977 = vrsqrt.pop %v1975
    %v1978 = vmul.f32 %v1938, %v1976
    %v1979 = vmul.f32 %v1939, %v1977
    %v1980 = vmul.f32 %v1940, %v1976
    %v1981 = vmul.f32 %v1941, %v1977
    %v1982 = vmul.f32 %v1942, %v1976
    %v1983 = vmul.f32 %v1943, %v1977
    %v1984 = vmul.f32 %v1944, %v1976
    %v1985 = vmul.f32 %v1945, %v1977
    %v1986 = vpack.c.bf16 %v1980, %v1978
    %v1987 = vpack.c.bf16 %v1981, %v1979
    %v1988 = vpack.c.bf16 %v1984, %v1982
    %v1989 = vpack.c.bf16 %v1985, %v1983
    %s1990 = scalar_lea.vmem %s5, 32
    %v1991 = vld [vmem:[%s1990] sm:$0xff]
    %v1992 = vld [vmem:[%s1990 + $0x8] sm:$0xff]
    %v1993 = vld [vmem:[%s1990 + $0x10] sm:$0xff]
    %v1994 = vld [vmem:[%s1990 + $0x18] sm:$0xff]
    %v1995 = vld [vmem:[%s4 + $0xc] sm:$0xf]
    %v1996 = vld [vmem:[%s4 + $0x20] sm:$0xf]
    %v1997 = vld [vmem:[%s4 + $0x34] sm:$0xf]
    %v1998 = vld [vmem:[%s4 + $0x48] sm:$0xf]
    %v1999 = vld [vmem:[%s4 + $0x5c] sm:$0xf]
    %v2000 = vld [vmem:[%s4 + $0x70] sm:$0xf]
    %v2001 = vld [vmem:[%s4 + $0x84] sm:$0xf]
    %v2002 = vld [vmem:[%s4 + $0x98] sm:$0xf]
    %v2003 = vld [vmem:[%s4 + $0xac] sm:$0xf]
    %v2004 = vld [vmem:[%s4 + $0xc0] sm:$0xf]
    %v2005 = vld [vmem:[%s4 + $0xd4] sm:$0xf]
    %v2006 = vld [vmem:[%s4 + $0xe8] sm:$0xf]
    %v2007 = vld [vmem:[%s4 + $0xfc] sm:$0xf]
    %v2008 = vld [vmem:[%s4 + $0x110] sm:$0xf]
    %v2009 = vld [vmem:[%s4 + $0x124] sm:$0xf]
    %v2010 = vld [vmem:[%s4 + $0x138] sm:$0xf]
    %v2027 = vunpack.c.l.b16 %v1995
    %v2028 = vunpack.c.l.b16 %v1996
    %v2029 = vunpack.c.l.b16 %v1997
    %v2030 = vunpack.c.l.b16 %v1998
    %v2031 = vunpack.c.l.b16 %v1999
    %v2032 = vunpack.c.l.b16 %v2000
    %v2033 = vunpack.c.l.b16 %v2001
    %v2034 = vunpack.c.l.b16 %v2002
    %v2035 = vunpack.c.l.b16 %v2003
    %v2036 = vunpack.c.l.b16 %v2004
    %v2037 = vunpack.c.l.b16 %v2005
    %v2038 = vunpack.c.l.b16 %v2006
    %v2039 = vunpack.c.l.b16 %v2007
    %v2040 = vunpack.c.l.b16 %v2008
    %v2041 = vunpack.c.l.b16 %v2009
    %v2042 = vunpack.c.l.b16 %v2010
    %v2043 = vpack.c.b16 %v2028, %v2027
    %v2044 = vpack.c.b16 %v2030, %v2029
    %v2045 = vpack.c.b16 %v2032, %v2031
    %v2046 = vpack.c.b16 %v2034, %v2033
    %v2047 = vpack.c.b16 %v2036, %v2035
    %v2048 = vpack.c.b16 %v2038, %v2037
    %v2049 = vpack.c.b16 %v2040, %v2039
    %v2050 = vpack.c.b16 %v2042, %v2041
    %2059 = vmatprep.subr.bf16.mxu0 0
    %2060 = vmatpush1.bf16.msra.mxu0 %v2050
    %2061 = vmatprep.subr.bf16.mxu0 0
    %2062 = vmatpush1.bf16.msra.mxu0 %v2049
    %2063 = vmatprep.subr.bf16.mxu0 0
    %2064 = vmatpush1.bf16.msra.mxu0 %v2048
    %2065 = vmatprep.subr.bf16.mxu0 0
    %2066 = vmatpush1.bf16.msra.mxu0 %v2047
    %2067 = vmatprep.subr.bf16.mxu0 0
    %2068 = vmatpush1.bf16.msra.mxu0 %v2046
    %2069 = vmatprep.subr.bf16.mxu0 0
    %2070 = vmatpush1.bf16.msra.mxu0 %v2045
    %2071 = vmatprep.subr.bf16.mxu0 0
    %2072 = vmatpush1.bf16.msra.mxu0 %v2044
    %2073 = vmatprep.subr.bf16.mxu0 0
    %2074 = vmatpush1.bf16.msra.mxu0 %v2043
    %2075 = vmatprep.subr.bf16.mxu0 0
    %2076 = vmatpush2.bf16.msra.mxu0 0
    %2077 = vmatprep.subr.bf16.mxu0 0
    %2078 = vmatpush2.bf16.msra.mxu0 0
    %2079 = vmatprep.subr.bf16.mxu0 0
    %2080 = vmatpush2.bf16.msra.mxu0 0
    %2081 = vmatprep.subr.bf16.mxu0 0
    %2082 = vmatpush2.bf16.msra.mxu0 0
    %2083 = vmatprep.subr.bf16.mxu0 0
    %2084 = vmatpush2.bf16.msra.mxu0 0
    %2085 = vmatprep.subr.bf16.mxu0 0
    %2086 = vmatpush2.bf16.msra.mxu0 0
    %2087 = vmatprep.subr.bf16.mxu0 0
    %2088 = vmatpush2.bf16.msra.mxu0 0
    %2089 = vmatprep.subr.bf16.mxu0 0
    %2090 = vmatpush2.bf16.msra.mxu0 0
    %2091 = vmatprep.mubr.bf16.mxu0 0
    %2092 = vmatmul.mubr.bf16.gmra.mxu0 %v1986
    %v2093 = vpop.f32.mrf.mxu0
    %v2094 = vadd.f32 0.0, %v2093
    %v2095 = vpop.f32.mrf.mxu0
    %v2096 = vpop.f32.mrf.mxu0
    %v2097 = vadd.f32 0.0, %v2096
    %v2098 = vpop.f32.mrf.mxu0
    %2099 = vmatprep.mubr.bf16.mxu0 0
    %2100 = vmatmul.mubr.bf16.gmra.mxu0 %v1988
    %v2101 = vpop.f32.mrf.mxu0
    %v2102 = vadd.f32 0.0, %v2101
    %v2103 = vpop.f32.mrf.mxu0
    %v2104 = vpop.f32.mrf.mxu0
    %v2105 = vadd.f32 0.0, %v2104
    %v2106 = vpop.f32.mrf.mxu0
    %2107 = vdwg.mxu0
    %s2108 = scalar_lea.vmem %s3, 96
    %v2109 = vld [vmem:[%s2108] sm:$0xff]
    %v2110 = vld [vmem:[%s2108 + $0x8] sm:$0xff]
    %v2111 = vld [vmem:[%s2108 + $0x10] sm:$0xff]
    %v2112 = vld [vmem:[%s2108 + $0x18] sm:$0xff]
    %v2114 = vsel %vm330, %v2109, 0
    %v2117 = vsel %vm330, %v2110, 0
    %v2120 = vsel %vm330, %v2111, 0
    %v2123 = vsel %vm330, %v2112, 0
    %2125 = vmatprep.subr.mxu0 0.0
    %2126 = vmatpush1.msra.mxu0 0.0
    %2127 = vmatprep.subr.mxu0 0.0
    %2128 = vmatpush1.msra.mxu0 0.0
    %2129 = vmatprep.subr.mxu0 0.0
    %2130 = vmatpush1.msra.mxu0 0.0
    %2131 = vmatprep.subr.mxu0 0.0
    %2132 = vmatpush1.msra.mxu0 0.0
    %2133 = vmatprep.subr.mxu0 0.0
    %2134 = vmatpush1.msra.mxu0 0.0
    %2135 = vmatprep.subr.mxu0 0.0
    %2136 = vmatpush1.msra.mxu0 0.0
    %2137 = vmatprep.subr.mxu0 0.0
    %2138 = vmatpush1.msra.mxu0 0.0
    %2139 = vmatprep.subr.mxu0 0.0
    %2140 = vmatpush1.msra.mxu0 0.0
    %2141 = vmatprep.subr.mxu0 0.0
    %2142 = vmatpush1.msra.mxu0 0.0
    %2143 = vmatprep.subr.mxu0 0.0
    %2144 = vmatpush1.msra.mxu0 0.0
    %2145 = vmatprep.subr.mxu0 0.0
    %2146 = vmatpush1.msra.mxu0 0.0
    %2147 = vmatprep.subr.mxu0 0.0
    %2148 = vmatpush1.msra.mxu0 0.0
    %2149 = vmatprep.subr.mxu0 0.0
    %2150 = vmatpush1.msra.mxu0 %v2105
    %2151 = vmatprep.subr.mxu0 0.0
    %2152 = vmatpush1.msra.mxu0 %v2102
    %2153 = vmatprep.subr.mxu0 0.0
    %2154 = vmatpush1.msra.mxu0 %v2097
    %2155 = vmatprep.subr.mxu0 0.0
    %2156 = vmatpush1.msra.mxu0 %v2094
    %2157 = vmatprep.subr.mxu0 0.0
    %2158 = vmatpush2.msra.mxu0 0.0
    %2159 = vmatprep.subr.mxu0 0.0
    %2160 = vmatpush2.msra.mxu0 0.0
    %2161 = vmatprep.subr.mxu0 0.0
    %2162 = vmatpush2.msra.mxu0 0.0
    %2163 = vmatprep.subr.mxu0 0.0
    %2164 = vmatpush2.msra.mxu0 0.0
    %2165 = vmatprep.subr.mxu0 0.0
    %2166 = vmatpush2.msra.mxu0 0.0
    %2167 = vmatprep.subr.mxu0 0.0
    %2168 = vmatpush2.msra.mxu0 0.0
    %2169 = vmatprep.subr.mxu0 0.0
    %2170 = vmatpush2.msra.mxu0 0.0
    %2171 = vmatprep.subr.mxu0 0.0
    %2172 = vmatpush2.msra.mxu0 0.0
    %2173 = vmatprep.subr.mxu0 0.0
    %2174 = vmatpush2.msra.mxu0 0.0
    %2175 = vmatprep.subr.mxu0 0.0
    %2176 = vmatpush2.msra.mxu0 0.0
    %2177 = vmatprep.subr.mxu0 0.0
    %2178 = vmatpush2.msra.mxu0 0.0
    %2179 = vmatprep.subr.mxu0 0.0
    %2180 = vmatpush2.msra.mxu0 0.0
    %2181 = vmatprep.subr.mxu0 0.0
    %2182 = vmatpush2.msra.mxu0 0.0
    %2183 = vmatprep.subr.mxu0 0.0
    %2184 = vmatpush2.msra.mxu0 0.0
    %2185 = vmatprep.subr.mxu0 0.0
    %2186 = vmatpush2.msra.mxu0 0.0
    %2187 = vmatprep.subr.mxu0 0.0
    %2188 = vmatpush2.msra.mxu0 0.0
    %2189 = vmatprep.mubr.f32.mxu0 0.0
    %2190 = vmatmul.mubr.f32.gmra.mxu0 %v2114
    %v2191 = vpop.f32.mrf.mxu0
    %v2192 = vadd.f32 %v1991, %v2191
    %v2193 = vpop.f32.mrf.mxu0
    %2194 = vmatprep.mubr.f32.mxu0 0.0
    %2195 = vmatmul.mubr.f32.gmra.mxu0 %v2117
    %v2196 = vpop.f32.mrf.mxu0
    %v2197 = vadd.f32 %v1992, %v2196
    %v2198 = vpop.f32.mrf.mxu0
    %2199 = vmatprep.mubr.f32.mxu0 0.0
    %2200 = vmatmul.mubr.f32.gmra.mxu0 %v2120
    %v2201 = vpop.f32.mrf.mxu0
    %v2202 = vadd.f32 %v1993, %v2201
    %v2203 = vpop.f32.mrf.mxu0
    %2204 = vmatprep.mubr.f32.mxu0 0.0
    %2205 = vmatmul.mubr.f32.gmra.mxu0 %v2123
    %v2206 = vpop.f32.mrf.mxu0
    %v2207 = vadd.f32 %v1994, %v2206
    %v2208 = vpop.f32.mrf.mxu0
    %2209 = vdwg.mxu0
    %2210 = vmatprep.subr.bf16.mxu0 0
    %2211 = vmatpush1.bf16.msra.mxu0 %v2050
    %2212 = vmatprep.subr.bf16.mxu0 0
    %2213 = vmatpush1.bf16.msra.mxu0 %v2049
    %2214 = vmatprep.subr.bf16.mxu0 0
    %2215 = vmatpush1.bf16.msra.mxu0 %v2048
    %2216 = vmatprep.subr.bf16.mxu0 0
    %2217 = vmatpush1.bf16.msra.mxu0 %v2047
    %2218 = vmatprep.subr.bf16.mxu0 0
    %2219 = vmatpush1.bf16.msra.mxu0 %v2046
    %2220 = vmatprep.subr.bf16.mxu0 0
    %2221 = vmatpush1.bf16.msra.mxu0 %v2045
    %2222 = vmatprep.subr.bf16.mxu0 0
    %2223 = vmatpush1.bf16.msra.mxu0 %v2044
    %2224 = vmatprep.subr.bf16.mxu0 0
    %2225 = vmatpush1.bf16.msra.mxu0 %v2043
    %2226 = vmatprep.subr.bf16.mxu0 0
    %2227 = vmatpush2.bf16.msra.mxu0 0
    %2228 = vmatprep.subr.bf16.mxu0 0
    %2229 = vmatpush2.bf16.msra.mxu0 0
    %2230 = vmatprep.subr.bf16.mxu0 0
    %2231 = vmatpush2.bf16.msra.mxu0 0
    %2232 = vmatprep.subr.bf16.mxu0 0
    %2233 = vmatpush2.bf16.msra.mxu0 0
    %2234 = vmatprep.subr.bf16.mxu0 0
    %2235 = vmatpush2.bf16.msra.mxu0 0
    %2236 = vmatprep.subr.bf16.mxu0 0
    %2237 = vmatpush2.bf16.msra.mxu0 0
    %2238 = vmatprep.subr.bf16.mxu0 0
    %2239 = vmatpush2.bf16.msra.mxu0 0
    %2240 = vmatprep.subr.bf16.mxu0 0
    %2241 = vmatpush2.bf16.msra.mxu0 0
    %2242 = vmatprep.mubr.bf16.mxu0 0
    %2243 = vmatmul.mubr.bf16.gmra.mxu0 %v1987
    %v2244 = vpop.f32.mrf.mxu0
    %v2245 = vadd.f32 0.0, %v2244
    %v2246 = vpop.f32.mrf.mxu0
    %v2247 = vpop.f32.mrf.mxu0
    %v2248 = vadd.f32 0.0, %v2247
    %v2249 = vpop.f32.mrf.mxu0
    %2250 = vmatprep.mubr.bf16.mxu0 0
    %2251 = vmatmul.mubr.bf16.gmra.mxu0 %v1989
    %v2252 = vpop.f32.mrf.mxu0
    %v2253 = vadd.f32 0.0, %v2252
    %v2254 = vpop.f32.mrf.mxu0
    %v2255 = vpop.f32.mrf.mxu0
    %v2256 = vadd.f32 0.0, %v2255
    %v2257 = vpop.f32.mrf.mxu0
    %2258 = vdwg.mxu0
    %2259 = vmatprep.subr.mxu0 0.0
    %2260 = vmatpush1.msra.mxu0 0.0
    %2261 = vmatprep.subr.mxu0 0.0
    %2262 = vmatpush1.msra.mxu0 0.0
    %2263 = vmatprep.subr.mxu0 0.0
    %2264 = vmatpush1.msra.mxu0 0.0
    %2265 = vmatprep.subr.mxu0 0.0
    %2266 = vmatpush1.msra.mxu0 0.0
    %2267 = vmatprep.subr.mxu0 0.0
    %2268 = vmatpush1.msra.mxu0 0.0
    %2269 = vmatprep.subr.mxu0 0.0
    %2270 = vmatpush1.msra.mxu0 0.0
    %2271 = vmatprep.subr.mxu0 0.0
    %2272 = vmatpush1.msra.mxu0 0.0
    %2273 = vmatprep.subr.mxu0 0.0
    %2274 = vmatpush1.msra.mxu0 0.0
    %2275 = vmatprep.subr.mxu0 0.0
    %2276 = vmatpush1.msra.mxu0 0.0
    %2277 = vmatprep.subr.mxu0 0.0
    %2278 = vmatpush1.msra.mxu0 0.0
    %2279 = vmatprep.subr.mxu0 0.0
    %2280 = vmatpush1.msra.mxu0 0.0
    %2281 = vmatprep.subr.mxu0 0.0
    %2282 = vmatpush1.msra.mxu0 0.0
    %2283 = vmatprep.subr.mxu0 0.0
    %2284 = vmatpush1.msra.mxu0 %v2256
    %2285 = vmatprep.subr.mxu0 0.0
    %2286 = vmatpush1.msra.mxu0 %v2253
    %2287 = vmatprep.subr.mxu0 0.0
    %2288 = vmatpush1.msra.mxu0 %v2248
    %2289 = vmatprep.subr.mxu0 0.0
    %2290 = vmatpush1.msra.mxu0 %v2245
    %2291 = vmatprep.subr.mxu0 0.0
    %2292 = vmatpush2.msra.mxu0 0.0
    %2293 = vmatprep.subr.mxu0 0.0
    %2294 = vmatpush2.msra.mxu0 0.0
    %2295 = vmatprep.subr.mxu0 0.0
    %2296 = vmatpush2.msra.mxu0 0.0
    %2297 = vmatprep.subr.mxu0 0.0
    %2298 = vmatpush2.msra.mxu0 0.0
    %2299 = vmatprep.subr.mxu0 0.0
    %2300 = vmatpush2.msra.mxu0 0.0
    %2301 = vmatprep.subr.mxu0 0.0
    %2302 = vmatpush2.msra.mxu0 0.0
    %2303 = vmatprep.subr.mxu0 0.0
    %2304 = vmatpush2.msra.mxu0 0.0
    %2305 = vmatprep.subr.mxu0 0.0
    %2306 = vmatpush2.msra.mxu0 0.0
    %2307 = vmatprep.subr.mxu0 0.0
    %2308 = vmatpush2.msra.mxu0 0.0
    %2309 = vmatprep.subr.mxu0 0.0
    %2310 = vmatpush2.msra.mxu0 0.0
    %2311 = vmatprep.subr.mxu0 0.0
    %2312 = vmatpush2.msra.mxu0 0.0
    %2313 = vmatprep.subr.mxu0 0.0
    %2314 = vmatpush2.msra.mxu0 0.0
    %2315 = vmatprep.subr.mxu0 0.0
    %2316 = vmatpush2.msra.mxu0 0.0
    %2317 = vmatprep.subr.mxu0 0.0
    %2318 = vmatpush2.msra.mxu0 0.0
    %2319 = vmatprep.subr.mxu0 0.0
    %2320 = vmatpush2.msra.mxu0 0.0
    %2321 = vmatprep.subr.mxu0 0.0
    %2322 = vmatpush2.msra.mxu0 0.0
    %2323 = vmatprep.mubr.f32.mxu0 0.0
    %2324 = vmatmul.mubr.f32.gmra.mxu0 %v2114
    %v2325 = vpop.f32.mrf.mxu0
    %v2326 = vadd.f32 %v1991, %v2325
    %v2327 = vpop.f32.mrf.mxu0
    %2328 = vmatprep.mubr.f32.mxu0 0.0
    %2329 = vmatmul.mubr.f32.gmra.mxu0 %v2117
    %v2330 = vpop.f32.mrf.mxu0
    %v2331 = vadd.f32 %v1992, %v2330
    %v2332 = vpop.f32.mrf.mxu0
    %2333 = vmatprep.mubr.f32.mxu0 0.0
    %2334 = vmatmul.mubr.f32.gmra.mxu0 %v2120
    %v2335 = vpop.f32.mrf.mxu0
    %v2336 = vadd.f32 %v1993, %v2335
    %v2337 = vpop.f32.mrf.mxu0
    %2338 = vmatprep.mubr.f32.mxu0 0.0
    %2339 = vmatmul.mubr.f32.gmra.mxu0 %v2123
    %v2340 = vpop.f32.mrf.mxu0
    %v2341 = vadd.f32 %v1994, %v2340
    %v2342 = vpop.f32.mrf.mxu0
    %2343 = vdwg.mxu0
    %s2344 = scalar_lea.vmem [#allocation5], 32
    %v2345 = vld [vmem:[%s2344] sm:$0xff]
    %v2346 = vld [vmem:[%s2344 + $0x8] sm:$0xff]
    %v2347 = vld [vmem:[%s2344 + $0x10] sm:$0xff]
    %v2348 = vld [vmem:[%s2344 + $0x18] sm:$0xff]
    %v2349 = vmul.f32 %v1902, %v2192
    %v2350 = vmul.f32 %v1903, %v2326
    %v2351 = vmul.f32 %v1904, %v2197
    %v2352 = vmul.f32 %v1905, %v2331
    %v2353 = vmul.f32 %v1906, %v2202
    %v2354 = vmul.f32 %v1907, %v2336
    %v2355 = vmul.f32 %v1908, %v2207
    %v2356 = vmul.f32 %v1909, %v2341
    %s2357 = scalar_lea.vmem %s7, 32
    %v2358 = vld [vmem:[%s2357] sm:$0xff]
    %v2359 = vld [vmem:[%s2357 + $0x8] sm:$0xff]
    %v2360 = vld [vmem:[%s2357 + $0x10] sm:$0xff]
    %v2361 = vld [vmem:[%s2357 + $0x18] sm:$0xff]
    %2363 = vset.pattern.permute.xlu0 0
    %2364 = vperm.xlu0 %2363, %v2358
    %v2365 = vpop.permute.xlu0 %2364
    %2368 = vset.pattern.permute.xlu0 0
    %2369 = vperm.xlu0 %2368, %v2359
    %v2370 = vpop.permute.xlu0 %2369
    %2373 = vset.pattern.permute.xlu0 0
    %2374 = vperm.xlu0 %2373, %v2360
    %v2375 = vpop.permute.xlu0 %2374
    %2378 = vset.pattern.permute.xlu0 0
    %2379 = vperm.xlu0 %2378, %v2361
    %v2380 = vpop.permute.xlu0 %2379
    %v2383 = vsel %vm330, %v2345, 0
    %v2386 = vsel %vm330, %v2346, 0
    %v2389 = vsel %vm330, %v2347, 0
    %v2392 = vsel %vm330, %v2348, 0
    %2394 = vmatprep.subr.mxu0 0.0
    %2395 = vmatpush1.msra.mxu0 0.0
    %2396 = vmatprep.subr.mxu0 0.0
    %2397 = vmatpush1.msra.mxu0 0.0
    %2398 = vmatprep.subr.mxu0 0.0
    %2399 = vmatpush1.msra.mxu0 0.0
    %2400 = vmatprep.subr.mxu0 0.0
    %2401 = vmatpush1.msra.mxu0 0.0
    %2402 = vmatprep.subr.mxu0 0.0
    %2403 = vmatpush1.msra.mxu0 0.0
    %2404 = vmatprep.subr.mxu0 0.0
    %2405 = vmatpush1.msra.mxu0 0.0
    %2406 = vmatprep.subr.mxu0 0.0
    %2407 = vmatpush1.msra.mxu0 0.0
    %2408 = vmatprep.subr.mxu0 0.0
    %2409 = vmatpush1.msra.mxu0 0.0
    %2410 = vmatprep.subr.mxu0 0.0
    %2411 = vmatpush1.msra.mxu0 0.0
    %2412 = vmatprep.subr.mxu0 0.0
    %2413 = vmatpush1.msra.mxu0 0.0
    %2414 = vmatprep.subr.mxu0 0.0
    %2415 = vmatpush1.msra.mxu0 0.0
    %2416 = vmatprep.subr.mxu0 0.0
    %2417 = vmatpush1.msra.mxu0 0.0
    %2418 = vmatprep.subr.mxu0 %v2356
    %2419 = vmatpush1.msra.mxu0 %v2355
    %2420 = vmatprep.subr.mxu0 %v2354
    %2421 = vmatpush1.msra.mxu0 %v2353
    %2422 = vmatprep.subr.mxu0 %v2352
    %2423 = vmatpush1.msra.mxu0 %v2351
    %2424 = vmatprep.subr.mxu0 %v2350
    %2425 = vmatpush1.msra.mxu0 %v2349
    %2426 = vmatprep.subr.mxu0 0.0
    %2427 = vmatpush2.msra.mxu0 0.0
    %2428 = vmatprep.subr.mxu0 0.0
    %2429 = vmatpush2.msra.mxu0 0.0
    %2430 = vmatprep.subr.mxu0 0.0
    %2431 = vmatpush2.msra.mxu0 0.0
    %2432 = vmatprep.subr.mxu0 0.0
    %2433 = vmatpush2.msra.mxu0 0.0
    %2434 = vmatprep.subr.mxu0 0.0
    %2435 = vmatpush2.msra.mxu0 0.0
    %2436 = vmatprep.subr.mxu0 0.0
    %2437 = vmatpush2.msra.mxu0 0.0
    %2438 = vmatprep.subr.mxu0 0.0
    %2439 = vmatpush2.msra.mxu0 0.0
    %2440 = vmatprep.subr.mxu0 0.0
    %2441 = vmatpush2.msra.mxu0 0.0
    %2442 = vmatprep.subr.mxu0 0.0
    %2443 = vmatpush2.msra.mxu0 0.0
    %2444 = vmatprep.subr.mxu0 0.0
    %2445 = vmatpush2.msra.mxu0 0.0
    %2446 = vmatprep.subr.mxu0 0.0
    %2447 = vmatpush2.msra.mxu0 0.0
    %2448 = vmatprep.subr.mxu0 0.0
    %2449 = vmatpush2.msra.mxu0 0.0
    %2450 = vmatprep.subr.mxu0 0.0
    %2451 = vmatpush2.msra.mxu0 0.0
    %2452 = vmatprep.subr.mxu0 0.0
    %2453 = vmatpush2.msra.mxu0 0.0
    %2454 = vmatprep.subr.mxu0 0.0
    %2455 = vmatpush2.msra.mxu0 0.0
    %2456 = vmatprep.subr.mxu0 0.0
    %2457 = vmatpush2.msra.mxu0 0.0
    %2458 = vmatprep.mubr.f32.mxu0 0.0
    %2459 = vmatmul.mubr.f32.gmra.mxu0 %v2383
    %v2460 = vpop.f32.mrf.mxu0
    %v2461 = vadd.f32 %v2365, %v2460
    %v2462 = vpop.f32.mrf.mxu0
    %v2463 = vadd.f32 %v2365, %v2462
    %2464 = vmatprep.mubr.f32.mxu0 0.0
    %2465 = vmatmul.mubr.f32.gmra.mxu0 %v2386
    %v2466 = vpop.f32.mrf.mxu0
    %v2467 = vadd.f32 %v2370, %v2466
    %v2468 = vpop.f32.mrf.mxu0
    %v2469 = vadd.f32 %v2370, %v2468
    %2470 = vmatprep.mubr.f32.mxu0 0.0
    %2471 = vmatmul.mubr.f32.gmra.mxu0 %v2389
    %v2472 = vpop.f32.mrf.mxu0
    %v2473 = vadd.f32 %v2375, %v2472
    %v2474 = vpop.f32.mrf.mxu0
    %v2475 = vadd.f32 %v2375, %v2474
    %2476 = vmatprep.mubr.f32.mxu0 0.0
    %2477 = vmatmul.mubr.f32.gmra.mxu0 %v2392
    %v2478 = vpop.f32.mrf.mxu0
    %v2479 = vadd.f32 %v2380, %v2478
    %v2480 = vpop.f32.mrf.mxu0
    %v2481 = vadd.f32 %v2380, %v2480
    %2482 = vdwg.mxu0
    %v2483 = vmax.f32 %v2461, 0.0
    %v2484 = vmax.f32 %v2463, 0.0
    %v2485 = vmax.f32 %v2467, 0.0
    %v2486 = vmax.f32 %v2469, 0.0
    %v2487 = vmax.f32 %v2473, 0.0
    %v2488 = vmax.f32 %v2475, 0.0
    %v2489 = vmax.f32 %v2479, 0.0
    %v2490 = vmax.f32 %v2481, 0.0
    %v2491 = vadd.f32 %v2483, %v78
    %v2492 = vadd.f32 %v2484, %v79
    %v2493 = vadd.f32 %v2485, %v80
    %v2494 = vadd.f32 %v2486, %v81
    %v2495 = vadd.f32 %v2487, %v82
    %v2496 = vadd.f32 %v2488, %v83
    %v2497 = vadd.f32 %v2489, %v84
    %v2498 = vadd.f32 %v2490, %v85
    %v2499 = vmax.f32 %v569, 0.0
    %v2500 = vmax.f32 %v571, 0.0
    %v2501 = vmax.f32 %v575, 0.0
    %v2502 = vmax.f32 %v577, 0.0
    %v2503 = vmax.f32 %v581, 0.0
    %v2504 = vmax.f32 %v583, 0.0
    %v2505 = vmax.f32 %v587, 0.0
    %v2506 = vmax.f32 %v589, 0.0
    %v2507 = vmax.f32 %v593, 0.0
    %v2508 = vmax.f32 %v595, 0.0
    %v2509 = vmax.f32 %v599, 0.0
    %v2510 = vmax.f32 %v601, 0.0
    %v2511 = vmax.f32 %v605, 0.0
    %v2512 = vmax.f32 %v607, 0.0
    %v2513 = vmax.f32 %v611, 0.0
    %v2514 = vmax.f32 %v613, 0.0
    %v2515 = vlaneseq
    %v2516 = vshrl.u32 %v2515, 7
    %v2517 = vsub.s32 4, %v2516
    %v2518 = vrot.slane %v617, %v2517
    %v2519 = vlaneseq
    %v2520 = vshrl.u32 %v2519, 7
    %v2521 = vsub.s32 4, %v2520
    %v2522 = vrot.slane %v619, %v2521
    %v2523 = vmul.f32 %v2499, %v2518
    %v2524 = vmul.f32 %v2500, %v2522
    %v2525 = vmul.f32 %v2501, %v2518
    %v2526 = vmul.f32 %v2502, %v2522
    %v2527 = vmul.f32 %v2503, %v2518
    %v2528 = vmul.f32 %v2504, %v2522
    %v2529 = vmul.f32 %v2505, %v2518
    %v2530 = vmul.f32 %v2506, %v2522
    %v2531 = vmul.f32 %v2507, %v2518
    %v2532 = vmul.f32 %v2508, %v2522
    %v2533 = vmul.f32 %v2509, %v2518
    %v2534 = vmul.f32 %v2510, %v2522
    %v2535 = vmul.f32 %v2511, %v2518
    %v2536 = vmul.f32 %v2512, %v2522
    %v2537 = vmul.f32 %v2513, %v2518
    %v2538 = vmul.f32 %v2514, %v2522
    %v2539 = vlaneseq
    %v2540 = vshrl.u32 %v2539, 7
    %v2541 = vsub.s32 5, %v2540
    %v2542 = vrot.slane %v617, %v2541
    %v2543 = vlaneseq
    %v2544 = vshrl.u32 %v2543, 7
    %v2545 = vsub.s32 5, %v2544
    %v2546 = vrot.slane %v619, %v2545
    %v2547 = vadd.f32 %v2523, %v2542
    %v2548 = vadd.f32 %v2524, %v2546
    %v2549 = vadd.f32 %v2525, %v2542
    %v2550 = vadd.f32 %v2526, %v2546
    %v2551 = vadd.f32 %v2527, %v2542
    %v2552 = vadd.f32 %v2528, %v2546
    %v2553 = vadd.f32 %v2529, %v2542
    %v2554 = vadd.f32 %v2530, %v2546
    %v2555 = vadd.f32 %v2531, %v2542
    %v2556 = vadd.f32 %v2532, %v2546
    %v2557 = vadd.f32 %v2533, %v2542
    %v2558 = vadd.f32 %v2534, %v2546
    %v2559 = vadd.f32 %v2535, %v2542
    %v2560 = vadd.f32 %v2536, %v2546
    %v2561 = vadd.f32 %v2537, %v2542
    %v2562 = vadd.f32 %v2538, %v2546
    %v2563 = vadd.f32 %v2555, %v2557
    %v2564 = vadd.f32 %v2563, %v2559
    %v2565 = vadd.f32 %v2564, %v2561
    %v2566 = vrot.slane %v2565, 4
    %v2567 = vadd.f32 %v2565, %v2566
    %v2568 = vrot.slane %v2567, 2
    %v2569 = vadd.f32 %v2567, %v2568
    %v2570 = vrot.slane %v2569, 1
    %v2571 = vadd.f32 %v2569, %v2570
    %v2572 = vadd.f32 %v2556, %v2558
    %v2573 = vadd.f32 %v2572, %v2560
    %v2574 = vadd.f32 %v2573, %v2562
    %v2575 = vrot.slane %v2574, 4
    %v2576 = vadd.f32 %v2574, %v2575
    %v2577 = vrot.slane %v2576, 2
    %v2578 = vadd.f32 %v2576, %v2577
    %v2579 = vrot.slane %v2578, 1
    %v2580 = vadd.f32 %v2578, %v2579
    %v2581 = vmul.f32 %v2571, %v104
    %v2582 = vmul.f32 %v2580, %v104
    %v2583 = vsub.f32 %v2555, %v2581
    %v2584 = vsub.f32 %v2556, %v2582
    %v2585 = vsub.f32 %v2557, %v2581
    %v2586 = vsub.f32 %v2558, %v2582
    %v2587 = vsub.f32 %v2559, %v2581
    %v2588 = vsub.f32 %v2560, %v2582
    %v2589 = vsub.f32 %v2561, %v2581
    %v2590 = vsub.f32 %v2562, %v2582
    %v2591 = vmul.f32 %v2583, %v2583
    %v2592 = vmul.f32 %v2584, %v2584
    %v2593 = vmul.f32 %v2585, %v2585
    %v2594 = vmul.f32 %v2586, %v2586
    %v2595 = vmul.f32 %v2587, %v2587
    %v2596 = vmul.f32 %v2588, %v2588
    %v2597 = vmul.f32 %v2589, %v2589
    %v2598 = vmul.f32 %v2590, %v2590
    %v2599 = vadd.f32 %v2591, %v2593
    %v2600 = vadd.f32 %v2599, %v2595
    %v2601 = vadd.f32 %v2600, %v2597
    %v2602 = vrot.slane %v2601, 4
    %v2603 = vadd.f32 %v2601, %v2602
    %v2604 = vrot.slane %v2603, 2
    %v2605 = vadd.f32 %v2603, %v2604
    %v2606 = vrot.slane %v2605, 1
    %v2607 = vadd.f32 %v2605, %v2606
    %v2608 = vadd.f32 %v2592, %v2594
    %v2609 = vadd.f32 %v2608, %v2596
    %v2610 = vadd.f32 %v2609, %v2598
    %v2611 = vrot.slane %v2610, 4
    %v2612 = vadd.f32 %v2610, %v2611
    %v2613 = vrot.slane %v2612, 2
    %v2614 = vadd.f32 %v2612, %v2613
    %v2615 = vrot.slane %v2614, 1
    %v2616 = vadd.f32 %v2614, %v2615
    %v2617 = vmul.f32 %v2607, %v104
    %v2618 = vmul.f32 %v2616, %v104
    %v2619 = vadd.f32 %v2617, 1e-05
    %v2620 = vadd.f32 %v2618, 1e-05
    %v2621 = vrsqrt.pop %v2619
    %v2622 = vrsqrt.pop %v2620
    %v2623 = vmul.f32 %v2583, %v2621
    %v2624 = vmul.f32 %v2584, %v2622
    %v2625 = vmul.f32 %v2585, %v2621
    %v2626 = vmul.f32 %v2586, %v2622
    %v2627 = vmul.f32 %v2587, %v2621
    %v2628 = vmul.f32 %v2588, %v2622
    %v2629 = vmul.f32 %v2589, %v2621
    %v2630 = vmul.f32 %v2590, %v2622
    %v2631 = vpack.c.bf16 %v2625, %v2623
    %v2632 = vpack.c.bf16 %v2626, %v2624
    %v2633 = vpack.c.bf16 %v2629, %v2627
    %v2634 = vpack.c.bf16 %v2630, %v2628
    %s2635 = scalar_lea.vmem %s5, 64
    %v2636 = vld [vmem:[%s2635] sm:$0xff]
    %v2637 = vld [vmem:[%s2635 + $0x8] sm:$0xff]
    %v2638 = vld [vmem:[%s2635 + $0x10] sm:$0xff]
    %v2639 = vld [vmem:[%s2635 + $0x18] sm:$0xff]
    %v2640 = vld [vmem:[%s4 + $0x10] sm:$0xf]
    %v2641 = vld [vmem:[%s4 + $0x24] sm:$0xf]
    %v2642 = vld [vmem:[%s4 + $0x38] sm:$0xf]
    %v2643 = vld [vmem:[%s4 + $0x4c] sm:$0xf]
    %v2644 = vld [vmem:[%s4 + $0x60] sm:$0xf]
    %v2645 = vld [vmem:[%s4 + $0x74] sm:$0xf]
    %v2646 = vld [vmem:[%s4 + $0x88] sm:$0xf]
    %v2647 = vld [vmem:[%s4 + $0x9c] sm:$0xf]
    %v2648 = vld [vmem:[%s4 + $0xb0] sm:$0xf]
    %v2649 = vld [vmem:[%s4 + $0xc4] sm:$0xf]
    %v2650 = vld [vmem:[%s4 + $0xd8] sm:$0xf]
    %v2651 = vld [vmem:[%s4 + $0xec] sm:$0xf]
    %v2652 = vld [vmem:[%s4 + $0x100] sm:$0xf]
    %v2653 = vld [vmem:[%s4 + $0x114] sm:$0xf]
    %v2654 = vld [vmem:[%s4 + $0x128] sm:$0xf]
    %v2655 = vld [vmem:[%s4 + $0x13c] sm:$0xf]
    %v2672 = vunpack.c.l.b16 %v2640
    %v2673 = vunpack.c.l.b16 %v2641
    %v2674 = vunpack.c.l.b16 %v2642
    %v2675 = vunpack.c.l.b16 %v2643
    %v2676 = vunpack.c.l.b16 %v2644
    %v2677 = vunpack.c.l.b16 %v2645
    %v2678 = vunpack.c.l.b16 %v2646
    %v2679 = vunpack.c.l.b16 %v2647
    %v2680 = vunpack.c.l.b16 %v2648
    %v2681 = vunpack.c.l.b16 %v2649
    %v2682 = vunpack.c.l.b16 %v2650
    %v2683 = vunpack.c.l.b16 %v2651
    %v2684 = vunpack.c.l.b16 %v2652
    %v2685 = vunpack.c.l.b16 %v2653
    %v2686 = vunpack.c.l.b16 %v2654
    %v2687 = vunpack.c.l.b16 %v2655
    %v2688 = vpack.c.b16 %v2673, %v2672
    %v2689 = vpack.c.b16 %v2675, %v2674
    %v2690 = vpack.c.b16 %v2677, %v2676
    %v2691 = vpack.c.b16 %v2679, %v2678
    %v2692 = vpack.c.b16 %v2681, %v2680
    %v2693 = vpack.c.b16 %v2683, %v2682
    %v2694 = vpack.c.b16 %v2685, %v2684
    %v2695 = vpack.c.b16 %v2687, %v2686
    %2704 = vmatprep.subr.bf16.mxu0 0
    %2705 = vmatpush1.bf16.msra.mxu0 %v2695
    %2706 = vmatprep.subr.bf16.mxu0 0
    %2707 = vmatpush1.bf16.msra.mxu0 %v2694
    %2708 = vmatprep.subr.bf16.mxu0 0
    %2709 = vmatpush1.bf16.msra.mxu0 %v2693
    %2710 = vmatprep.subr.bf16.mxu0 0
    %2711 = vmatpush1.bf16.msra.mxu0 %v2692
    %2712 = vmatprep.subr.bf16.mxu0 0
    %2713 = vmatpush1.bf16.msra.mxu0 %v2691
    %2714 = vmatprep.subr.bf16.mxu0 0
    %2715 = vmatpush1.bf16.msra.mxu0 %v2690
    %2716 = vmatprep.subr.bf16.mxu0 0
    %2717 = vmatpush1.bf16.msra.mxu0 %v2689
    %2718 = vmatprep.subr.bf16.mxu0 0
    %2719 = vmatpush1.bf16.msra.mxu0 %v2688
    %2720 = vmatprep.subr.bf16.mxu0 0
    %2721 = vmatpush2.bf16.msra.mxu0 0
    %2722 = vmatprep.subr.bf16.mxu0 0
    %2723 = vmatpush2.bf16.msra.mxu0 0
    %2724 = vmatprep.subr.bf16.mxu0 0
    %2725 = vmatpush2.bf16.msra.mxu0 0
    %2726 = vmatprep.subr.bf16.mxu0 0
    %2727 = vmatpush2.bf16.msra.mxu0 0
    %2728 = vmatprep.subr.bf16.mxu0 0
    %2729 = vmatpush2.bf16.msra.mxu0 0
    %2730 = vmatprep.subr.bf16.mxu0 0
    %2731 = vmatpush2.bf16.msra.mxu0 0
    %2732 = vmatprep.subr.bf16.mxu0 0
    %2733 = vmatpush2.bf16.msra.mxu0 0
    %2734 = vmatprep.subr.bf16.mxu0 0
    %2735 = vmatpush2.bf16.msra.mxu0 0
    %2736 = vmatprep.mubr.bf16.mxu0 0
    %2737 = vmatmul.mubr.bf16.gmra.mxu0 %v2631
    %v2738 = vpop.f32.mrf.mxu0
    %v2739 = vadd.f32 0.0, %v2738
    %v2740 = vpop.f32.mrf.mxu0
    %v2741 = vpop.f32.mrf.mxu0
    %v2742 = vadd.f32 0.0, %v2741
    %v2743 = vpop.f32.mrf.mxu0
    %2744 = vmatprep.mubr.bf16.mxu0 0
    %2745 = vmatmul.mubr.bf16.gmra.mxu0 %v2633
    %v2746 = vpop.f32.mrf.mxu0
    %v2747 = vadd.f32 0.0, %v2746
    %v2748 = vpop.f32.mrf.mxu0
    %v2749 = vpop.f32.mrf.mxu0
    %v2750 = vadd.f32 0.0, %v2749
    %v2751 = vpop.f32.mrf.mxu0
    %2752 = vdwg.mxu0
    %s2753 = scalar_lea.vmem %s3, 128
    %v2754 = vld [vmem:[%s2753] sm:$0xff]
    %v2755 = vld [vmem:[%s2753 + $0x8] sm:$0xff]
    %v2756 = vld [vmem:[%s2753 + $0x10] sm:$0xff]
    %v2757 = vld [vmem:[%s2753 + $0x18] sm:$0xff]
    %v2759 = vsel %vm330, %v2754, 0
    %v2762 = vsel %vm330, %v2755, 0
    %v2765 = vsel %vm330, %v2756, 0
    %v2768 = vsel %vm330, %v2757, 0
    %2770 = vmatprep.subr.mxu0 0.0
    %2771 = vmatpush1.msra.mxu0 0.0
    %2772 = vmatprep.subr.mxu0 0.0
    %2773 = vmatpush1.msra.mxu0 0.0
    %2774 = vmatprep.subr.mxu0 0.0
    %2775 = vmatpush1.msra.mxu0 0.0
    %2776 = vmatprep.subr.mxu0 0.0
    %2777 = vmatpush1.msra.mxu0 0.0
    %2778 = vmatprep.subr.mxu0 0.0
    %2779 = vmatpush1.msra.mxu0 0.0
    %2780 = vmatprep.subr.mxu0 0.0
    %2781 = vmatpush1.msra.mxu0 0.0
    %2782 = vmatprep.subr.mxu0 0.0
    %2783 = vmatpush1.msra.mxu0 0.0
    %2784 = vmatprep.subr.mxu0 0.0
    %2785 = vmatpush1.msra.mxu0 0.0
    %2786 = vmatprep.subr.mxu0 0.0
    %2787 = vmatpush1.msra.mxu0 0.0
    %2788 = vmatprep.subr.mxu0 0.0
    %2789 = vmatpush1.msra.mxu0 0.0
    %2790 = vmatprep.subr.mxu0 0.0
    %2791 = vmatpush1.msra.mxu0 0.0
    %2792 = vmatprep.subr.mxu0 0.0
    %2793 = vmatpush1.msra.mxu0 0.0
    %2794 = vmatprep.subr.mxu0 0.0
    %2795 = vmatpush1.msra.mxu0 %v2750
    %2796 = vmatprep.subr.mxu0 0.0
    %2797 = vmatpush1.msra.mxu0 %v2747
    %2798 = vmatprep.subr.mxu0 0.0
    %2799 = vmatpush1.msra.mxu0 %v2742
    %2800 = vmatprep.subr.mxu0 0.0
    %2801 = vmatpush1.msra.mxu0 %v2739
    %2802 = vmatprep.subr.mxu0 0.0
    %2803 = vmatpush2.msra.mxu0 0.0
    %2804 = vmatprep.subr.mxu0 0.0
    %2805 = vmatpush2.msra.mxu0 0.0
    %2806 = vmatprep.subr.mxu0 0.0
    %2807 = vmatpush2.msra.mxu0 0.0
    %2808 = vmatprep.subr.mxu0 0.0
    %2809 = vmatpush2.msra.mxu0 0.0
    %2810 = vmatprep.subr.mxu0 0.0
    %2811 = vmatpush2.msra.mxu0 0.0
    %2812 = vmatprep.subr.mxu0 0.0
    %2813 = vmatpush2.msra.mxu0 0.0
    %2814 = vmatprep.subr.mxu0 0.0
    %2815 = vmatpush2.msra.mxu0 0.0
    %2816 = vmatprep.subr.mxu0 0.0
    %2817 = vmatpush2.msra.mxu0 0.0
    %2818 = vmatprep.subr.mxu0 0.0
    %2819 = vmatpush2.msra.mxu0 0.0
    %2820 = vmatprep.subr.mxu0 0.0
    %2821 = vmatpush2.msra.mxu0 0.0
    %2822 = vmatprep.subr.mxu0 0.0
    %2823 = vmatpush2.msra.mxu0 0.0
    %2824 = vmatprep.subr.mxu0 0.0
    %2825 = vmatpush2.msra.mxu0 0.0
    %2826 = vmatprep.subr.mxu0 0.0
    %2827 = vmatpush2.msra.mxu0 0.0
    %2828 = vmatprep.subr.mxu0 0.0
    %2829 = vmatpush2.msra.mxu0 0.0
    %2830 = vmatprep.subr.mxu0 0.0
    %2831 = vmatpush2.msra.mxu0 0.0
    %2832 = vmatprep.subr.mxu0 0.0
    %2833 = vmatpush2.msra.mxu0 0.0
    %2834 = vmatprep.mubr.f32.mxu0 0.0
    %2835 = vmatmul.mubr.f32.gmra.mxu0 %v2759
    %v2836 = vpop.f32.mrf.mxu0
    %v2837 = vadd.f32 %v2636, %v2836
    %v2838 = vpop.f32.mrf.mxu0
    %2839 = vmatprep.mubr.f32.mxu0 0.0
    %2840 = vmatmul.mubr.f32.gmra.mxu0 %v2762
    %v2841 = vpop.f32.mrf.mxu0
    %v2842 = vadd.f32 %v2637, %v2841
    %v2843 = vpop.f32.mrf.mxu0
    %2844 = vmatprep.mubr.f32.mxu0 0.0
    %2845 = vmatmul.mubr.f32.gmra.mxu0 %v2765
    %v2846 = vpop.f32.mrf.mxu0
    %v2847 = vadd.f32 %v2638, %v2846
    %v2848 = vpop.f32.mrf.mxu0
    %2849 = vmatprep.mubr.f32.mxu0 0.0
    %2850 = vmatmul.mubr.f32.gmra.mxu0 %v2768
    %v2851 = vpop.f32.mrf.mxu0
    %v2852 = vadd.f32 %v2639, %v2851
    %v2853 = vpop.f32.mrf.mxu0
    %2854 = vdwg.mxu0
    %2855 = vmatprep.subr.bf16.mxu0 0
    %2856 = vmatpush1.bf16.msra.mxu0 %v2695
    %2857 = vmatprep.subr.bf16.mxu0 0
    %2858 = vmatpush1.bf16.msra.mxu0 %v2694
    %2859 = vmatprep.subr.bf16.mxu0 0
    %2860 = vmatpush1.bf16.msra.mxu0 %v2693
    %2861 = vmatprep.subr.bf16.mxu0 0
    %2862 = vmatpush1.bf16.msra.mxu0 %v2692
    %2863 = vmatprep.subr.bf16.mxu0 0
    %2864 = vmatpush1.bf16.msra.mxu0 %v2691
    %2865 = vmatprep.subr.bf16.mxu0 0
    %2866 = vmatpush1.bf16.msra.mxu0 %v2690
    %2867 = vmatprep.subr.bf16.mxu0 0
    %2868 = vmatpush1.bf16.msra.mxu0 %v2689
    %2869 = vmatprep.subr.bf16.mxu0 0
    %2870 = vmatpush1.bf16.msra.mxu0 %v2688
    %2871 = vmatprep.subr.bf16.mxu0 0
    %2872 = vmatpush2.bf16.msra.mxu0 0
    %2873 = vmatprep.subr.bf16.mxu0 0
    %2874 = vmatpush2.bf16.msra.mxu0 0
    %2875 = vmatprep.subr.bf16.mxu0 0
    %2876 = vmatpush2.bf16.msra.mxu0 0
    %2877 = vmatprep.subr.bf16.mxu0 0
    %2878 = vmatpush2.bf16.msra.mxu0 0
    %2879 = vmatprep.subr.bf16.mxu0 0
    %2880 = vmatpush2.bf16.msra.mxu0 0
    %2881 = vmatprep.subr.bf16.mxu0 0
    %2882 = vmatpush2.bf16.msra.mxu0 0
    %2883 = vmatprep.subr.bf16.mxu0 0
    %2884 = vmatpush2.bf16.msra.mxu0 0
    %2885 = vmatprep.subr.bf16.mxu0 0
    %2886 = vmatpush2.bf16.msra.mxu0 0
    %2887 = vmatprep.mubr.bf16.mxu0 0
    %2888 = vmatmul.mubr.bf16.gmra.mxu0 %v2632
    %v2889 = vpop.f32.mrf.mxu0
    %v2890 = vadd.f32 0.0, %v2889
    %v2891 = vpop.f32.mrf.mxu0
    %v2892 = vpop.f32.mrf.mxu0
    %v2893 = vadd.f32 0.0, %v2892
    %v2894 = vpop.f32.mrf.mxu0
    %2895 = vmatprep.mubr.bf16.mxu0 0
    %2896 = vmatmul.mubr.bf16.gmra.mxu0 %v2634
    %v2897 = vpop.f32.mrf.mxu0
    %v2898 = vadd.f32 0.0, %v2897
    %v2899 = vpop.f32.mrf.mxu0
    %v2900 = vpop.f32.mrf.mxu0
    %v2901 = vadd.f32 0.0, %v2900
    %v2902 = vpop.f32.mrf.mxu0
    %2903 = vdwg.mxu0
    %2904 = vmatprep.subr.mxu0 0.0
    %2905 = vmatpush1.msra.mxu0 0.0
    %2906 = vmatprep.subr.mxu0 0.0
    %2907 = vmatpush1.msra.mxu0 0.0
    %2908 = vmatprep.subr.mxu0 0.0
    %2909 = vmatpush1.msra.mxu0 0.0
    %2910 = vmatprep.subr.mxu0 0.0
    %2911 = vmatpush1.msra.mxu0 0.0
    %2912 = vmatprep.subr.mxu0 0.0
    %2913 = vmatpush1.msra.mxu0 0.0
    %2914 = vmatprep.subr.mxu0 0.0
    %2915 = vmatpush1.msra.mxu0 0.0
    %2916 = vmatprep.subr.mxu0 0.0
    %2917 = vmatpush1.msra.mxu0 0.0
    %2918 = vmatprep.subr.mxu0 0.0
    %2919 = vmatpush1.msra.mxu0 0.0
    %2920 = vmatprep.subr.mxu0 0.0
    %2921 = vmatpush1.msra.mxu0 0.0
    %2922 = vmatprep.subr.mxu0 0.0
    %2923 = vmatpush1.msra.mxu0 0.0
    %2924 = vmatprep.subr.mxu0 0.0
    %2925 = vmatpush1.msra.mxu0 0.0
    %2926 = vmatprep.subr.mxu0 0.0
    %2927 = vmatpush1.msra.mxu0 0.0
    %2928 = vmatprep.subr.mxu0 0.0
    %2929 = vmatpush1.msra.mxu0 %v2901
    %2930 = vmatprep.subr.mxu0 0.0
    %2931 = vmatpush1.msra.mxu0 %v2898
    %2932 = vmatprep.subr.mxu0 0.0
    %2933 = vmatpush1.msra.mxu0 %v2893
    %2934 = vmatprep.subr.mxu0 0.0
    %2935 = vmatpush1.msra.mxu0 %v2890
    %2936 = vmatprep.subr.mxu0 0.0
    %2937 = vmatpush2.msra.mxu0 0.0
    %2938 = vmatprep.subr.mxu0 0.0
    %2939 = vmatpush2.msra.mxu0 0.0
    %2940 = vmatprep.subr.mxu0 0.0
    %2941 = vmatpush2.msra.mxu0 0.0
    %2942 = vmatprep.subr.mxu0 0.0
    %2943 = vmatpush2.msra.mxu0 0.0
    %2944 = vmatprep.subr.mxu0 0.0
    %2945 = vmatpush2.msra.mxu0 0.0
    %2946 = vmatprep.subr.mxu0 0.0
    %2947 = vmatpush2.msra.mxu0 0.0
    %2948 = vmatprep.subr.mxu0 0.0
    %2949 = vmatpush2.msra.mxu0 0.0
    %2950 = vmatprep.subr.mxu0 0.0
    %2951 = vmatpush2.msra.mxu0 0.0
    %2952 = vmatprep.subr.mxu0 0.0
    %2953 = vmatpush2.msra.mxu0 0.0
    %2954 = vmatprep.subr.mxu0 0.0
    %2955 = vmatpush2.msra.mxu0 0.0
    %2956 = vmatprep.subr.mxu0 0.0
    %2957 = vmatpush2.msra.mxu0 0.0
    %2958 = vmatprep.subr.mxu0 0.0
    %2959 = vmatpush2.msra.mxu0 0.0
    %2960 = vmatprep.subr.mxu0 0.0
    %2961 = vmatpush2.msra.mxu0 0.0
    %2962 = vmatprep.subr.mxu0 0.0
    %2963 = vmatpush2.msra.mxu0 0.0
    %2964 = vmatprep.subr.mxu0 0.0
    %2965 = vmatpush2.msra.mxu0 0.0
    %2966 = vmatprep.subr.mxu0 0.0
    %2967 = vmatpush2.msra.mxu0 0.0
    %2968 = vmatprep.mubr.f32.mxu0 0.0
    %2969 = vmatmul.mubr.f32.gmra.mxu0 %v2759
    %v2970 = vpop.f32.mrf.mxu0
    %v2971 = vadd.f32 %v2636, %v2970
    %v2972 = vpop.f32.mrf.mxu0
    %2973 = vmatprep.mubr.f32.mxu0 0.0
    %2974 = vmatmul.mubr.f32.gmra.mxu0 %v2762
    %v2975 = vpop.f32.mrf.mxu0
    %v2976 = vadd.f32 %v2637, %v2975
    %v2977 = vpop.f32.mrf.mxu0
    %2978 = vmatprep.mubr.f32.mxu0 0.0
    %2979 = vmatmul.mubr.f32.gmra.mxu0 %v2765
    %v2980 = vpop.f32.mrf.mxu0
    %v2981 = vadd.f32 %v2638, %v2980
    %v2982 = vpop.f32.mrf.mxu0
    %2983 = vmatprep.mubr.f32.mxu0 0.0
    %2984 = vmatmul.mubr.f32.gmra.mxu0 %v2768
    %v2985 = vpop.f32.mrf.mxu0
    %v2986 = vadd.f32 %v2639, %v2985
    %v2987 = vpop.f32.mrf.mxu0
    %2988 = vdwg.mxu0
    %s2989 = scalar_lea.vmem [#allocation5], 64
    %v2990 = vld [vmem:[%s2989] sm:$0xff]
    %v2991 = vld [vmem:[%s2989 + $0x8] sm:$0xff]
    %v2992 = vld [vmem:[%s2989 + $0x10] sm:$0xff]
    %v2993 = vld [vmem:[%s2989 + $0x18] sm:$0xff]
    %v2994 = vmul.f32 %v2547, %v2837
    %v2995 = vmul.f32 %v2548, %v2971
    %v2996 = vmul.f32 %v2549, %v2842
    %v2997 = vmul.f32 %v2550, %v2976
    %v2998 = vmul.f32 %v2551, %v2847
    %v2999 = vmul.f32 %v2552, %v2981
    %v3000 = vmul.f32 %v2553, %v2852
    %v3001 = vmul.f32 %v2554, %v2986
    %s3002 = scalar_lea.vmem %s7, 64
    %v3003 = vld [vmem:[%s3002] sm:$0xff]
    %v3004 = vld [vmem:[%s3002 + $0x8] sm:$0xff]
    %v3005 = vld [vmem:[%s3002 + $0x10] sm:$0xff]
    %v3006 = vld [vmem:[%s3002 + $0x18] sm:$0xff]
    %3008 = vset.pattern.permute.xlu0 0
    %3009 = vperm.xlu0 %3008, %v3003
    %v3010 = vpop.permute.xlu0 %3009
    %3013 = vset.pattern.permute.xlu0 0
    %3014 = vperm.xlu0 %3013, %v3004
    %v3015 = vpop.permute.xlu0 %3014
    %3018 = vset.pattern.permute.xlu0 0
    %3019 = vperm.xlu0 %3018, %v3005
    %v3020 = vpop.permute.xlu0 %3019
    %3023 = vset.pattern.permute.xlu0 0
    %3024 = vperm.xlu0 %3023, %v3006
    %v3025 = vpop.permute.xlu0 %3024
    %v3028 = vsel %vm330, %v2990, 0
    %v3031 = vsel %vm330, %v2991, 0
    %v3034 = vsel %vm330, %v2992, 0
    %v3037 = vsel %vm330, %v2993, 0
    %3039 = vmatprep.subr.mxu0 0.0
    %3040 = vmatpush1.msra.mxu0 0.0
    %3041 = vmatprep.subr.mxu0 0.0
    %3042 = vmatpush1.msra.mxu0 0.0
    %3043 = vmatprep.subr.mxu0 0.0
    %3044 = vmatpush1.msra.mxu0 0.0
    %3045 = vmatprep.subr.mxu0 0.0
    %3046 = vmatpush1.msra.mxu0 0.0
    %3047 = vmatprep.subr.mxu0 0.0
    %3048 = vmatpush1.msra.mxu0 0.0
    %3049 = vmatprep.subr.mxu0 0.0
    %3050 = vmatpush1.msra.mxu0 0.0
    %3051 = vmatprep.subr.mxu0 0.0
    %3052 = vmatpush1.msra.mxu0 0.0
    %3053 = vmatprep.subr.mxu0 0.0
    %3054 = vmatpush1.msra.mxu0 0.0
    %3055 = vmatprep.subr.mxu0 0.0
    %3056 = vmatpush1.msra.mxu0 0.0
    %3057 = vmatprep.subr.mxu0 0.0
    %3058 = vmatpush1.msra.mxu0 0.0
    %3059 = vmatprep.subr.mxu0 0.0
    %3060 = vmatpush1.msra.mxu0 0.0
    %3061 = vmatprep.subr.mxu0 0.0
    %3062 = vmatpush1.msra.mxu0 0.0
    %3063 = vmatprep.subr.mxu0 %v3001
    %3064 = vmatpush1.msra.mxu0 %v3000
    %3065 = vmatprep.subr.mxu0 %v2999
    %3066 = vmatpush1.msra.mxu0 %v2998
    %3067 = vmatprep.subr.mxu0 %v2997
    %3068 = vmatpush1.msra.mxu0 %v2996
    %3069 = vmatprep.subr.mxu0 %v2995
    %3070 = vmatpush1.msra.mxu0 %v2994
    %3071 = vmatprep.subr.mxu0 0.0
    %3072 = vmatpush2.msra.mxu0 0.0
    %3073 = vmatprep.subr.mxu0 0.0
    %3074 = vmatpush2.msra.mxu0 0.0
    %3075 = vmatprep.subr.mxu0 0.0
    %3076 = vmatpush2.msra.mxu0 0.0
    %3077 = vmatprep.subr.mxu0 0.0
    %3078 = vmatpush2.msra.mxu0 0.0
    %3079 = vmatprep.subr.mxu0 0.0
    %3080 = vmatpush2.msra.mxu0 0.0
    %3081 = vmatprep.subr.mxu0 0.0
    %3082 = vmatpush2.msra.mxu0 0.0
    %3083 = vmatprep.subr.mxu0 0.0
    %3084 = vmatpush2.msra.mxu0 0.0
    %3085 = vmatprep.subr.mxu0 0.0
    %3086 = vmatpush2.msra.mxu0 0.0
    %3087 = vmatprep.subr.mxu0 0.0
    %3088 = vmatpush2.msra.mxu0 0.0
    %3089 = vmatprep.subr.mxu0 0.0
    %3090 = vmatpush2.msra.mxu0 0.0
    %3091 = vmatprep.subr.mxu0 0.0
    %3092 = vmatpush2.msra.mxu0 0.0
    %3093 = vmatprep.subr.mxu0 0.0
    %3094 = vmatpush2.msra.mxu0 0.0
    %3095 = vmatprep.subr.mxu0 0.0
    %3096 = vmatpush2.msra.mxu0 0.0
    %3097 = vmatprep.subr.mxu0 0.0
    %3098 = vmatpush2.msra.mxu0 0.0
    %3099 = vmatprep.subr.mxu0 0.0
    %3100 = vmatpush2.msra.mxu0 0.0
    %3101 = vmatprep.subr.mxu0 0.0
    %3102 = vmatpush2.msra.mxu0 0.0
    %3103 = vmatprep.mubr.f32.mxu0 0.0
    %3104 = vmatmul.mubr.f32.gmra.mxu0 %v3028
    %v3105 = vpop.f32.mrf.mxu0
    %v3106 = vadd.f32 %v3010, %v3105
    %v3107 = vpop.f32.mrf.mxu0
    %v3108 = vadd.f32 %v3010, %v3107
    %3109 = vmatprep.mubr.f32.mxu0 0.0
    %3110 = vmatmul.mubr.f32.gmra.mxu0 %v3031
    %v3111 = vpop.f32.mrf.mxu0
    %v3112 = vadd.f32 %v3015, %v3111
    %v3113 = vpop.f32.mrf.mxu0
    %v3114 = vadd.f32 %v3015, %v3113
    %3115 = vmatprep.mubr.f32.mxu0 0.0
    %3116 = vmatmul.mubr.f32.gmra.mxu0 %v3034
    %v3117 = vpop.f32.mrf.mxu0
    %v3118 = vadd.f32 %v3020, %v3117
    %v3119 = vpop.f32.mrf.mxu0
    %v3120 = vadd.f32 %v3020, %v3119
    %3121 = vmatprep.mubr.f32.mxu0 0.0
    %3122 = vmatmul.mubr.f32.gmra.mxu0 %v3037
    %v3123 = vpop.f32.mrf.mxu0
    %v3124 = vadd.f32 %v3025, %v3123
    %v3125 = vpop.f32.mrf.mxu0
    %v3126 = vadd.f32 %v3025, %v3125
    %3127 = vdwg.mxu0
    %v3128 = vmax.f32 %v3106, 0.0
    %v3129 = vmax.f32 %v3108, 0.0
    %v3130 = vmax.f32 %v3112, 0.0
    %v3131 = vmax.f32 %v3114, 0.0
    %v3132 = vmax.f32 %v3118, 0.0
    %v3133 = vmax.f32 %v3120, 0.0
    %v3134 = vmax.f32 %v3124, 0.0
    %v3135 = vmax.f32 %v3126, 0.0
    %v3136 = vadd.f32 %v3128, %v78
    %v3137 = vadd.f32 %v3129, %v79
    %v3138 = vadd.f32 %v3130, %v80
    %v3139 = vadd.f32 %v3131, %v81
    %v3140 = vadd.f32 %v3132, %v82
    %v3141 = vadd.f32 %v3133, %v83
    %v3142 = vadd.f32 %v3134, %v84
    %v3143 = vadd.f32 %v3135, %v85
    %v3144 = vld [vmem:[#allocation7] sm:$0xff]
    %v3145 = vld [vmem:[#allocation7 + $0x8] sm:$0xff]
    %v3146 = vld [vmem:[#allocation7 + $0x10] sm:$0xff]
    %v3147 = vld [vmem:[#allocation7 + $0x18] sm:$0xff]
    %v3148 = vadd.f32 %v1846, %v1848
    %v3149 = vadd.f32 %v3148, %v1850
    %v3150 = vadd.f32 %v3149, %v1852
    %v3151 = vrot.slane %v3150, 4
    %v3152 = vadd.f32 %v3150, %v3151
    %v3153 = vrot.slane %v3152, 2
    %v3154 = vadd.f32 %v3152, %v3153
    %v3155 = vrot.slane %v3154, 1
    %v3156 = vadd.f32 %v3154, %v3155
    %v3157 = vadd.f32 %v1847, %v1849
    %v3158 = vadd.f32 %v3157, %v1851
    %v3159 = vadd.f32 %v3158, %v1853
    %v3160 = vrot.slane %v3159, 4
    %v3161 = vadd.f32 %v3159, %v3160
    %v3162 = vrot.slane %v3161, 2
    %v3163 = vadd.f32 %v3161, %v3162
    %v3164 = vrot.slane %v3163, 1
    %v3165 = vadd.f32 %v3163, %v3164
    %v3166 = vmul.f32 %v3156, %v104
    %v3167 = vmul.f32 %v3165, %v104
    %v3168 = vsub.f32 %v1846, %v3166
    %v3169 = vsub.f32 %v1847, %v3167
    %v3170 = vsub.f32 %v1848, %v3166
    %v3171 = vsub.f32 %v1849, %v3167
    %v3172 = vsub.f32 %v1850, %v3166
    %v3173 = vsub.f32 %v1851, %v3167
    %v3174 = vsub.f32 %v1852, %v3166
    %v3175 = vsub.f32 %v1853, %v3167
    %v3176 = vmul.f32 %v3168, %v3168
    %v3177 = vmul.f32 %v3169, %v3169
    %v3178 = vmul.f32 %v3170, %v3170
    %v3179 = vmul.f32 %v3171, %v3171
    %v3180 = vmul.f32 %v3172, %v3172
    %v3181 = vmul.f32 %v3173, %v3173
    %v3182 = vmul.f32 %v3174, %v3174
    %v3183 = vmul.f32 %v3175, %v3175
    %v3184 = vadd.f32 %v3176, %v3178
    %v3185 = vadd.f32 %v3184, %v3180
    %v3186 = vadd.f32 %v3185, %v3182
    %v3187 = vrot.slane %v3186, 4
    %v3188 = vadd.f32 %v3186, %v3187
    %v3189 = vrot.slane %v3188, 2
    %v3190 = vadd.f32 %v3188, %v3189
    %v3191 = vrot.slane %v3190, 1
    %v3192 = vadd.f32 %v3190, %v3191
    %v3193 = vadd.f32 %v3177, %v3179
    %v3194 = vadd.f32 %v3193, %v3181
    %v3195 = vadd.f32 %v3194, %v3183
    %v3196 = vrot.slane %v3195, 4
    %v3197 = vadd.f32 %v3195, %v3196
    %v3198 = vrot.slane %v3197, 2
    %v3199 = vadd.f32 %v3197, %v3198
    %v3200 = vrot.slane %v3199, 1
    %v3201 = vadd.f32 %v3199, %v3200
    %v3202 = vmul.f32 %v3192, %v104
    %v3203 = vmul.f32 %v3201, %v104
    %v3204 = vadd.f32 %v3202, 1e-05
    %v3205 = vadd.f32 %v3203, 1e-05
    %v3206 = vrsqrt.pop %v3204
    %v3207 = vrsqrt.pop %v3205
    %v3208 = vmul.f32 %v3168, %v3206
    %v3209 = vmul.f32 %v3169, %v3207
    %v3210 = vmul.f32 %v3170, %v3206
    %v3211 = vmul.f32 %v3171, %v3207
    %v3212 = vmul.f32 %v3172, %v3206
    %v3213 = vmul.f32 %v3173, %v3207
    %v3214 = vmul.f32 %v3174, %v3206
    %v3215 = vmul.f32 %v3175, %v3207
    %s3216 = scalar_lea.vmem [#allocation7], 32
    %v3217 = vld [vmem:[%s3216] sm:$0xff]
    %v3218 = vld [vmem:[%s3216 + $0x8] sm:$0xff]
    %v3219 = vld [vmem:[%s3216 + $0x10] sm:$0xff]
    %v3220 = vld [vmem:[%s3216 + $0x18] sm:$0xff]
    %v3221 = vadd.f32 %v2491, %v2493
    %v3222 = vadd.f32 %v3221, %v2495
    %v3223 = vadd.f32 %v3222, %v2497
    %v3224 = vrot.slane %v3223, 4
    %v3225 = vadd.f32 %v3223, %v3224
    %v3226 = vrot.slane %v3225, 2
    %v3227 = vadd.f32 %v3225, %v3226
    %v3228 = vrot.slane %v3227, 1
    %v3229 = vadd.f32 %v3227, %v3228
    %v3230 = vadd.f32 %v2492, %v2494
    %v3231 = vadd.f32 %v3230, %v2496
    %v3232 = vadd.f32 %v3231, %v2498
    %v3233 = vrot.slane %v3232, 4
    %v3234 = vadd.f32 %v3232, %v3233
    %v3235 = vrot.slane %v3234, 2
    %v3236 = vadd.f32 %v3234, %v3235
    %v3237 = vrot.slane %v3236, 1
    %v3238 = vadd.f32 %v3236, %v3237
    %v3239 = vmul.f32 %v3229, %v104
    %v3240 = vmul.f32 %v3238, %v104
    %v3241 = vsub.f32 %v2491, %v3239
    %v3242 = vsub.f32 %v2492, %v3240
    %v3243 = vsub.f32 %v2493, %v3239
    %v3244 = vsub.f32 %v2494, %v3240
    %v3245 = vsub.f32 %v2495, %v3239
    %v3246 = vsub.f32 %v2496, %v3240
    %v3247 = vsub.f32 %v2497, %v3239
    %v3248 = vsub.f32 %v2498, %v3240
    %v3249 = vmul.f32 %v3241, %v3241
    %v3250 = vmul.f32 %v3242, %v3242
    %v3251 = vmul.f32 %v3243, %v3243
    %v3252 = vmul.f32 %v3244, %v3244
    %v3253 = vmul.f32 %v3245, %v3245
    %v3254 = vmul.f32 %v3246, %v3246
    %v3255 = vmul.f32 %v3247, %v3247
    %v3256 = vmul.f32 %v3248, %v3248
    %v3257 = vadd.f32 %v3249, %v3251
    %v3258 = vadd.f32 %v3257, %v3253
    %v3259 = vadd.f32 %v3258, %v3255
    %v3260 = vrot.slane %v3259, 4
    %v3261 = vadd.f32 %v3259, %v3260
    %v3262 = vrot.slane %v3261, 2
    %v3263 = vadd.f32 %v3261, %v3262
    %v3264 = vrot.slane %v3263, 1
    %v3265 = vadd.f32 %v3263, %v3264
    %v3266 = vadd.f32 %v3250, %v3252
    %v3267 = vadd.f32 %v3266, %v3254
    %v3268 = vadd.f32 %v3267, %v3256
    %v3269 = vrot.slane %v3268, 4
    %v3270 = vadd.f32 %v3268, %v3269
    %v3271 = vrot.slane %v3270, 2
    %v3272 = vadd.f32 %v3270, %v3271
    %v3273 = vrot.slane %v3272, 1
    %v3274 = vadd.f32 %v3272, %v3273
    %v3275 = vmul.f32 %v3265, %v104
    %v3276 = vmul.f32 %v3274, %v104
    %v3277 = vadd.f32 %v3275, 1e-05
    %v3278 = vadd.f32 %v3276, 1e-05
    %v3279 = vrsqrt.pop %v3277
    %v3280 = vrsqrt.pop %v3278
    %v3281 = vmul.f32 %v3241, %v3279
    %v3282 = vmul.f32 %v3242, %v3280
    %v3283 = vmul.f32 %v3243, %v3279
    %v3284 = vmul.f32 %v3244, %v3280
    %v3285 = vmul.f32 %v3245, %v3279
    %v3286 = vmul.f32 %v3246, %v3280
    %v3287 = vmul.f32 %v3247, %v3279
    %v3288 = vmul.f32 %v3248, %v3280
    %v3290 = vsel %vm330, %v3217, 0
    %v3293 = vsel %vm330, %v3218, 0
    %v3296 = vsel %vm330, %v3219, 0
    %v3299 = vsel %vm330, %v3220, 0
    %3301 = vmatprep.subr.mxu0 0.0
    %3302 = vmatpush1.msra.mxu0 0.0
    %3303 = vmatprep.subr.mxu0 0.0
    %3304 = vmatpush1.msra.mxu0 0.0
    %3305 = vmatprep.subr.mxu0 0.0
    %3306 = vmatpush1.msra.mxu0 0.0
    %3307 = vmatprep.subr.mxu0 0.0
    %3308 = vmatpush1.msra.mxu0 0.0
    %3309 = vmatprep.subr.mxu0 0.0
    %3310 = vmatpush1.msra.mxu0 0.0
    %3311 = vmatprep.subr.mxu0 0.0
    %3312 = vmatpush1.msra.mxu0 0.0
    %3313 = vmatprep.subr.mxu0 0.0
    %3314 = vmatpush1.msra.mxu0 0.0
    %3315 = vmatprep.subr.mxu0 0.0
    %3316 = vmatpush1.msra.mxu0 0.0
    %3317 = vmatprep.subr.mxu0 0.0
    %3318 = vmatpush1.msra.mxu0 0.0
    %3319 = vmatprep.subr.mxu0 0.0
    %3320 = vmatpush1.msra.mxu0 0.0
    %3321 = vmatprep.subr.mxu0 0.0
    %3322 = vmatpush1.msra.mxu0 0.0
    %3323 = vmatprep.subr.mxu0 0.0
    %3324 = vmatpush1.msra.mxu0 0.0
    %3325 = vmatprep.subr.mxu0 %v3288
    %3326 = vmatpush1.msra.mxu0 %v3287
    %3327 = vmatprep.subr.mxu0 %v3286
    %3328 = vmatpush1.msra.mxu0 %v3285
    %3329 = vmatprep.subr.mxu0 %v3284
    %3330 = vmatpush1.msra.mxu0 %v3283
    %3331 = vmatprep.subr.mxu0 %v3282
    %3332 = vmatpush1.msra.mxu0 %v3281
    %3333 = vmatprep.subr.mxu0 0.0
    %3334 = vmatpush2.msra.mxu0 0.0
    %3335 = vmatprep.subr.mxu0 0.0
    %3336 = vmatpush2.msra.mxu0 0.0
    %3337 = vmatprep.subr.mxu0 0.0
    %3338 = vmatpush2.msra.mxu0 0.0
    %3339 = vmatprep.subr.mxu0 0.0
    %3340 = vmatpush2.msra.mxu0 0.0
    %3341 = vmatprep.subr.mxu0 0.0
    %3342 = vmatpush2.msra.mxu0 0.0
    %3343 = vmatprep.subr.mxu0 0.0
    %3344 = vmatpush2.msra.mxu0 0.0
    %3345 = vmatprep.subr.mxu0 0.0
    %3346 = vmatpush2.msra.mxu0 0.0
    %3347 = vmatprep.subr.mxu0 0.0
    %3348 = vmatpush2.msra.mxu0 0.0
    %3349 = vmatprep.subr.mxu0 0.0
    %3350 = vmatpush2.msra.mxu0 0.0
    %3351 = vmatprep.subr.mxu0 0.0
    %3352 = vmatpush2.msra.mxu0 0.0
    %3353 = vmatprep.subr.mxu0 0.0
    %3354 = vmatpush2.msra.mxu0 0.0
    %3355 = vmatprep.subr.mxu0 0.0
    %3356 = vmatpush2.msra.mxu0 0.0
    %3357 = vmatprep.subr.mxu0 0.0
    %3358 = vmatpush2.msra.mxu0 0.0
    %3359 = vmatprep.subr.mxu0 0.0
    %3360 = vmatpush2.msra.mxu0 0.0
    %3361 = vmatprep.subr.mxu0 0.0
    %3362 = vmatpush2.msra.mxu0 0.0
    %3363 = vmatprep.subr.mxu0 0.0
    %3364 = vmatpush2.msra.mxu0 0.0
    %3365 = vmatprep.mubr.f32.mxu0 0.0
    %3366 = vmatmul.mubr.f32.gmra.mxu0 %v3290
    %v3367 = vpop.f32.mrf.mxu0
    %v3368 = vadd.f32 0.0, %v3367
    %v3369 = vpop.f32.mrf.mxu0
    %v3370 = vadd.f32 0.0, %v3369
    %3371 = vmatprep.mubr.f32.mxu0 0.0
    %3372 = vmatmul.mubr.f32.gmra.mxu0 %v3293
    %v3373 = vpop.f32.mrf.mxu0
    %v3374 = vadd.f32 0.0, %v3373
    %v3375 = vpop.f32.mrf.mxu0
    %v3376 = vadd.f32 0.0, %v3375
    %3377 = vmatprep.mubr.f32.mxu0 0.0
    %3378 = vmatmul.mubr.f32.gmra.mxu0 %v3296
    %v3379 = vpop.f32.mrf.mxu0
    %v3380 = vadd.f32 0.0, %v3379
    %v3381 = vpop.f32.mrf.mxu0
    %v3382 = vadd.f32 0.0, %v3381
    %3383 = vmatprep.mubr.f32.mxu0 0.0
    %3384 = vmatmul.mubr.f32.gmra.mxu0 %v3299
    %v3385 = vpop.f32.mrf.mxu0
    %v3386 = vadd.f32 0.0, %v3385
    %v3387 = vpop.f32.mrf.mxu0
    %v3388 = vadd.f32 0.0, %v3387
    %3389 = vdwg.mxu0
    %v3391 = vsel %vm330, %v3144, 0
    %v3394 = vsel %vm330, %v3145, 0
    %v3397 = vsel %vm330, %v3146, 0
    %v3400 = vsel %vm330, %v3147, 0
    %3402 = vmatprep.subr.mxu0 0.0
    %3403 = vmatpush1.msra.mxu0 0.0
    %3404 = vmatprep.subr.mxu0 0.0
    %3405 = vmatpush1.msra.mxu0 0.0
    %3406 = vmatprep.subr.mxu0 0.0
    %3407 = vmatpush1.msra.mxu0 0.0
    %3408 = vmatprep.subr.mxu0 0.0
    %3409 = vmatpush1.msra.mxu0 0.0
    %3410 = vmatprep.subr.mxu0 0.0
    %3411 = vmatpush1.msra.mxu0 0.0
    %3412 = vmatprep.subr.mxu0 0.0
    %3413 = vmatpush1.msra.mxu0 0.0
    %3414 = vmatprep.subr.mxu0 0.0
    %3415 = vmatpush1.msra.mxu0 0.0
    %3416 = vmatprep.subr.mxu0 0.0
    %3417 = vmatpush1.msra.mxu0 0.0
    %3418 = vmatprep.subr.mxu0 0.0
    %3419 = vmatpush1.msra.mxu0 0.0
    %3420 = vmatprep.subr.mxu0 0.0
    %3421 = vmatpush1.msra.mxu0 0.0
    %3422 = vmatprep.subr.mxu0 0.0
    %3423 = vmatpush1.msra.mxu0 0.0
    %3424 = vmatprep.subr.mxu0 0.0
    %3425 = vmatpush1.msra.mxu0 0.0
    %3426 = vmatprep.subr.mxu0 %v3215
    %3427 = vmatpush1.msra.mxu0 %v3214
    %3428 = vmatprep.subr.mxu0 %v3213
    %3429 = vmatpush1.msra.mxu0 %v3212
    %3430 = vmatprep.subr.mxu0 %v3211
    %3431 = vmatpush1.msra.mxu0 %v3210
    %3432 = vmatprep.subr.mxu0 %v3209
    %3433 = vmatpush1.msra.mxu0 %v3208
    %3434 = vmatprep.subr.mxu0 0.0
    %3435 = vmatpush2.msra.mxu0 0.0
    %3436 = vmatprep.subr.mxu0 0.0
    %3437 = vmatpush2.msra.mxu0 0.0
    %3438 = vmatprep.subr.mxu0 0.0
    %3439 = vmatpush2.msra.mxu0 0.0
    %3440 = vmatprep.subr.mxu0 0.0
    %3441 = vmatpush2.msra.mxu0 0.0
    %3442 = vmatprep.subr.mxu0 0.0
    %3443 = vmatpush2.msra.mxu0 0.0
    %3444 = vmatprep.subr.mxu0 0.0
    %3445 = vmatpush2.msra.mxu0 0.0
    %3446 = vmatprep.subr.mxu0 0.0
    %3447 = vmatpush2.msra.mxu0 0.0
    %3448 = vmatprep.subr.mxu0 0.0
    %3449 = vmatpush2.msra.mxu0 0.0
    %3450 = vmatprep.subr.mxu0 0.0
    %3451 = vmatpush2.msra.mxu0 0.0
    %3452 = vmatprep.subr.mxu0 0.0
    %3453 = vmatpush2.msra.mxu0 0.0
    %3454 = vmatprep.subr.mxu0 0.0
    %3455 = vmatpush2.msra.mxu0 0.0
    %3456 = vmatprep.subr.mxu0 0.0
    %3457 = vmatpush2.msra.mxu0 0.0
    %3458 = vmatprep.subr.mxu0 0.0
    %3459 = vmatpush2.msra.mxu0 0.0
    %3460 = vmatprep.subr.mxu0 0.0
    %3461 = vmatpush2.msra.mxu0 0.0
    %3462 = vmatprep.subr.mxu0 0.0
    %3463 = vmatpush2.msra.mxu0 0.0
    %3464 = vmatprep.subr.mxu0 0.0
    %3465 = vmatpush2.msra.mxu0 0.0
    %3466 = vmatprep.mubr.f32.mxu0 0.0
    %3467 = vmatmul.mubr.f32.gmra.mxu0 %v3391
    %v3468 = vpop.f32.mrf.mxu0
    %v3469 = vadd.f32 %v3368, %v3468
    %v3470 = vpop.f32.mrf.mxu0
    %v3471 = vadd.f32 %v3370, %v3470
    %3472 = vmatprep.mubr.f32.mxu0 0.0
    %3473 = vmatmul.mubr.f32.gmra.mxu0 %v3394
    %v3474 = vpop.f32.mrf.mxu0
    %v3475 = vadd.f32 %v3374, %v3474
    %v3476 = vpop.f32.mrf.mxu0
    %v3477 = vadd.f32 %v3376, %v3476
    %3478 = vmatprep.mubr.f32.mxu0 0.0
    %3479 = vmatmul.mubr.f32.gmra.mxu0 %v3397
    %v3480 = vpop.f32.mrf.mxu0
    %v3481 = vadd.f32 %v3380, %v3480
    %v3482 = vpop.f32.mrf.mxu0
    %v3483 = vadd.f32 %v3382, %v3482
    %3484 = vmatprep.mubr.f32.mxu0 0.0
    %3485 = vmatmul.mubr.f32.gmra.mxu0 %v3400
    %v3486 = vpop.f32.mrf.mxu0
    %v3487 = vadd.f32 %v3386, %v3486
    %v3488 = vpop.f32.mrf.mxu0
    %v3489 = vadd.f32 %v3388, %v3488
    %3490 = vdwg.mxu0
    %s3491 = scalar_lea.vmem [#allocation7], 64
    %v3492 = vld [vmem:[%s3491] sm:$0xff]
    %v3493 = vld [vmem:[%s3491 + $0x8] sm:$0xff]
    %v3494 = vld [vmem:[%s3491 + $0x10] sm:$0xff]
    %v3495 = vld [vmem:[%s3491 + $0x18] sm:$0xff]
    %v3496 = vadd.f32 %v3136, %v3138
    %v3497 = vadd.f32 %v3496, %v3140
    %v3498 = vadd.f32 %v3497, %v3142
    %v3499 = vrot.slane %v3498, 4
    %v3500 = vadd.f32 %v3498, %v3499
    %v3501 = vrot.slane %v3500, 2
    %v3502 = vadd.f32 %v3500, %v3501
    %v3503 = vrot.slane %v3502, 1
    %v3504 = vadd.f32 %v3502, %v3503
    %v3505 = vadd.f32 %v3137, %v3139
    %v3506 = vadd.f32 %v3505, %v3141
    %v3507 = vadd.f32 %v3506, %v3143
    %v3508 = vrot.slane %v3507, 4
    %v3509 = vadd.f32 %v3507, %v3508
    %v3510 = vrot.slane %v3509, 2
    %v3511 = vadd.f32 %v3509, %v3510
    %v3512 = vrot.slane %v3511, 1
    %v3513 = vadd.f32 %v3511, %v3512
    %v3514 = vmul.f32 %v3504, %v104
    %v3515 = vmul.f32 %v3513, %v104
    %v3516 = vsub.f32 %v3136, %v3514
    %v3517 = vsub.f32 %v3137, %v3515
    %v3518 = vsub.f32 %v3138, %v3514
    %v3519 = vsub.f32 %v3139, %v3515
    %v3520 = vsub.f32 %v3140, %v3514
    %v3521 = vsub.f32 %v3141, %v3515
    %v3522 = vsub.f32 %v3142, %v3514
    %v3523 = vsub.f32 %v3143, %v3515
    %v3524 = vmul.f32 %v3516, %v3516
    %v3525 = vmul.f32 %v3517, %v3517
    %v3526 = vmul.f32 %v3518, %v3518
    %v3527 = vmul.f32 %v3519, %v3519
    %v3528 = vmul.f32 %v3520, %v3520
    %v3529 = vmul.f32 %v3521, %v3521
    %v3530 = vmul.f32 %v3522, %v3522
    %v3531 = vmul.f32 %v3523, %v3523
    %v3532 = vadd.f32 %v3524, %v3526
    %v3533 = vadd.f32 %v3532, %v3528
    %v3534 = vadd.f32 %v3533, %v3530
    %v3535 = vrot.slane %v3534, 4
    %v3536 = vadd.f32 %v3534, %v3535
    %v3537 = vrot.slane %v3536, 2
    %v3538 = vadd.f32 %v3536, %v3537
    %v3539 = vrot.slane %v3538, 1
    %v3540 = vadd.f32 %v3538, %v3539
    %v3541 = vadd.f32 %v3525, %v3527
    %v3542 = vadd.f32 %v3541, %v3529
    %v3543 = vadd.f32 %v3542, %v3531
    %v3544 = vrot.slane %v3543, 4
    %v3545 = vadd.f32 %v3543, %v3544
    %v3546 = vrot.slane %v3545, 2
    %v3547 = vadd.f32 %v3545, %v3546
    %v3548 = vrot.slane %v3547, 1
    %v3549 = vadd.f32 %v3547, %v3548
    %v3550 = vmul.f32 %v3540, %v104
    %v3551 = vmul.f32 %v3549, %v104
    %v3552 = vadd.f32 %v3550, 1e-05
    %v3553 = vadd.f32 %v3551, 1e-05
    %v3554 = vrsqrt.pop %v3552
    %v3555 = vrsqrt.pop %v3553
    %v3556 = vmul.f32 %v3516, %v3554
    %v3557 = vmul.f32 %v3517, %v3555
    %v3558 = vmul.f32 %v3518, %v3554
    %v3559 = vmul.f32 %v3519, %v3555
    %v3560 = vmul.f32 %v3520, %v3554
    %v3561 = vmul.f32 %v3521, %v3555
    %v3562 = vmul.f32 %v3522, %v3554
    %v3563 = vmul.f32 %v3523, %v3555
    %v3565 = vsel %vm330, %v3492, 0
    %v3568 = vsel %vm330, %v3493, 0
    %v3571 = vsel %vm330, %v3494, 0
    %v3574 = vsel %vm330, %v3495, 0
    %3576 = vmatprep.subr.mxu0 0.0
    %3577 = vmatpush1.msra.mxu0 0.0
    %3578 = vmatprep.subr.mxu0 0.0
    %3579 = vmatpush1.msra.mxu0 0.0
    %3580 = vmatprep.subr.mxu0 0.0
    %3581 = vmatpush1.msra.mxu0 0.0
    %3582 = vmatprep.subr.mxu0 0.0
    %3583 = vmatpush1.msra.mxu0 0.0
    %3584 = vmatprep.subr.mxu0 0.0
    %3585 = vmatpush1.msra.mxu0 0.0
    %3586 = vmatprep.subr.mxu0 0.0
    %3587 = vmatpush1.msra.mxu0 0.0
    %3588 = vmatprep.subr.mxu0 0.0
    %3589 = vmatpush1.msra.mxu0 0.0
    %3590 = vmatprep.subr.mxu0 0.0
    %3591 = vmatpush1.msra.mxu0 0.0
    %3592 = vmatprep.subr.mxu0 0.0
    %3593 = vmatpush1.msra.mxu0 0.0
    %3594 = vmatprep.subr.mxu0 0.0
    %3595 = vmatpush1.msra.mxu0 0.0
    %3596 = vmatprep.subr.mxu0 0.0
    %3597 = vmatpush1.msra.mxu0 0.0
    %3598 = vmatprep.subr.mxu0 0.0
    %3599 = vmatpush1.msra.mxu0 0.0
    %3600 = vmatprep.subr.mxu0 %v3563
    %3601 = vmatpush1.msra.mxu0 %v3562
    %3602 = vmatprep.subr.mxu0 %v3561
    %3603 = vmatpush1.msra.mxu0 %v3560
    %3604 = vmatprep.subr.mxu0 %v3559
    %3605 = vmatpush1.msra.mxu0 %v3558
    %3606 = vmatprep.subr.mxu0 %v3557
    %3607 = vmatpush1.msra.mxu0 %v3556
    %3608 = vmatprep.subr.mxu0 0.0
    %3609 = vmatpush2.msra.mxu0 0.0
    %3610 = vmatprep.subr.mxu0 0.0
    %3611 = vmatpush2.msra.mxu0 0.0
    %3612 = vmatprep.subr.mxu0 0.0
    %3613 = vmatpush2.msra.mxu0 0.0
    %3614 = vmatprep.subr.mxu0 0.0
    %3615 = vmatpush2.msra.mxu0 0.0
    %3616 = vmatprep.subr.mxu0 0.0
    %3617 = vmatpush2.msra.mxu0 0.0
    %3618 = vmatprep.subr.mxu0 0.0
    %3619 = vmatpush2.msra.mxu0 0.0
    %3620 = vmatprep.subr.mxu0 0.0
    %3621 = vmatpush2.msra.mxu0 0.0
    %3622 = vmatprep.subr.mxu0 0.0
    %3623 = vmatpush2.msra.mxu0 0.0
    %3624 = vmatprep.subr.mxu0 0.0
    %3625 = vmatpush2.msra.mxu0 0.0
    %3626 = vmatprep.subr.mxu0 0.0
    %3627 = vmatpush2.msra.mxu0 0.0
    %3628 = vmatprep.subr.mxu0 0.0
    %3629 = vmatpush2.msra.mxu0 0.0
    %3630 = vmatprep.subr.mxu0 0.0
    %3631 = vmatpush2.msra.mxu0 0.0
    %3632 = vmatprep.subr.mxu0 0.0
    %3633 = vmatpush2.msra.mxu0 0.0
    %3634 = vmatprep.subr.mxu0 0.0
    %3635 = vmatpush2.msra.mxu0 0.0
    %3636 = vmatprep.subr.mxu0 0.0
    %3637 = vmatpush2.msra.mxu0 0.0
    %3638 = vmatprep.subr.mxu0 0.0
    %3639 = vmatpush2.msra.mxu0 0.0
    %3640 = vmatprep.mubr.f32.mxu0 0.0
    %3641 = vmatmul.mubr.f32.gmra.mxu0 %v3565
    %v3642 = vpop.f32.mrf.mxu0
    %v3643 = vadd.f32 0.0, %v3642
    %v3644 = vpop.f32.mrf.mxu0
    %v3645 = vadd.f32 0.0, %v3644
    %3646 = vmatprep.mubr.f32.mxu0 0.0
    %3647 = vmatmul.mubr.f32.gmra.mxu0 %v3568
    %v3648 = vpop.f32.mrf.mxu0
    %v3649 = vadd.f32 0.0, %v3648
    %v3650 = vpop.f32.mrf.mxu0
    %v3651 = vadd.f32 0.0, %v3650
    %3652 = vmatprep.mubr.f32.mxu0 0.0
    %3653 = vmatmul.mubr.f32.gmra.mxu0 %v3571
    %v3654 = vpop.f32.mrf.mxu0
    %v3655 = vadd.f32 0.0, %v3654
    %v3656 = vpop.f32.mrf.mxu0
    %v3657 = vadd.f32 0.0, %v3656
    %3658 = vmatprep.mubr.f32.mxu0 0.0
    %3659 = vmatmul.mubr.f32.gmra.mxu0 %v3574
    %v3660 = vpop.f32.mrf.mxu0
    %v3661 = vadd.f32 0.0, %v3660
    %v3662 = vpop.f32.mrf.mxu0
    %v3663 = vadd.f32 0.0, %v3662
    %3664 = vdwg.mxu0
    %v3665 = vadd.f32 %v3469, %v3643
    %v3666 = vadd.f32 %v3471, %v3645
    %v3667 = vadd.f32 %v3475, %v3649
    %v3668 = vadd.f32 %v3477, %v3651
    %v3669 = vadd.f32 %v3481, %v3655
    %v3670 = vadd.f32 %v3483, %v3657
    %v3671 = vadd.f32 %v3487, %v3661
    %v3672 = vadd.f32 %v3489, %v3663
    %v3673 = vld [vmem:[%s9] sm:$0xff]
    %v3674 = vld [vmem:[%s9 + $0x8] sm:$0xff]
    %v3675 = vld [vmem:[%s9 + $0x10] sm:$0xff]
    %v3676 = vld [vmem:[%s9 + $0x18] sm:$0xff]
    %3678 = vset.pattern.permute.xlu0 0
    %3679 = vperm.xlu0 %3678, %v3673
    %v3680 = vpop.permute.xlu0 %3679
    %3683 = vset.pattern.permute.xlu0 0
    %3684 = vperm.xlu0 %3683, %v3674
    %v3685 = vpop.permute.xlu0 %3684
    %3688 = vset.pattern.permute.xlu0 0
    %3689 = vperm.xlu0 %3688, %v3675
    %v3690 = vpop.permute.xlu0 %3689
    %3693 = vset.pattern.permute.xlu0 0
    %3694 = vperm.xlu0 %3693, %v3676
    %v3695 = vpop.permute.xlu0 %3694
    %v3697 = vadd.f32 %v3665, %v3680
    %v3698 = vadd.f32 %v3666, %v3680
    %v3699 = vadd.f32 %v3667, %v3685
    %v3700 = vadd.f32 %v3668, %v3685
    %v3701 = vadd.f32 %v3669, %v3690
    %v3702 = vadd.f32 %v3670, %v3690
    %v3703 = vadd.f32 %v3671, %v3695
    %v3704 = vadd.f32 %v3672, %v3695
    %v3705 = vadd.f32 %v3697, %v78
    %v3706 = vadd.f32 %v3698, %v79
    %v3707 = vadd.f32 %v3699, %v80
    %v3708 = vadd.f32 %v3700, %v81
    %v3709 = vadd.f32 %v3701, %v82
    %v3710 = vadd.f32 %v3702, %v83
    %v3711 = vadd.f32 %v3703, %v84
    %v3712 = vadd.f32 %v3704, %v85
    %3713 = vst [vmem:[#allocation8] sm:$0xff] %v3705
    %3714 = vst [vmem:[#allocation8 + $0x8] sm:$0xff] %v3706
    %3715 = vst [vmem:[#allocation8 + $0x10] sm:$0xff] %v3707
    %3716 = vst [vmem:[#allocation8 + $0x18] sm:$0xff] %v3708
    %3717 = vst [vmem:[#allocation8 + $0x20] sm:$0xff] %v3709
    %3718 = vst [vmem:[#allocation8 + $0x28] sm:$0xff] %v3710
    %3719 = vst [vmem:[#allocation8 + $0x30] sm:$0xff] %v3711
    %3720 = vst [vmem:[#allocation8 + $0x38] sm:$0xff] %v3712
    // Predicated region
    $region54: #{tpu_custom_call.1} parent=1 // pred_check
      _
    $region55: #{tpu_custom_call.1} parent=1 // pred_check_branch
      %3722 = sbr.rel (0) target = $region57
    $region56: #{tpu_custom_call.1} parent=1 // pred_region
      %s3724 = ssub.s32 1024, 1024
      %3725 = vsyncadd [#allocation4], %s3724
      %s3726 = sshll.u32 [#allocation8], 4
      %s3727 = int_to_ptr.vmem [resolvable:$true] %s3726
      %3732 = dma.vmem_to_hbm [thread:$0]  %s3727, 1024, %s10, [#allocation4], 256, 256, 16
    $region57: #{tpu_custom_call.1} parent=1 // pred_fallthru
      _
    // Predicated region
    $region58: #{tpu_custom_call.1} parent=1 // pred_check
      _
    $region59: #{tpu_custom_call.1} parent=1 // pred_check_branch
      %3734 = sbr.rel (0) target = $region61
    $region60: #{tpu_custom_call.1} parent=1 // pred_region
      %3735 = dma.done [#allocation4], 1024
    $region61: #{tpu_custom_call.1} parent=1 // pred_fallthru
      _
    %3736 = vsyncpa [#allocation3], 1
    %3737 = vsyncpa [#allocation6], 1
    %3738 = vsyncpa [#allocation4], 1

</llo_original>
